<compile_context>
chip_gen: v7x
topology: tpu7x:2x2x1
jax: 0.10.0
libtpu: 0.0.40
codegen_flags: <defaults>
</compile_context>

<pallas_src>
import jax
import jax.numpy as jnp
from jax import lax
from jax.experimental import pallas as pl
from jax.experimental.pallas import tpu as pltpu

# ----------------------------- static config --------------------------------
NUM_ENT = 16          # config['num_ent']
NUM_REL = 6           # config['num_rel']
EPAD = NUM_ENT        # padding entity id (self.ePAD)
MAX_CAND = 8          # config['max_candidate_num']
MAX_ACT = 8           # config['max_action_num']
PATH_LEN = 2          # config['path_length']
ENT_DIM = 32          # config['ent_dim'] (static part + time encoding)
T_DIM = 8
ENT_STATIC = ENT_DIM - T_DIM
REL_DIM = 32
STATE_DIM = 32        # LSTM hidden / config['state_dim']
FFN_DIM = 64
MLP_DIM = 64
ACT_EMB = REL_DIM + ENT_DIM          # 64, also the fused gather-table lane width
NEG = -1e9

B_BLK = 8             # queries per grid block (fills 8 sublanes)
NUM_BLOCKS = 2        # grid size (parallel -> second TC on v7x)
B_TOTAL = B_BLK * NUM_BLOCKS
BC_BLK = B_BLK * MAX_CAND            # 64 candidate rows per block

REL_ROWS = 8          # rel table rows padded (NUM_REL+1 = 7 -> 8)
ENT_ROWS = 24         # ent table rows padded (NUM_ENT+1 = 17 -> 24)
DT_MIN = -32
DT_RANGE = 64         # integer delta-time LUT covers dt in [-32, 31]
GATH_ROWS = ENT_ROWS + DT_RANGE + REL_ROWS   # 96 fused gather rows
OUT_LANES = 128


def _layer_norm(x, g, b, eps=1e-5):
    mu = jnp.mean(x, axis=-1, keepdims=True)
    var = jnp.mean((x - mu) ** 2, axis=-1, keepdims=True)
    return (x - mu) * jax.lax.rsqrt(var + eps) * g + b


# ------------------------- fused episode kernel ------------------------------
def episode_kernel(cand_ref, abias_ref, qemb_ref, qmlp_ref, qscal_ref,
                   w32_ref, w128_ref, wlstm_ref, bv_ref, gath_ref, act_ref,
                   out_ref):
    f32 = jnp.float32

    # ---- biases / small vectors: one full-tile load, value slices only ----
    bias = bv_ref[...]                              # (16, 128)
    bqkv = bias[0:1, :]
    bo = bias[1:2, :]
    b1f = bias[2:3, :]
    b2f = bias[3:4, :]
    g1 = bias[4:5, 0:ENT_DIM]
    be1 = bias[5:6, 0:ENT_DIM]
    g2 = bias[6:7, 0:ENT_DIM]
    be2 = bias[7:8, 0:ENT_DIM]
    blstm = bias[8:9, :]
    bm2 = bias[9:10, :]
    relpad = bias[10:11, 0:REL_DIM]                 # rel_table[NUM_REL]

    # ---- transformer encoder over this block's (BC_BLK, ENT_DIM) space ----
    x = cand_ref[...]                                                 # (64, 32)
    qkv = jnp.dot(x, w32_ref[0], preferred_element_type=f32) + bqkv   # (64, 128)
    q = qkv[:, 0:ENT_DIM]
    k = qkv[:, ENT_DIM:2 * ENT_DIM]
    v = qkv[:, 2 * ENT_DIM:3 * ENT_DIM]
    s = lax.dot_general(q, k, (((1,), (1,)), ((), ())),
                        preferred_element_type=f32)                   # (64, 64)
    s = s + abias_ref[...]                                            # block-diag mask
    m = jnp.max(s, axis=-1, keepdims=True)
    p = jnp.exp(s - m)
    p = p * pl.reciprocal(jnp.sum(p, axis=-1, keepdims=True), approx=True)
    attn = jnp.dot(p, v, preferred_element_type=f32)                  # (64, 32)
    attn = jnp.dot(attn, w32_ref[1], preferred_element_type=f32) + bo # (64, 128)
    h = _layer_norm(x + attn[:, 0:ENT_DIM], g1, be1)
    ff = jnp.maximum(jnp.dot(h, w32_ref[2], preferred_element_type=f32) + b1f, 0.0)
    ff = jnp.dot(ff, w128_ref[0], preferred_element_type=f32) + b2f
    hq = _layer_norm(h + ff[:, 0:ENT_DIM], g2, be2)                   # (64, 32)
    # hoisted: pooled history encoding, zero-padded to the fused 64-lane layout
    hq_pool = jnp.mean(hq.reshape(B_BLK, MAX_CAND, ENT_DIM), axis=1)  # (8, 32)
    hq_pool64 = jnp.concatenate([hq_pool, jnp.zeros_like(hq_pool)], axis=1)

    # ---- per-query scalars (packed) ----
    q_ts = qscal_ref[:, 0:1]          # (B, 1)
    hflag = qscal_ref[:, 1:2]         # (B, 1)
    cur_ent = qscal_ref[:, 2:3]       # (B, 1) float entity id

    hx = jnp.zeros((B_BLK, STATE_DIM), f32)
    cx = jnp.zeros((B_BLK, STATE_DIM), f32)
    # prev action embedding carry: lanes [ent-emb 0..31 | rel-emb 32..63]
    prev_emb = jnp.concatenate(
        [qemb_ref[...], jnp.broadcast_to(relpad, (B_BLK, REL_DIM))], axis=1)
    mlp_qbias = qmlp_ref[...]                    # (B, 128) query part of MLP bias

    iota_a = lax.broadcasted_iota(jnp.int32, (B_BLK, MAX_ACT), 1).astype(f32)
    iota_e = lax.broadcasted_iota(jnp.int32, (B_BLK, ENT_ROWS), 1).astype(f32)
    iota_g = lax.broadcasted_iota(jnp.int32, (B_BLK, MAX_ACT, GATH_ROWS), 2).astype(f32)
    # lane one-hot bases for packing the 6 per-step scalars into 8 lanes
    basis = [(iota_a[0:1, :] == float(kk)).astype(f32) for kk in range(6)]

    out_rows = []
    # TODO(synk): convert to lax.fori_loop(..., unroll=True) if PATH_LEN grows.
    for t in range(PATH_LEN):
        # ---- fused LSTM cell: one (B, 96) x (96, 128) dot ----
        lstm_in = jnp.concatenate([prev_emb, hx], axis=1)              # (B, 96)
        gates = jnp.dot(lstm_in, wlstm_ref[...],
                        preferred_element_type=f32) + blstm            # (B, 128)
        i_g = jax.nn.sigmoid(gates[:, 0:STATE_DIM])
        f_g = jax.nn.sigmoid(gates[:, STATE_DIM:2 * STATE_DIM])
        g_g = jnp.tanh(gates[:, 2 * STATE_DIM:3 * STATE_DIM])
        o_g = jax.nn.sigmoid(gates[:, 3 * STATE_DIM:4 * STATE_DIM])
        cx = f_g * cx + i_g * g_g
        hx = o_g * jnp.tanh(cx)

        # ---- policy MLP (query contribution precomputed in wrapper) ----
        hid = jnp.maximum(jnp.dot(hx, w32_ref[3], preferred_element_type=f32)
                          + mlp_qbias, 0.0)                            # (B, 128)
        mout = (jnp.dot(hid, w128_ref[1], preferred_element_type=f32)
                + bm2)[:, 0:ACT_EMB]          # (B, 64) lanes [ent-out | rel-out]

        # ---- fused action-table lookup: one (B,24) x (24,32) dot ----
        cur_oh = (cur_ent == iota_e).astype(f32)                       # (B, 24)
        acts = jnp.dot(cur_oh, act_ref[...], preferred_element_type=f32)
        a_rel = acts[:, 0:MAX_ACT]
        a_ent = acts[:, MAX_ACT:2 * MAX_ACT]
        a_ts = acts[:, 2 * MAX_ACT:3 * MAX_ACT]
        a_dt = q_ts - a_ts                                             # (B, 8)
        a_mask = (a_ent == float(EPAD)).astype(f32)

        # ---- fused embedding gather: one (B*MA,96) one-hot x (96,64) dot ----
        dt_idx = float(ENT_ROWS) + jnp.clip(a_dt - DT_MIN, 0.0, DT_RANGE - 1.0)
        rel_idx = float(ENT_ROWS + DT_RANGE) + a_rel
        oh = ((iota_g == a_ent[:, :, None]).astype(f32)
              + (iota_g == dt_idx[:, :, None]).astype(f32)
              + (iota_g == rel_idx[:, :, None]).astype(f32))           # (B, MA, 96)
        a_emb = jnp.dot(oh.reshape(B_BLK * MAX_ACT, GATH_ROWS), gath_ref[...],
                        preferred_element_type=f32
                        ).reshape(B_BLK, MAX_ACT, ACT_EMB)  # lanes [ent | rel]

        # ---- action scoring + masked log-softmax ----
        scores = jnp.sum(a_emb * mout[:, None, :], axis=-1)            # (B, MA)
        scores = scores + a_mask * NEG
        mx = jnp.max(scores, axis=-1, keepdims=True)
        z = scores - mx
        logits = z - jnp.log(jnp.sum(jnp.exp(z), axis=-1, keepdims=True))

        # ---- path score gated by history flag ----
        pscore = jax.nn.sigmoid(jnp.sum(a_emb * hq_pool64[:, None, :], axis=-1))
        pscore = pscore * (1.0 - hflag)

        # ---- greedy action choice (first-max index, no dynamic gather) ----
        lmax = jnp.max(logits, axis=-1, keepdims=True)
        aidx = jnp.min(jnp.where(logits == lmax, iota_a, float(MAX_ACT)),
                       axis=-1, keepdims=True)                         # (B, 1)
        ch_oh = (iota_a == aidx).astype(f32)                           # (B, 8)

        loss = -jnp.sum(logits * ch_oh, axis=-1, keepdims=True)
        cps = jnp.sum(pscore * ch_oh, axis=-1, keepdims=True)
        ch_rel = jnp.sum(a_rel * ch_oh, axis=-1, keepdims=True)
        ch_ent = jnp.sum(a_ent * ch_oh, axis=-1, keepdims=True)
        ch_ts = jnp.sum(a_ts * ch_oh, axis=-1, keepdims=True)

        # ---- assemble this step's (B, 128) output rows in registers ----
        scal8 = (loss * basis[0] + aidx * basis[1] + cps * basis[2]
                 + ch_ent * basis[3] + ch_ts * basis[4] + ch_rel * basis[5])
        out_rows.append(jnp.concatenate(
            [logits, scal8,
             jnp.zeros((B_BLK, OUT_LANES - 2 * MAX_ACT), f32)], axis=1))

        # ---- carry state to next step ----
        cur_ent = ch_ent
        prev_emb = jnp.sum(a_emb * ch_oh[:, :, None], axis=1)          # (B, 64)

    # single unmasked full-tile store (no zero-init, no narrow column stores)
    out_ref[...] = jnp.concatenate(out_rows, axis=0)


# --------------------------- parameter packing --------------------------------
def pack_inputs(params, env):
    tp = params['transformer']
    pp = params['policy']
    f32 = jnp.float32
    scale = ENT_DIM ** -0.5

    def pad_lanes(w, n=128):
        w = jnp.asarray(w, f32)
        return jnp.pad(w, ((0, 0), (0, n - w.shape[1])))

    def row(v, n=128):
        v = jnp.asarray(v, f32).reshape(1, -1)
        return jnp.pad(v, ((0, 0), (0, n - v.shape[1])))

    def to128(w):
        w = jnp.asarray(w, f32)
        return jnp.pad(w, ((0, 128 - w.shape[0]), (0, 128 - w.shape[1])))

    # policy MLP layer-2 columns reordered to [ent | rel] so its output
    # lane-aligns with the fused gather's [ent-emb | rel-emb] layout.
    wm2_r = jnp.concatenate([pp['w_mlp2'][:, REL_DIM:], pp['w_mlp2'][:, :REL_DIM]], axis=1)
    bm2_r = jnp.concatenate([pp['b_mlp2'][:, REL_DIM:], pp['b_mlp2'][:, :REL_DIM]], axis=1)

    w32 = jnp.stack([
        pad_lanes(jnp.concatenate([tp['wq'] * scale, tp['wk'], tp['wv']], axis=1)),
        pad_lanes(tp['wo']),
        pad_lanes(tp['w1']),
        pad_lanes(pp['w_mlp_s']),
    ], axis=0)                                                     # (4, 32, 128)
    w128 = jnp.stack([to128(tp['w2']), to128(wm2_r)], axis=0)      # (2, 128, 128)
    # LSTM rows packed as [w_ih_ent | w_ih_rel | w_hh] to match [ent|rel|hx] input
    wlstm = jnp.concatenate([pp['w_ih_ent'], pp['w_ih_rel'], pp['w_hh']], axis=0)

    biasv = jnp.concatenate([
        row(jnp.concatenate([tp['bq'] * scale, tp['bk'], tp['bv']], axis=1)),
        row(tp['bo']), row(tp['b1']), row(tp['b2']),
        row(tp['ln1_g']), row(tp['ln1_b']), row(tp['ln2_g']), row(tp['ln2_b']),
        row(pp['b_lstm']), row(bm2_r),
        row(params['rel_table'][NUM_REL]),
        jnp.zeros((5, 128), f32),
    ], axis=0)                                                     # (16, 128)

    # fused gather table (96, 64): rows [ent(24) | dt(64) | rel(8)],
    # lanes [ent-embedding 0..31 | rel-embedding 32..63]
    rel_pad = jnp.pad(params['rel_table'], ((0, REL_ROWS - (NUM_REL + 1)), (0, 0)))
    ent_pad = jnp.pad(params['ent_table'],
                      ((0, ENT_ROWS - (NUM_ENT + 1)), (0, ENT_DIM - ENT_STATIC)))
    dts = jnp.arange(DT_RANGE, dtype=f32) + DT_MIN
    tfeat = jnp.cos(dts[:, None] * params['time_w'][None, :]
                    + params['time_b'][None, :])                   # (64, 8)
    dt_blk = jnp.pad(tfeat, ((0, 0), (ENT_STATIC, 0)))             # (64, 32)
    gath_top = jnp.concatenate(
        [jnp.concatenate([ent_pad, dt_blk], axis=0),
         jnp.zeros((ENT_ROWS + DT_RANGE, REL_DIM), f32)], axis=1)  # (88, 64)
    gath_bot = jnp.concatenate(
        [jnp.zeros((REL_ROWS, ENT_DIM), f32), rel_pad], axis=1)    # (8, 64)
    gath_tbl = jnp.concatenate([gath_top, gath_bot], axis=0)       # (96, 64)

    # fused action table (24, 32): lanes [rel 0..7 | ent 8..15 | ts 16..23 | 0]
    at = env['actions_table'].astype(f32)                          # (17, 8, 3)
    act_pack = jnp.concatenate([at[:, :, 0], at[:, :, 1], at[:, :, 2],
                                jnp.zeros((NUM_ENT + 1, MAX_ACT), f32)], axis=1)
    act_tbl = jnp.pad(act_pack, ((0, ENT_ROWS - (NUM_ENT + 1)), (0, 0)))

    return {
        'w32': w32, 'w128': w128, 'wlstm': wlstm, 'biasv': biasv,
        'gath_tbl': gath_tbl, 'act_tbl': act_tbl,
        # raw pieces used only by the wrapper-side (one-shot) precompute
        'ent_table': params['ent_table'], 'rel_table': params['rel_table'],
        'time_w': params['time_w'], 'time_b': params['time_b'],
        'history_table': env['history_table'],
        'w_mlp_e': pp['w_mlp_e'], 'w_mlp_r': pp['w_mlp_r'], 'b_mlp1': pp['b_mlp1'],
    }


# ------------------------------ forward wrapper --------------------------------
@jax.jit
def episode_forward(packed, query_entities, query_timestamps, query_relations):
    f32 = jnp.float32
    qt_f = query_timestamps.astype(f32)

    # query embeddings (loop-invariant) + precomputed MLP query bias
    q_ent_static = packed['ent_table'][query_entities]             # (B, 24)
    t0 = jnp.cos(jnp.zeros((B_TOTAL, 1), f32) * packed['time_w'] + packed['time_b'])
    q_ent_emb = jnp.concatenate([q_ent_static, t0], axis=-1)       # (B, 32)
    q_rel_emb = packed['rel_table'][query_relations]               # (B, 32)
    mlp_qbias = (q_ent_emb @ packed['w_mlp_e'] + q_rel_emb @ packed['w_mlp_r']
                 + packed['b_mlp1'])                               # (B, 64)
    mlp_qbias = jnp.pad(mlp_qbias, ((0, 0), (0, OUT_LANES - MLP_DIM)))  # (B, 128)

    # TODO(synk): env.get_history_space modeled as a static gather table.
    hist = packed['history_table'][query_entities]                 # (B, C, 2)
    hist_ent = hist[:, :, 0]
    hist_ts = hist[:, :, 1]
    history_mask = (hist_ent[:, 0:1] == EPAD)                      # (B, 1)
    pad_mask = (hist_ent == EPAD)                                  # (B, C)
    cand_mask = jnp.logical_xor(pad_mask, history_mask)            # (B, C)
    cand_dt = (query_timestamps[:, None] - hist_ts).astype(f32)
    cand_t = jnp.cos(cand_dt[:, :, None] * packed['time_w'] + packed['time_b'])
    cand_emb = jnp.concatenate(
        [packed['ent_table'][hist_ent], cand_t], axis=-1).astype(f32)
    cand_emb = cand_emb.reshape(B_TOTAL * MAX_CAND, ENT_DIM)

    # per-block (BC_BLK x BC_BLK) additive attention bias: block-diag + padded keys
    col_q = jnp.arange(BC_BLK, dtype=jnp.int32)[None, :] // MAX_CAND
    row_q = jnp.arange(BC_BLK, dtype=jnp.int32)[:, None] // MAX_CAND
    block_eq = (col_q == row_q)                                    # (64, 64)
    key_mask = cand_mask.reshape(NUM_BLOCKS, BC_BLK)               # (2, 64)
    allowed = jnp.logical_and(block_eq[None, :, :],
                              jnp.logical_not(key_mask[:, None, :]))
    attn_bias = jnp.where(allowed, 0.0, NEG).astype(f32)
    attn_bias = attn_bias.reshape(NUM_BLOCKS * BC_BLK, BC_BLK)     # (128, 64)

    hflag = history_mask.astype(f32)                               # (B, 1)
    qscal = jnp.concatenate(
        [qt_f[:, None], hflag, query_entities.astype(f32)[:, None],
         jnp.zeros((B_TOTAL, 5), f32)], axis=-1)                   # (B, 8)

    out = pl.pallas_call(
        episode_kernel,
        out_shape=jax.ShapeDtypeStruct((NUM_BLOCKS * PATH_LEN * B_BLK, OUT_LANES), f32),
        grid=(NUM_BLOCKS,),
        in_specs=[
            pl.BlockSpec((BC_BLK, ENT_DIM), lambda i: (i, 0)),       # cand_emb
            pl.BlockSpec((BC_BLK, BC_BLK), lambda i: (i, 0)),        # attn_bias
            pl.BlockSpec((B_BLK, ENT_DIM), lambda i: (i, 0)),        # q_ent_emb
            pl.BlockSpec((B_BLK, OUT_LANES), lambda i: (i, 0)),      # mlp_qbias
            pl.BlockSpec((B_BLK, 8), lambda i: (i, 0)),              # qscal
            pl.BlockSpec((4, ENT_DIM, 128), lambda i: (0, 0, 0)),    # w32 (resident)
            pl.BlockSpec((2, 128, 128), lambda i: (0, 0, 0)),        # w128 (resident)
            pl.BlockSpec((GATH_ROWS, 128), lambda i: (0, 0)),        # wlstm (resident)
            pl.BlockSpec((16, 128), lambda i: (0, 0)),               # biases (resident)
            pl.BlockSpec((GATH_ROWS, ACT_EMB), lambda i: (0, 0)),    # gather table
            pl.BlockSpec((ENT_ROWS, 32), lambda i: (0, 0)),          # action table
        ],
        out_specs=pl.BlockSpec((PATH_LEN * B_BLK, OUT_LANES), lambda i: (i, 0)),
        compiler_params=pltpu.CompilerParams(
            dimension_semantics=("parallel",)),
        cost_estimate=pl.CostEstimate(flops=15_000_000, transcendentals=20_000,
                                      bytes_accessed=500_000),
    )(cand_emb, attn_bias, q_ent_emb, mlp_qbias, qscal,
      packed['w32'], packed['w128'], packed['wlstm'], packed['biasv'],
      packed['gath_tbl'], packed['act_tbl'])

    rows = out.reshape(NUM_BLOCKS, PATH_LEN, B_BLK, OUT_LANES)
    rows = jnp.transpose(rows, (1, 0, 2, 3)).reshape(PATH_LEN, B_TOTAL, OUT_LANES)
    all_loss = [rows[t, :, MAX_ACT] for t in range(PATH_LEN)]
    all_logits = [rows[t, :, 0:MAX_ACT] for t in range(PATH_LEN)]
    all_actions_idx = [rows[t, :, MAX_ACT + 1:MAX_ACT + 2].astype(jnp.int32)
                       for t in range(PATH_LEN)]
    all_path_score = [rows[t, :, MAX_ACT + 2:MAX_ACT + 3] for t in range(PATH_LEN)]
    current_entities = rows[PATH_LEN - 1, :, MAX_ACT + 3].astype(jnp.int32)
    current_timestamps = rows[PATH_LEN - 1, :, MAX_ACT + 4].astype(jnp.int32)
    return (all_loss, all_logits, all_actions_idx,
            current_entities, current_timestamps, all_path_score)


# ------------------------------ initialization --------------------------------
def init_params(key):
    ks = jax.random.split(key, 20)

    def nrm(k, shape, scale=0.1):
        return jax.random.normal(k, shape, jnp.float32) * scale

    return {
        'ent_table': nrm(ks[0], (NUM_ENT + 1, ENT_STATIC)),
        'rel_table': nrm(ks[1], (NUM_REL + 1, REL_DIM)),
        'time_w': nrm(ks[2], (T_DIM,), 0.5),
        'time_b': nrm(ks[3], (T_DIM,), 0.5),
        'transformer': {
            'wq': nrm(ks[4], (ENT_DIM, ENT_DIM)), 'bq': jnp.zeros((1, ENT_DIM), jnp.float32),
            'wk': nrm(ks[5], (ENT_DIM, ENT_DIM)), 'bk': jnp.zeros((1, ENT_DIM), jnp.float32),
            'wv': nrm(ks[6], (ENT_DIM, ENT_DIM)), 'bv': jnp.zeros((1, ENT_DIM), jnp.float32),
            'wo': nrm(ks[7], (ENT_DIM, ENT_DIM)), 'bo': jnp.zeros((1, ENT_DIM), jnp.float32),
            'w1': nrm(ks[8], (ENT_DIM, FFN_DIM)), 'b1': jnp.zeros((1, FFN_DIM), jnp.float32),
            'w2': nrm(ks[9], (FFN_DIM, ENT_DIM)), 'b2': jnp.zeros((1, ENT_DIM), jnp.float32),
            'ln1_g': jnp.ones((1, ENT_DIM), jnp.float32), 'ln1_b': jnp.zeros((1, ENT_DIM), jnp.float32),
            'ln2_g': jnp.ones((1, ENT_DIM), jnp.float32), 'ln2_b': jnp.zeros((1, ENT_DIM), jnp.float32),
        },
        'policy': {
            'w_ih_rel': nrm(ks[10], (REL_DIM, 4 * STATE_DIM)),
            'w_ih_ent': nrm(ks[11], (ENT_DIM, 4 * STATE_DIM)),
            'w_hh': nrm(ks[12], (STATE_DIM, 4 * STATE_DIM)),
            'b_lstm': jnp.zeros((1, 4 * STATE_DIM), jnp.float32),
            'w_mlp_s': nrm(ks[13], (STATE_DIM, MLP_DIM)),
            'w_mlp_e': nrm(ks[14], (ENT_DIM, MLP_DIM)),
            'w_mlp_r': nrm(ks[15], (REL_DIM, MLP_DIM)),
            'b_mlp1': jnp.zeros((1, MLP_DIM), jnp.float32),
            'w_mlp2': nrm(ks[16], (MLP_DIM, ACT_EMB)),
            'b_mlp2': jnp.zeros((1, ACT_EMB), jnp.float32),
        },
    }


def init_env(key):
    k1, k2, k3, k4, k5, k6 = jax.random.split(key, 6)
    hist_ent = jax.random.randint(k1, (NUM_ENT + 1, MAX_CAND), 0, NUM_ENT)
    hist_ts = jax.random.randint(k2, (NUM_ENT + 1, MAX_CAND), 0, 16)
    pad_h = jax.random.bernoulli(k3, 0.25, (NUM_ENT + 1, MAX_CAND))
    hist_ent = jnp.where(pad_h, EPAD, hist_ent)
    history_table = jnp.stack([hist_ent, hist_ts], axis=-1).astype(jnp.int32)

    act_rel = jax.random.randint(k4, (NUM_ENT + 1, MAX_ACT), 0, NUM_REL)
    act_ent = jax.random.randint(k5, (NUM_ENT + 1, MAX_ACT), 0, NUM_ENT)
    act_ts = jax.random.randint(k6, (NUM_ENT + 1, MAX_ACT), 0, 16)
    pad_a = jax.random.bernoulli(jax.random.fold_in(key, 7), 0.2,
                                 (NUM_ENT + 1, MAX_ACT))
    pad_a = pad_a.at[:, 0].set(False)      # keep at least one valid action
    act_rel = jnp.where(pad_a, NUM_REL, act_rel)
    act_ent = jnp.where(pad_a, EPAD, act_ent)
    actions_table = jnp.stack([act_rel, act_ent, act_ts], axis=-1).astype(jnp.int32)
    return {'history_table': history_table, 'actions_table': actions_table}


# ----------------------------------- main ------------------------------------
if __name__ == "__main__":
    key = jax.random.PRNGKey(0)
    kp, ke, kq1, kq2, kq3 = jax.random.split(key, 5)

    params = init_params(kp)
    env = init_env(ke)
    packed = pack_inputs(params, env)   # one-time packing outside the hot path

    query_entities = jax.random.randint(kq1, (B_TOTAL,), 0, NUM_ENT, dtype=jnp.int32)
    query_timestamps = jax.random.randint(kq2, (B_TOTAL,), 5, 20, dtype=jnp.int32)
    query_relations = jax.random.randint(kq3, (B_TOTAL,), 0, NUM_REL, dtype=jnp.int32)

    outs = episode_forward(packed, query_entities, query_timestamps,
                           query_relations)
    jax.block_until_ready(outs)
    print("KERNEL_OK")
</pallas_src>

<mosaic_0001>
module attributes {stable_mosaic.version = 11 : i64} {
  func.func @episode_kernel(%arg0: i32, %arg1: memref<64x32xf32, #tpu.memory_space<vmem>>, %arg2: memref<64x64xf32, #tpu.memory_space<vmem>>, %arg3: memref<8x32xf32, #tpu.memory_space<vmem>>, %arg4: memref<8x128xf32, #tpu.memory_space<vmem>>, %arg5: memref<8x8xf32, #tpu.memory_space<vmem>>, %arg6: memref<4x32x128xf32, #tpu.memory_space<vmem>>, %arg7: memref<2x128x128xf32, #tpu.memory_space<vmem>>, %arg8: memref<96x128xf32, #tpu.memory_space<vmem>>, %arg9: memref<16x128xf32, #tpu.memory_space<vmem>>, %arg10: memref<96x64xf32, #tpu.memory_space<vmem>>, %arg11: memref<24x32xf32, #tpu.memory_space<vmem>>, %arg12: memref<16x128xf32, #tpu.memory_space<vmem>>) attributes {dimension_semantics = [#tpu.dimension_semantics<parallel>], iteration_bounds = array<i64: 2>, scalar_prefetch = 0 : i64, scratch_operands = 0 : i64, tpu.core_type = #tpu.core_type<tc>, window_params = [{transform_indices = @transform_0, window_bounds = array<i64: 64, 32>}, {transform_indices = @transform_1, window_bounds = array<i64: 64, 64>}, {transform_indices = @transform_2, window_bounds = array<i64: 8, 32>}, {transform_indices = @transform_3, window_bounds = array<i64: 8, 128>}, {transform_indices = @transform_4, window_bounds = array<i64: 8, 8>}, {pipeline_mode = #tpu.pipeline_mode<synchronous>, transform_indices = @transform_5, window_bounds = array<i64: 4, 32, 128>}, {pipeline_mode = #tpu.pipeline_mode<synchronous>, transform_indices = @transform_6, window_bounds = array<i64: 2, 128, 128>}, {pipeline_mode = #tpu.pipeline_mode<synchronous>, transform_indices = @transform_7, window_bounds = array<i64: 96, 128>}, {pipeline_mode = #tpu.pipeline_mode<synchronous>, transform_indices = @transform_8, window_bounds = array<i64: 16, 128>}, {pipeline_mode = #tpu.pipeline_mode<synchronous>, transform_indices = @transform_9, window_bounds = array<i64: 96, 64>}, {pipeline_mode = #tpu.pipeline_mode<synchronous>, transform_indices = @transform_10, window_bounds = array<i64: 24, 32>}, {transform_indices = @transform_11, window_bounds = array<i64: 16, 128>}]} {
    %c0 = arith.constant 0 : index
    %c0_0 = arith.constant 0 : index
    %0 = vector.load %arg9[%c0, %c0_0] : memref<16x128xf32, #tpu.memory_space<vmem>>, vector<16x128xf32>
    %1 = vector.extract_strided_slice %0 {offsets = [0, 0], sizes = [1, 128], strides = [1, 1]} : vector<16x128xf32> to vector<1x128xf32>
    %2 = vector.extract_strided_slice %0 {offsets = [1, 0], sizes = [1, 128], strides = [1, 1]} : vector<16x128xf32> to vector<1x128xf32>
    %3 = vector.extract_strided_slice %0 {offsets = [2, 0], sizes = [1, 128], strides = [1, 1]} : vector<16x128xf32> to vector<1x128xf32>
    %4 = vector.extract_strided_slice %0 {offsets = [3, 0], sizes = [1, 128], strides = [1, 1]} : vector<16x128xf32> to vector<1x128xf32>
    %5 = vector.extract_strided_slice %0 {offsets = [4, 0], sizes = [1, 32], strides = [1, 1]} : vector<16x128xf32> to vector<1x32xf32>
    %6 = vector.extract_strided_slice %0 {offsets = [5, 0], sizes = [1, 32], strides = [1, 1]} : vector<16x128xf32> to vector<1x32xf32>
    %7 = vector.extract_strided_slice %0 {offsets = [6, 0], sizes = [1, 32], strides = [1, 1]} : vector<16x128xf32> to vector<1x32xf32>
    %8 = vector.extract_strided_slice %0 {offsets = [7, 0], sizes = [1, 32], strides = [1, 1]} : vector<16x128xf32> to vector<1x32xf32>
    %9 = vector.extract_strided_slice %0 {offsets = [8, 0], sizes = [1, 128], strides = [1, 1]} : vector<16x128xf32> to vector<1x128xf32>
    %10 = vector.extract_strided_slice %0 {offsets = [9, 0], sizes = [1, 128], strides = [1, 1]} : vector<16x128xf32> to vector<1x128xf32>
    %11 = vector.extract_strided_slice %0 {offsets = [10, 0], sizes = [1, 32], strides = [1, 1]} : vector<16x128xf32> to vector<1x32xf32>
    %c0_1 = arith.constant 0 : index
    %c0_2 = arith.constant 0 : index
    %12 = vector.load %arg1[%c0_1, %c0_2] : memref<64x32xf32, #tpu.memory_space<vmem>>, vector<64x32xf32>
    %c0_3 = arith.constant 0 : index
    %c0_4 = arith.constant 0 : index
    %c0_5 = arith.constant 0 : index
    %13 = vector.load %arg6[%c0_3, %c0_4, %c0_5] : memref<4x32x128xf32, #tpu.memory_space<vmem>>, vector<1x32x128xf32>
    %14 = vector.shape_cast %13 : vector<1x32x128xf32> to vector<32x128xf32>
    %cst = arith.constant dense<0.000000e+00> : vector<64x128xf32>
    %15 = tpu.matmul %12, %14, %cst {dimension_numbers = #tpu.dot_dimension_numbers<[1], [0], [0], [1], [0, 0, 1, 1], [], []>} : vector<64x32xf32>, vector<32x128xf32>, vector<64x128xf32> -> vector<64x128xf32>
    %16 = vector.broadcast %1 : vector<1x128xf32> to vector<64x128xf32>
    %17 = arith.addf %15, %16 : vector<64x128xf32>
    %18 = vector.extract_strided_slice %17 {offsets = [0, 0], sizes = [64, 32], strides = [1, 1]} : vector<64x128xf32> to vector<64x32xf32>
    %19 = vector.extract_strided_slice %17 {offsets = [0, 32], sizes = [64, 32], strides = [1, 1]} : vector<64x128xf32> to vector<64x32xf32>
    %20 = vector.extract_strided_slice %17 {offsets = [0, 64], sizes = [64, 32], strides = [1, 1]} : vector<64x128xf32> to vector<64x32xf32>
    %cst_6 = arith.constant dense<0.000000e+00> : vector<64x64xf32>
    %21 = tpu.matmul %18, %19, %cst_6 {dimension_numbers = #tpu.dot_dimension_numbers<[1], [1], [0], [0], [0, 0, 1, 0], [], []>} : vector<64x32xf32>, vector<64x32xf32>, vector<64x64xf32> -> vector<64x64xf32>
    %c0_7 = arith.constant 0 : index
    %c0_8 = arith.constant 0 : index
    %22 = vector.load %arg2[%c0_7, %c0_8] : memref<64x64xf32, #tpu.memory_space<vmem>>, vector<64x64xf32>
    %23 = arith.addf %21, %22 : vector<64x64xf32>
    %cst_9 = arith.constant dense<0xFF800000> : vector<64xf32>
    %24 = vector.multi_reduction <maximumf>, %23, %cst_9 [1] : vector<64x64xf32> to vector<64xf32>
    %25 = vector.shape_cast %24 : vector<64xf32> to vector<64x1xf32>
    %26 = vector.broadcast %25 : vector<64x1xf32> to vector<64x64xf32>
    %27 = arith.subf %23, %26 : vector<64x64xf32>
    %28 = math.exp %27 : vector<64x64xf32>
    %cst_10 = arith.constant dense<0.000000e+00> : vector<64xf32>
    %29 = vector.multi_reduction <add>, %28, %cst_10 [1] : vector<64x64xf32> to vector<64xf32>
    %30 = vector.shape_cast %29 : vector<64xf32> to vector<64x1xf32>
    %31 = tpu.reciprocal %30 {approx = true} : vector<64x1xf32> -> vector<64x1xf32>
    %32 = vector.broadcast %31 : vector<64x1xf32> to vector<64x64xf32>
    %33 = arith.mulf %28, %32 : vector<64x64xf32>
    %cst_11 = arith.constant dense<0.000000e+00> : vector<64x32xf32>
    %34 = tpu.matmul %33, %20, %cst_11 {dimension_numbers = #tpu.dot_dimension_numbers<[1], [0], [0], [1], [0, 0, 1, 1], [], []>} : vector<64x64xf32>, vector<64x32xf32>, vector<64x32xf32> -> vector<64x32xf32>
    %c1 = arith.constant 1 : index
    %c0_12 = arith.constant 0 : index
    %c0_13 = arith.constant 0 : index
    %35 = vector.load %arg6[%c1, %c0_12, %c0_13] : memref<4x32x128xf32, #tpu.memory_space<vmem>>, vector<1x32x128xf32>
    %36 = vector.shape_cast %35 : vector<1x32x128xf32> to vector<32x128xf32>
    %cst_14 = arith.constant dense<0.000000e+00> : vector<64x128xf32>
    %37 = tpu.matmul %34, %36, %cst_14 {dimension_numbers = #tpu.dot_dimension_numbers<[1], [0], [0], [1], [0, 0, 1, 1], [], []>} : vector<64x32xf32>, vector<32x128xf32>, vector<64x128xf32> -> vector<64x128xf32>
    %38 = vector.broadcast %2 : vector<1x128xf32> to vector<64x128xf32>
    %39 = arith.addf %37, %38 : vector<64x128xf32>
    %40 = vector.extract_strided_slice %39 {offsets = [0, 0], sizes = [64, 32], strides = [1, 1]} : vector<64x128xf32> to vector<64x32xf32>
    %41 = arith.addf %12, %40 : vector<64x32xf32>
    %cst_15 = arith.constant dense<0.000000e+00> : vector<64xf32>
    %42 = vector.multi_reduction <add>, %41, %cst_15 [1] : vector<64x32xf32> to vector<64xf32>
    %43 = vector.shape_cast %42 : vector<64xf32> to vector<64x1xf32>
    %cst_16 = arith.constant 3.200000e+01 : f32
    %44 = vector.broadcast %cst_16 : f32 to vector<64x1xf32>
    %45 = arith.divf %43, %44 : vector<64x1xf32>
    %46 = vector.broadcast %45 : vector<64x1xf32> to vector<64x32xf32>
    %47 = arith.subf %41, %46 : vector<64x32xf32>
    %48 = arith.mulf %47, %47 : vector<64x32xf32>
    %cst_17 = arith.constant dense<0.000000e+00> : vector<64xf32>
    %49 = vector.multi_reduction <add>, %48, %cst_17 [1] : vector<64x32xf32> to vector<64xf32>
    %50 = vector.shape_cast %49 : vector<64xf32> to vector<64x1xf32>
    %cst_18 = arith.constant 3.200000e+01 : f32
    %51 = vector.broadcast %cst_18 : f32 to vector<64x1xf32>
    %52 = arith.divf %50, %51 : vector<64x1xf32>
    %53 = vector.broadcast %45 : vector<64x1xf32> to vector<64x32xf32>
    %54 = arith.subf %41, %53 : vector<64x32xf32>
    %cst_19 = arith.constant 9.99999974E-6 : f32
    %55 = vector.broadcast %cst_19 : f32 to vector<64x1xf32>
    %56 = arith.addf %52, %55 : vector<64x1xf32>
    %57 = math.rsqrt %56 : vector<64x1xf32>
    %58 = vector.broadcast %57 : vector<64x1xf32> to vector<64x32xf32>
    %59 = arith.mulf %54, %58 : vector<64x32xf32>
    %60 = vector.broadcast %5 : vector<1x32xf32> to vector<64x32xf32>
    %61 = arith.mulf %59, %60 : vector<64x32xf32>
    %62 = vector.broadcast %6 : vector<1x32xf32> to vector<64x32xf32>
    %63 = arith.addf %61, %62 : vector<64x32xf32>
    %c2 = arith.constant 2 : index
    %c0_20 = arith.constant 0 : index
    %c0_21 = arith.constant 0 : index
    %64 = vector.load %arg6[%c2, %c0_20, %c0_21] : memref<4x32x128xf32, #tpu.memory_space<vmem>>, vector<1x32x128xf32>
    %65 = vector.shape_cast %64 : vector<1x32x128xf32> to vector<32x128xf32>
    %cst_22 = arith.constant dense<0.000000e+00> : vector<64x128xf32>
    %66 = tpu.matmul %63, %65, %cst_22 {dimension_numbers = #tpu.dot_dimension_numbers<[1], [0], [0], [1], [0, 0, 1, 1], [], []>} : vector<64x32xf32>, vector<32x128xf32>, vector<64x128xf32> -> vector<64x128xf32>
    %67 = vector.broadcast %3 : vector<1x128xf32> to vector<64x128xf32>
    %68 = arith.addf %66, %67 : vector<64x128xf32>
    %cst_23 = arith.constant 0.000000e+00 : f32
    %69 = vector.broadcast %cst_23 : f32 to vector<64x128xf32>
    %70 = arith.maximumf %68, %69 : vector<64x128xf32>
    %c0_24 = arith.constant 0 : index
    %c0_25 = arith.constant 0 : index
    %c0_26 = arith.constant 0 : index
    %71 = vector.load %arg7[%c0_24, %c0_25, %c0_26] : memref<2x128x128xf32, #tpu.memory_space<vmem>>, vector<1x128x128xf32>
    %72 = vector.shape_cast %71 : vector<1x128x128xf32> to vector<128x128xf32>
    %cst_27 = arith.constant dense<0.000000e+00> : vector<64x128xf32>
    %73 = tpu.matmul %70, %72, %cst_27 {dimension_numbers = #tpu.dot_dimension_numbers<[1], [0], [0], [1], [0, 0, 1, 1], [], []>} : vector<64x128xf32>, vector<128x128xf32>, vector<64x128xf32> -> vector<64x128xf32>
    %74 = vector.broadcast %4 : vector<1x128xf32> to vector<64x128xf32>
    %75 = arith.addf %73, %74 : vector<64x128xf32>
    %76 = vector.extract_strided_slice %75 {offsets = [0, 0], sizes = [64, 32], strides = [1, 1]} : vector<64x128xf32> to vector<64x32xf32>
    %77 = arith.addf %63, %76 : vector<64x32xf32>
    %cst_28 = arith.constant dense<0.000000e+00> : vector<64xf32>
    %78 = vector.multi_reduction <add>, %77, %cst_28 [1] : vector<64x32xf32> to vector<64xf32>
    %79 = vector.shape_cast %78 : vector<64xf32> to vector<64x1xf32>
    %cst_29 = arith.constant 3.200000e+01 : f32
    %80 = vector.broadcast %cst_29 : f32 to vector<64x1xf32>
    %81 = arith.divf %79, %80 : vector<64x1xf32>
    %82 = vector.broadcast %81 : vector<64x1xf32> to vector<64x32xf32>
    %83 = arith.subf %77, %82 : vector<64x32xf32>
    %84 = arith.mulf %83, %83 : vector<64x32xf32>
    %cst_30 = arith.constant dense<0.000000e+00> : vector<64xf32>
    %85 = vector.multi_reduction <add>, %84, %cst_30 [1] : vector<64x32xf32> to vector<64xf32>
    %86 = vector.shape_cast %85 : vector<64xf32> to vector<64x1xf32>
    %cst_31 = arith.constant 3.200000e+01 : f32
    %87 = vector.broadcast %cst_31 : f32 to vector<64x1xf32>
    %88 = arith.divf %86, %87 : vector<64x1xf32>
    %89 = vector.broadcast %81 : vector<64x1xf32> to vector<64x32xf32>
    %90 = arith.subf %77, %89 : vector<64x32xf32>
    %cst_32 = arith.constant 9.99999974E-6 : f32
    %91 = vector.broadcast %cst_32 : f32 to vector<64x1xf32>
    %92 = arith.addf %88, %91 : vector<64x1xf32>
    %93 = math.rsqrt %92 : vector<64x1xf32>
    %94 = vector.broadcast %93 : vector<64x1xf32> to vector<64x32xf32>
    %95 = arith.mulf %90, %94 : vector<64x32xf32>
    %96 = vector.broadcast %7 : vector<1x32xf32> to vector<64x32xf32>
    %97 = arith.mulf %95, %96 : vector<64x32xf32>
    %98 = vector.broadcast %8 : vector<1x32xf32> to vector<64x32xf32>
    %99 = arith.addf %97, %98 : vector<64x32xf32>
    %100 = vector.shape_cast %99 : vector<64x32xf32> to vector<8x8x32xf32>
    %cst_33 = arith.constant dense<0.000000e+00> : vector<8x32xf32>
    %101 = vector.multi_reduction <add>, %100, %cst_33 [1] : vector<8x8x32xf32> to vector<8x32xf32>
    %cst_34 = arith.constant 8.000000e+00 : f32
    %102 = vector.broadcast %cst_34 : f32 to vector<8x32xf32>
    %103 = arith.divf %101, %102 : vector<8x32xf32>
    %cst_35 = arith.constant 0.000000e+00 : f32
    %104 = vector.broadcast %cst_35 : f32 to vector<8x32xf32>
    %105 = tpu.concatenate %103, %104 in 1 : vector<8x32xf32>, vector<8x32xf32> -> vector<8x64xf32>
    %c0_36 = arith.constant 0 : index
    %c0_37 = arith.constant 0 : index
    %106 = vector.load %arg5[%c0_36, %c0_37] : memref<8x8xf32, #tpu.memory_space<vmem>>, vector<8x1xf32>
    %c0_38 = arith.constant 0 : index
    %c1_39 = arith.constant 1 : index
    %107 = vector.load %arg5[%c0_38, %c1_39] : memref<8x8xf32, #tpu.memory_space<vmem>>, vector<8x1xf32>
    %c0_40 = arith.constant 0 : index
    %c2_41 = arith.constant 2 : index
    %108 = vector.load %arg5[%c0_40, %c2_41] : memref<8x8xf32, #tpu.memory_space<vmem>>, vector<8x1xf32>
    %cst_42 = arith.constant 0.000000e+00 : f32
    %109 = vector.broadcast %cst_42 : f32 to vector<8x32xf32>
    %cst_43 = arith.constant 0.000000e+00 : f32
    %110 = vector.broadcast %cst_43 : f32 to vector<8x32xf32>
    %c0_44 = arith.constant 0 : index
    %c0_45 = arith.constant 0 : index
    %111 = vector.load %arg3[%c0_44, %c0_45] : memref<8x32xf32, #tpu.memory_space<vmem>>, vector<8x32xf32>
    %112 = vector.shape_cast %11 : vector<1x32xf32> to vector<1x32xf32>
    %113 = vector.broadcast %112 : vector<1x32xf32> to vector<8x32xf32>
    %114 = tpu.concatenate %111, %113 in 1 : vector<8x32xf32>, vector<8x32xf32> -> vector<8x64xf32>
    %c0_46 = arith.constant 0 : index
    %c0_47 = arith.constant 0 : index
    %115 = vector.load %arg4[%c0_46, %c0_47] : memref<8x128xf32, #tpu.memory_space<vmem>>, vector<8x128xf32>
    %116 = tpu.iota {dimensions = array<i32: 1>} : vector<8x8xi32>
    %117 = arith.sitofp %116 : vector<8x8xi32> to vector<8x8xf32>
    %118 = tpu.iota {dimensions = array<i32: 1>} : vector<8x24xi32>
    %119 = arith.sitofp %118 : vector<8x24xi32> to vector<8x24xf32>
    %120 = tpu.iota {dimensions = array<i32: 2>} : vector<8x8x96xi32>
    %121 = arith.sitofp %120 : vector<8x8x96xi32> to vector<8x8x96xf32>
    %122 = vector.extract_strided_slice %117 {offsets = [0, 0], sizes = [1, 8], strides = [1, 1]} : vector<8x8xf32> to vector<1x8xf32>
    %cst_48 = arith.constant 0.000000e+00 : f32
    %123 = vector.broadcast %cst_48 : f32 to vector<1x8xf32>
    %124 = arith.cmpf oeq, %122, %123 : vector<1x8xf32>
    %125 = arith.extui %124 : vector<1x8xi1> to vector<1x8xi32>
    %126 = arith.sitofp %125 : vector<1x8xi32> to vector<1x8xf32>
    %127 = vector.extract_strided_slice %117 {offsets = [0, 0], sizes = [1, 8], strides = [1, 1]} : vector<8x8xf32> to vector<1x8xf32>
    %cst_49 = arith.constant 1.000000e+00 : f32
    %128 = vector.broadcast %cst_49 : f32 to vector<1x8xf32>
    %129 = arith.cmpf oeq, %127, %128 : vector<1x8xf32>
    %130 = arith.extui %129 : vector<1x8xi1> to vector<1x8xi32>
    %131 = arith.sitofp %130 : vector<1x8xi32> to vector<1x8xf32>
    %132 = vector.extract_strided_slice %117 {offsets = [0, 0], sizes = [1, 8], strides = [1, 1]} : vector<8x8xf32> to vector<1x8xf32>
    %cst_50 = arith.constant 2.000000e+00 : f32
    %133 = vector.broadcast %cst_50 : f32 to vector<1x8xf32>
    %134 = arith.cmpf oeq, %132, %133 : vector<1x8xf32>
    %135 = arith.extui %134 : vector<1x8xi1> to vector<1x8xi32>
    %136 = arith.sitofp %135 : vector<1x8xi32> to vector<1x8xf32>
    %137 = vector.extract_strided_slice %117 {offsets = [0, 0], sizes = [1, 8], strides = [1, 1]} : vector<8x8xf32> to vector<1x8xf32>
    %cst_51 = arith.constant 3.000000e+00 : f32
    %138 = vector.broadcast %cst_51 : f32 to vector<1x8xf32>
    %139 = arith.cmpf oeq, %137, %138 : vector<1x8xf32>
    %140 = arith.extui %139 : vector<1x8xi1> to vector<1x8xi32>
    %141 = arith.sitofp %140 : vector<1x8xi32> to vector<1x8xf32>
    %142 = vector.extract_strided_slice %117 {offsets = [0, 0], sizes = [1, 8], strides = [1, 1]} : vector<8x8xf32> to vector<1x8xf32>
    %cst_52 = arith.constant 4.000000e+00 : f32
    %143 = vector.broadcast %cst_52 : f32 to vector<1x8xf32>
    %144 = arith.cmpf oeq, %142, %143 : vector<1x8xf32>
    %145 = arith.extui %144 : vector<1x8xi1> to vector<1x8xi32>
    %146 = arith.sitofp %145 : vector<1x8xi32> to vector<1x8xf32>
    %147 = vector.extract_strided_slice %117 {offsets = [0, 0], sizes = [1, 8], strides = [1, 1]} : vector<8x8xf32> to vector<1x8xf32>
    %cst_53 = arith.constant 5.000000e+00 : f32
    %148 = vector.broadcast %cst_53 : f32 to vector<1x8xf32>
    %149 = arith.cmpf oeq, %147, %148 : vector<1x8xf32>
    %150 = arith.extui %149 : vector<1x8xi1> to vector<1x8xi32>
    %151 = arith.sitofp %150 : vector<1x8xi32> to vector<1x8xf32>
    %152 = tpu.concatenate %114, %109 in 1 : vector<8x64xf32>, vector<8x32xf32> -> vector<8x96xf32>
    %c0_54 = arith.constant 0 : index
    %c0_55 = arith.constant 0 : index
    %153 = vector.load %arg8[%c0_54, %c0_55] : memref<96x128xf32, #tpu.memory_space<vmem>>, vector<96x128xf32>
    %cst_56 = arith.constant dense<0.000000e+00> : vector<8x128xf32>
    %154 = tpu.matmul %152, %153, %cst_56 {dimension_numbers = #tpu.dot_dimension_numbers<[1], [0], [0], [1], [0, 0, 1, 1], [], []>} : vector<8x96xf32>, vector<96x128xf32>, vector<8x128xf32> -> vector<8x128xf32>
    %155 = vector.broadcast %9 : vector<1x128xf32> to vector<8x128xf32>
    %156 = arith.addf %154, %155 : vector<8x128xf32>
    %157 = vector.extract_strided_slice %156 {offsets = [0, 0], sizes = [8, 32], strides = [1, 1]} : vector<8x128xf32> to vector<8x32xf32>
    %158 = arith.negf %157 : vector<8x32xf32>
    %159 = math.exp %158 : vector<8x32xf32>
    %cst_57 = arith.constant 1.000000e+00 : f32
    %160 = vector.broadcast %cst_57 : f32 to vector<8x32xf32>
    %161 = arith.addf %160, %159 : vector<8x32xf32>
    %162 = arith.divf %160, %161 : vector<8x32xf32>
    %163 = vector.extract_strided_slice %156 {offsets = [0, 32], sizes = [8, 32], strides = [1, 1]} : vector<8x128xf32> to vector<8x32xf32>
    %164 = arith.negf %163 : vector<8x32xf32>
    %165 = math.exp %164 : vector<8x32xf32>
    %cst_58 = arith.constant 1.000000e+00 : f32
    %166 = vector.broadcast %cst_58 : f32 to vector<8x32xf32>
    %167 = arith.addf %166, %165 : vector<8x32xf32>
    %168 = arith.divf %166, %167 : vector<8x32xf32>
    %169 = vector.extract_strided_slice %156 {offsets = [0, 64], sizes = [8, 32], strides = [1, 1]} : vector<8x128xf32> to vector<8x32xf32>
    %170 = math.tanh %169 : vector<8x32xf32>
    %171 = vector.extract_strided_slice %156 {offsets = [0, 96], sizes = [8, 32], strides = [1, 1]} : vector<8x128xf32> to vector<8x32xf32>
    %172 = arith.negf %171 : vector<8x32xf32>
    %173 = math.exp %172 : vector<8x32xf32>
    %cst_59 = arith.constant 1.000000e+00 : f32
    %174 = vector.broadcast %cst_59 : f32 to vector<8x32xf32>
    %175 = arith.addf %174, %173 : vector<8x32xf32>
    %176 = arith.divf %174, %175 : vector<8x32xf32>
    %177 = arith.mulf %168, %110 : vector<8x32xf32>
    %178 = arith.mulf %162, %170 : vector<8x32xf32>
    %179 = arith.addf %177, %178 : vector<8x32xf32>
    %180 = math.tanh %179 : vector<8x32xf32>
    %181 = arith.mulf %176, %180 : vector<8x32xf32>
    %c3 = arith.constant 3 : index
    %c0_60 = arith.constant 0 : index
    %c0_61 = arith.constant 0 : index
    %182 = vector.load %arg6[%c3, %c0_60, %c0_61] : memref<4x32x128xf32, #tpu.memory_space<vmem>>, vector<1x32x128xf32>
    %183 = vector.shape_cast %182 : vector<1x32x128xf32> to vector<32x128xf32>
    %cst_62 = arith.constant dense<0.000000e+00> : vector<8x128xf32>
    %184 = tpu.matmul %181, %183, %cst_62 {dimension_numbers = #tpu.dot_dimension_numbers<[1], [0], [0], [1], [0, 0, 1, 1], [], []>} : vector<8x32xf32>, vector<32x128xf32>, vector<8x128xf32> -> vector<8x128xf32>
    %185 = arith.addf %184, %115 : vector<8x128xf32>
    %cst_63 = arith.constant 0.000000e+00 : f32
    %186 = vector.broadcast %cst_63 : f32 to vector<8x128xf32>
    %187 = arith.maximumf %185, %186 : vector<8x128xf32>
    %c1_64 = arith.constant 1 : index
    %c0_65 = arith.constant 0 : index
    %c0_66 = arith.constant 0 : index
    %188 = vector.load %arg7[%c1_64, %c0_65, %c0_66] : memref<2x128x128xf32, #tpu.memory_space<vmem>>, vector<1x128x128xf32>
    %189 = vector.shape_cast %188 : vector<1x128x128xf32> to vector<128x128xf32>
    %cst_67 = arith.constant dense<0.000000e+00> : vector<8x128xf32>
    %190 = tpu.matmul %187, %189, %cst_67 {dimension_numbers = #tpu.dot_dimension_numbers<[1], [0], [0], [1], [0, 0, 1, 1], [], []>} : vector<8x128xf32>, vector<128x128xf32>, vector<8x128xf32> -> vector<8x128xf32>
    %191 = vector.broadcast %10 : vector<1x128xf32> to vector<8x128xf32>
    %192 = arith.addf %190, %191 : vector<8x128xf32>
    %193 = vector.extract_strided_slice %192 {offsets = [0, 0], sizes = [8, 64], strides = [1, 1]} : vector<8x128xf32> to vector<8x64xf32>
    %194 = vector.broadcast %108 : vector<8x1xf32> to vector<8x24xf32>
    %195 = arith.cmpf oeq, %194, %119 : vector<8x24xf32>
    %196 = arith.extui %195 : vector<8x24xi1> to vector<8x24xi32>
    %197 = arith.sitofp %196 : vector<8x24xi32> to vector<8x24xf32>
    %c0_68 = arith.constant 0 : index
    %c0_69 = arith.constant 0 : index
    %198 = vector.load %arg11[%c0_68, %c0_69] : memref<24x32xf32, #tpu.memory_space<vmem>>, vector<24x32xf32>
    %cst_70 = arith.constant dense<0.000000e+00> : vector<8x32xf32>
    %199 = tpu.matmul %197, %198, %cst_70 {dimension_numbers = #tpu.dot_dimension_numbers<[1], [0], [0], [1], [0, 0, 1, 1], [], []>} : vector<8x24xf32>, vector<24x32xf32>, vector<8x32xf32> -> vector<8x32xf32>
    %200 = vector.extract_strided_slice %199 {offsets = [0, 0], sizes = [8, 8], strides = [1, 1]} : vector<8x32xf32> to vector<8x8xf32>
    %201 = vector.extract_strided_slice %199 {offsets = [0, 8], sizes = [8, 8], strides = [1, 1]} : vector<8x32xf32> to vector<8x8xf32>
    %202 = vector.extract_strided_slice %199 {offsets = [0, 16], sizes = [8, 8], strides = [1, 1]} : vector<8x32xf32> to vector<8x8xf32>
    %203 = vector.broadcast %106 : vector<8x1xf32> to vector<8x8xf32>
    %204 = arith.subf %203, %202 : vector<8x8xf32>
    %cst_71 = arith.constant 1.600000e+01 : f32
    %205 = vector.broadcast %cst_71 : f32 to vector<8x8xf32>
    %206 = arith.cmpf oeq, %201, %205 : vector<8x8xf32>
    %207 = arith.extui %206 : vector<8x8xi1> to vector<8x8xi32>
    %208 = arith.sitofp %207 : vector<8x8xi32> to vector<8x8xf32>
    %cst_72 = arith.constant -3.200000e+01 : f32
    %209 = vector.broadcast %cst_72 : f32 to vector<8x8xf32>
    %210 = arith.subf %204, %209 : vector<8x8xf32>
    %cst_73 = arith.constant 0.000000e+00 : f32
    %cst_74 = arith.constant 6.300000e+01 : f32
    %211 = vector.broadcast %cst_73 : f32 to vector<8x8xf32>
    %212 = arith.maximumf %211, %210 : vector<8x8xf32>
    %213 = vector.broadcast %cst_74 : f32 to vector<8x8xf32>
    %214 = arith.minimumf %213, %212 : vector<8x8xf32>
    %cst_75 = arith.constant 2.400000e+01 : f32
    %215 = vector.broadcast %cst_75 : f32 to vector<8x8xf32>
    %216 = arith.addf %215, %214 : vector<8x8xf32>
    %cst_76 = arith.constant 8.800000e+01 : f32
    %217 = vector.broadcast %cst_76 : f32 to vector<8x8xf32>
    %218 = arith.addf %217, %200 : vector<8x8xf32>
    %219 = vector.shape_cast %201 : vector<8x8xf32> to vector<8x8x1xf32>
    %220 = vector.broadcast %219 : vector<8x8x1xf32> to vector<8x8x96xf32>
    %221 = arith.cmpf oeq, %121, %220 : vector<8x8x96xf32>
    %222 = arith.extui %221 : vector<8x8x96xi1> to vector<8x8x96xi32>
    %223 = arith.sitofp %222 : vector<8x8x96xi32> to vector<8x8x96xf32>
    %224 = vector.shape_cast %216 : vector<8x8xf32> to vector<8x8x1xf32>
    %225 = vector.broadcast %224 : vector<8x8x1xf32> to vector<8x8x96xf32>
    %226 = arith.cmpf oeq, %121, %225 : vector<8x8x96xf32>
    %227 = arith.extui %226 : vector<8x8x96xi1> to vector<8x8x96xi32>
    %228 = arith.sitofp %227 : vector<8x8x96xi32> to vector<8x8x96xf32>
    %229 = arith.addf %223, %228 : vector<8x8x96xf32>
    %230 = vector.shape_cast %218 : vector<8x8xf32> to vector<8x8x1xf32>
    %231 = vector.broadcast %230 : vector<8x8x1xf32> to vector<8x8x96xf32>
    %232 = arith.cmpf oeq, %121, %231 : vector<8x8x96xf32>
    %233 = arith.extui %232 : vector<8x8x96xi1> to vector<8x8x96xi32>
    %234 = arith.sitofp %233 : vector<8x8x96xi32> to vector<8x8x96xf32>
    %235 = arith.addf %229, %234 : vector<8x8x96xf32>
    %236 = vector.shape_cast %235 : vector<8x8x96xf32> to vector<64x96xf32>
    %c0_77 = arith.constant 0 : index
    %c0_78 = arith.constant 0 : index
    %237 = vector.load %arg10[%c0_77, %c0_78] : memref<96x64xf32, #tpu.memory_space<vmem>>, vector<96x64xf32>
    %cst_79 = arith.constant dense<0.000000e+00> : vector<64x64xf32>
    %238 = tpu.matmul %236, %237, %cst_79 {dimension_numbers = #tpu.dot_dimension_numbers<[1], [0], [0], [1], [0, 0, 1, 1], [], []>} : vector<64x96xf32>, vector<96x64xf32>, vector<64x64xf32> -> vector<64x64xf32>
    %239 = vector.shape_cast %238 : vector<64x64xf32> to vector<8x8x64xf32>
    %240 = vector.shape_cast %193 : vector<8x64xf32> to vector<8x1x64xf32>
    %241 = vector.broadcast %240 : vector<8x1x64xf32> to vector<8x8x64xf32>
    %242 = arith.mulf %239, %241 : vector<8x8x64xf32>
    %cst_80 = arith.constant dense<0.000000e+00> : vector<8x8xf32>
    %243 = vector.multi_reduction <add>, %242, %cst_80 [2] : vector<8x8x64xf32> to vector<8x8xf32>
    %cst_81 = arith.constant -1.000000e+09 : f32
    %244 = vector.broadcast %cst_81 : f32 to vector<8x8xf32>
    %245 = arith.mulf %208, %244 : vector<8x8xf32>
    %246 = arith.addf %243, %245 : vector<8x8xf32>
    %cst_82 = arith.constant dense<0xFF800000> : vector<8xf32>
    %247 = vector.multi_reduction <maximumf>, %246, %cst_82 [1] : vector<8x8xf32> to vector<8xf32>
    %248 = vector.shape_cast %247 : vector<8xf32> to vector<8x1xf32>
    %249 = vector.broadcast %248 : vector<8x1xf32> to vector<8x8xf32>
    %250 = arith.subf %246, %249 : vector<8x8xf32>
    %251 = math.exp %250 : vector<8x8xf32>
    %cst_83 = arith.constant dense<0.000000e+00> : vector<8xf32>
    %252 = vector.multi_reduction <add>, %251, %cst_83 [1] : vector<8x8xf32> to vector<8xf32>
    %253 = vector.shape_cast %252 : vector<8xf32> to vector<8x1xf32>
    %254 = math.log %253 : vector<8x1xf32>
    %255 = vector.broadcast %254 : vector<8x1xf32> to vector<8x8xf32>
    %256 = arith.subf %250, %255 : vector<8x8xf32>
    %257 = vector.shape_cast %105 : vector<8x64xf32> to vector<8x1x64xf32>
    %258 = vector.broadcast %257 : vector<8x1x64xf32> to vector<8x8x64xf32>
    %259 = arith.mulf %239, %258 : vector<8x8x64xf32>
    %cst_84 = arith.constant dense<0.000000e+00> : vector<8x8xf32>
    %260 = vector.multi_reduction <add>, %259, %cst_84 [2] : vector<8x8x64xf32> to vector<8x8xf32>
    %261 = arith.negf %260 : vector<8x8xf32>
    %262 = math.exp %261 : vector<8x8xf32>
    %cst_85 = arith.constant 1.000000e+00 : f32
    %263 = vector.broadcast %cst_85 : f32 to vector<8x8xf32>
    %264 = arith.addf %263, %262 : vector<8x8xf32>
    %265 = arith.divf %263, %264 : vector<8x8xf32>
    %cst_86 = arith.constant 1.000000e+00 : f32
    %266 = vector.broadcast %cst_86 : f32 to vector<8x1xf32>
    %267 = arith.subf %266, %107 : vector<8x1xf32>
    %268 = vector.broadcast %267 : vector<8x1xf32> to vector<8x8xf32>
    %269 = arith.mulf %265, %268 : vector<8x8xf32>
    %cst_87 = arith.constant dense<0xFF800000> : vector<8xf32>
    %270 = vector.multi_reduction <maximumf>, %256, %cst_87 [1] : vector<8x8xf32> to vector<8xf32>
    %271 = vector.shape_cast %270 : vector<8xf32> to vector<8x1xf32>
    %272 = vector.broadcast %271 : vector<8x1xf32> to vector<8x8xf32>
    %273 = arith.cmpf oeq, %256, %272 : vector<8x8xf32>
    %cst_88 = arith.constant 8.000000e+00 : f32
    %274 = vector.broadcast %cst_88 : f32 to vector<8x8xf32>
    %275 = arith.select %273, %117, %274 : vector<8x8xi1>, vector<8x8xf32>
    %cst_89 = arith.constant dense<0x7F800000> : vector<8xf32>
    %276 = vector.multi_reduction <minimumf>, %275, %cst_89 [1] : vector<8x8xf32> to vector<8xf32>
    %277 = vector.shape_cast %276 : vector<8xf32> to vector<8x1xf32>
    %278 = vector.broadcast %277 : vector<8x1xf32> to vector<8x8xf32>
    %279 = arith.cmpf oeq, %117, %278 : vector<8x8xf32>
    %280 = arith.extui %279 : vector<8x8xi1> to vector<8x8xi32>
    %281 = arith.sitofp %280 : vector<8x8xi32> to vector<8x8xf32>
    %282 = arith.mulf %256, %281 : vector<8x8xf32>
    %cst_90 = arith.constant dense<0.000000e+00> : vector<8xf32>
    %283 = vector.multi_reduction <add>, %282, %cst_90 [1] : vector<8x8xf32> to vector<8xf32>
    %284 = vector.shape_cast %283 : vector<8xf32> to vector<8x1xf32>
    %cst_91 = arith.constant 0.000000e+00 : f32
    %285 = vector.broadcast %cst_91 : f32 to vector<8x1xf32>
    %286 = arith.subf %285, %284 : vector<8x1xf32>
    %287 = arith.mulf %269, %281 : vector<8x8xf32>
    %cst_92 = arith.constant dense<0.000000e+00> : vector<8xf32>
    %288 = vector.multi_reduction <add>, %287, %cst_92 [1] : vector<8x8xf32> to vector<8xf32>
    %289 = vector.shape_cast %288 : vector<8xf32> to vector<8x1xf32>
    %290 = arith.mulf %200, %281 : vector<8x8xf32>
    %cst_93 = arith.constant dense<0.000000e+00> : vector<8xf32>
    %291 = vector.multi_reduction <add>, %290, %cst_93 [1] : vector<8x8xf32> to vector<8xf32>
    %292 = vector.shape_cast %291 : vector<8xf32> to vector<8x1xf32>
    %293 = arith.mulf %201, %281 : vector<8x8xf32>
    %cst_94 = arith.constant dense<0.000000e+00> : vector<8xf32>
    %294 = vector.multi_reduction <add>, %293, %cst_94 [1] : vector<8x8xf32> to vector<8xf32>
    %295 = vector.shape_cast %294 : vector<8xf32> to vector<8x1xf32>
    %296 = arith.mulf %202, %281 : vector<8x8xf32>
    %cst_95 = arith.constant dense<0.000000e+00> : vector<8xf32>
    %297 = vector.multi_reduction <add>, %296, %cst_95 [1] : vector<8x8xf32> to vector<8xf32>
    %298 = vector.shape_cast %297 : vector<8xf32> to vector<8x1xf32>
    %299 = vector.broadcast %286 : vector<8x1xf32> to vector<8x8xf32>
    %300 = vector.broadcast %126 : vector<1x8xf32> to vector<8x8xf32>
    %301 = arith.mulf %299, %300 : vector<8x8xf32>
    %302 = vector.broadcast %277 : vector<8x1xf32> to vector<8x8xf32>
    %303 = vector.broadcast %131 : vector<1x8xf32> to vector<8x8xf32>
    %304 = arith.mulf %302, %303 : vector<8x8xf32>
    %305 = arith.addf %301, %304 : vector<8x8xf32>
    %306 = vector.broadcast %289 : vector<8x1xf32> to vector<8x8xf32>
    %307 = vector.broadcast %136 : vector<1x8xf32> to vector<8x8xf32>
    %308 = arith.mulf %306, %307 : vector<8x8xf32>
    %309 = arith.addf %305, %308 : vector<8x8xf32>
    %310 = vector.broadcast %295 : vector<8x1xf32> to vector<8x8xf32>
    %311 = vector.broadcast %141 : vector<1x8xf32> to vector<8x8xf32>
    %312 = arith.mulf %310, %311 : vector<8x8xf32>
    %313 = arith.addf %309, %312 : vector<8x8xf32>
    %314 = vector.broadcast %298 : vector<8x1xf32> to vector<8x8xf32>
    %315 = vector.broadcast %146 : vector<1x8xf32> to vector<8x8xf32>
    %316 = arith.mulf %314, %315 : vector<8x8xf32>
    %317 = arith.addf %313, %316 : vector<8x8xf32>
    %318 = vector.broadcast %292 : vector<8x1xf32> to vector<8x8xf32>
    %319 = vector.broadcast %151 : vector<1x8xf32> to vector<8x8xf32>
    %320 = arith.mulf %318, %319 : vector<8x8xf32>
    %321 = arith.addf %317, %320 : vector<8x8xf32>
    %cst_96 = arith.constant 0.000000e+00 : f32
    %322 = vector.broadcast %cst_96 : f32 to vector<8x112xf32>
    %323 = tpu.concatenate %256, %321, %322 in 1 : vector<8x8xf32>, vector<8x8xf32>, vector<8x112xf32> -> vector<8x128xf32>
    %324 = vector.shape_cast %281 : vector<8x8xf32> to vector<8x8x1xf32>
    %325 = vector.broadcast %324 : vector<8x8x1xf32> to vector<8x8x64xf32>
    %326 = arith.mulf %239, %325 : vector<8x8x64xf32>
    %cst_97 = arith.constant dense<0.000000e+00> : vector<8x64xf32>
    %327 = vector.multi_reduction <add>, %326, %cst_97 [1] : vector<8x8x64xf32> to vector<8x64xf32>
    %328 = tpu.concatenate %327, %181 in 1 : vector<8x64xf32>, vector<8x32xf32> -> vector<8x96xf32>
    %c0_98 = arith.constant 0 : index
    %c0_99 = arith.constant 0 : index
    %329 = vector.load %arg8[%c0_98, %c0_99] : memref<96x128xf32, #tpu.memory_space<vmem>>, vector<96x128xf32>
    %cst_100 = arith.constant dense<0.000000e+00> : vector<8x128xf32>
    %330 = tpu.matmul %328, %329, %cst_100 {dimension_numbers = #tpu.dot_dimension_numbers<[1], [0], [0], [1], [0, 0, 1, 1], [], []>} : vector<8x96xf32>, vector<96x128xf32>, vector<8x128xf32> -> vector<8x128xf32>
    %331 = vector.broadcast %9 : vector<1x128xf32> to vector<8x128xf32>
    %332 = arith.addf %330, %331 : vector<8x128xf32>
    %333 = vector.extract_strided_slice %332 {offsets = [0, 0], sizes = [8, 32], strides = [1, 1]} : vector<8x128xf32> to vector<8x32xf32>
    %334 = arith.negf %333 : vector<8x32xf32>
    %335 = math.exp %334 : vector<8x32xf32>
    %cst_101 = arith.constant 1.000000e+00 : f32
    %336 = vector.broadcast %cst_101 : f32 to vector<8x32xf32>
    %337 = arith.addf %336, %335 : vector<8x32xf32>
    %338 = arith.divf %336, %337 : vector<8x32xf32>
    %339 = vector.extract_strided_slice %332 {offsets = [0, 32], sizes = [8, 32], strides = [1, 1]} : vector<8x128xf32> to vector<8x32xf32>
    %340 = arith.negf %339 : vector<8x32xf32>
    %341 = math.exp %340 : vector<8x32xf32>
    %cst_102 = arith.constant 1.000000e+00 : f32
    %342 = vector.broadcast %cst_102 : f32 to vector<8x32xf32>
    %343 = arith.addf %342, %341 : vector<8x32xf32>
    %344 = arith.divf %342, %343 : vector<8x32xf32>
    %345 = vector.extract_strided_slice %332 {offsets = [0, 64], sizes = [8, 32], strides = [1, 1]} : vector<8x128xf32> to vector<8x32xf32>
    %346 = math.tanh %345 : vector<8x32xf32>
    %347 = vector.extract_strided_slice %332 {offsets = [0, 96], sizes = [8, 32], strides = [1, 1]} : vector<8x128xf32> to vector<8x32xf32>
    %348 = arith.negf %347 : vector<8x32xf32>
    %349 = math.exp %348 : vector<8x32xf32>
    %cst_103 = arith.constant 1.000000e+00 : f32
    %350 = vector.broadcast %cst_103 : f32 to vector<8x32xf32>
    %351 = arith.addf %350, %349 : vector<8x32xf32>
    %352 = arith.divf %350, %351 : vector<8x32xf32>
    %353 = arith.mulf %344, %179 : vector<8x32xf32>
    %354 = arith.mulf %338, %346 : vector<8x32xf32>
    %355 = arith.addf %353, %354 : vector<8x32xf32>
    %356 = math.tanh %355 : vector<8x32xf32>
    %357 = arith.mulf %352, %356 : vector<8x32xf32>
    %c3_104 = arith.constant 3 : index
    %c0_105 = arith.constant 0 : index
    %c0_106 = arith.constant 0 : index
    %358 = vector.load %arg6[%c3_104, %c0_105, %c0_106] : memref<4x32x128xf32, #tpu.memory_space<vmem>>, vector<1x32x128xf32>
    %359 = vector.shape_cast %358 : vector<1x32x128xf32> to vector<32x128xf32>
    %cst_107 = arith.constant dense<0.000000e+00> : vector<8x128xf32>
    %360 = tpu.matmul %357, %359, %cst_107 {dimension_numbers = #tpu.dot_dimension_numbers<[1], [0], [0], [1], [0, 0, 1, 1], [], []>} : vector<8x32xf32>, vector<32x128xf32>, vector<8x128xf32> -> vector<8x128xf32>
    %361 = arith.addf %360, %115 : vector<8x128xf32>
    %cst_108 = arith.constant 0.000000e+00 : f32
    %362 = vector.broadcast %cst_108 : f32 to vector<8x128xf32>
    %363 = arith.maximumf %361, %362 : vector<8x128xf32>
    %c1_109 = arith.constant 1 : index
    %c0_110 = arith.constant 0 : index
    %c0_111 = arith.constant 0 : index
    %364 = vector.load %arg7[%c1_109, %c0_110, %c0_111] : memref<2x128x128xf32, #tpu.memory_space<vmem>>, vector<1x128x128xf32>
    %365 = vector.shape_cast %364 : vector<1x128x128xf32> to vector<128x128xf32>
    %cst_112 = arith.constant dense<0.000000e+00> : vector<8x128xf32>
    %366 = tpu.matmul %363, %365, %cst_112 {dimension_numbers = #tpu.dot_dimension_numbers<[1], [0], [0], [1], [0, 0, 1, 1], [], []>} : vector<8x128xf32>, vector<128x128xf32>, vector<8x128xf32> -> vector<8x128xf32>
    %367 = vector.broadcast %10 : vector<1x128xf32> to vector<8x128xf32>
    %368 = arith.addf %366, %367 : vector<8x128xf32>
    %369 = vector.extract_strided_slice %368 {offsets = [0, 0], sizes = [8, 64], strides = [1, 1]} : vector<8x128xf32> to vector<8x64xf32>
    %370 = vector.broadcast %295 : vector<8x1xf32> to vector<8x24xf32>
    %371 = arith.cmpf oeq, %370, %119 : vector<8x24xf32>
    %372 = arith.extui %371 : vector<8x24xi1> to vector<8x24xi32>
    %373 = arith.sitofp %372 : vector<8x24xi32> to vector<8x24xf32>
    %c0_113 = arith.constant 0 : index
    %c0_114 = arith.constant 0 : index
    %374 = vector.load %arg11[%c0_113, %c0_114] : memref<24x32xf32, #tpu.memory_space<vmem>>, vector<24x32xf32>
    %cst_115 = arith.constant dense<0.000000e+00> : vector<8x32xf32>
    %375 = tpu.matmul %373, %374, %cst_115 {dimension_numbers = #tpu.dot_dimension_numbers<[1], [0], [0], [1], [0, 0, 1, 1], [], []>} : vector<8x24xf32>, vector<24x32xf32>, vector<8x32xf32> -> vector<8x32xf32>
    %376 = vector.extract_strided_slice %375 {offsets = [0, 0], sizes = [8, 8], strides = [1, 1]} : vector<8x32xf32> to vector<8x8xf32>
    %377 = vector.extract_strided_slice %375 {offsets = [0, 8], sizes = [8, 8], strides = [1, 1]} : vector<8x32xf32> to vector<8x8xf32>
    %378 = vector.extract_strided_slice %375 {offsets = [0, 16], sizes = [8, 8], strides = [1, 1]} : vector<8x32xf32> to vector<8x8xf32>
    %379 = vector.broadcast %106 : vector<8x1xf32> to vector<8x8xf32>
    %380 = arith.subf %379, %378 : vector<8x8xf32>
    %cst_116 = arith.constant 1.600000e+01 : f32
    %381 = vector.broadcast %cst_116 : f32 to vector<8x8xf32>
    %382 = arith.cmpf oeq, %377, %381 : vector<8x8xf32>
    %383 = arith.extui %382 : vector<8x8xi1> to vector<8x8xi32>
    %384 = arith.sitofp %383 : vector<8x8xi32> to vector<8x8xf32>
    %cst_117 = arith.constant -3.200000e+01 : f32
    %385 = vector.broadcast %cst_117 : f32 to vector<8x8xf32>
    %386 = arith.subf %380, %385 : vector<8x8xf32>
    %cst_118 = arith.constant 0.000000e+00 : f32
    %cst_119 = arith.constant 6.300000e+01 : f32
    %387 = vector.broadcast %cst_118 : f32 to vector<8x8xf32>
    %388 = arith.maximumf %387, %386 : vector<8x8xf32>
    %389 = vector.broadcast %cst_119 : f32 to vector<8x8xf32>
    %390 = arith.minimumf %389, %388 : vector<8x8xf32>
    %cst_120 = arith.constant 2.400000e+01 : f32
    %391 = vector.broadcast %cst_120 : f32 to vector<8x8xf32>
    %392 = arith.addf %391, %390 : vector<8x8xf32>
    %cst_121 = arith.constant 8.800000e+01 : f32
    %393 = vector.broadcast %cst_121 : f32 to vector<8x8xf32>
    %394 = arith.addf %393, %376 : vector<8x8xf32>
    %395 = vector.shape_cast %377 : vector<8x8xf32> to vector<8x8x1xf32>
    %396 = vector.broadcast %395 : vector<8x8x1xf32> to vector<8x8x96xf32>
    %397 = arith.cmpf oeq, %121, %396 : vector<8x8x96xf32>
    %398 = arith.extui %397 : vector<8x8x96xi1> to vector<8x8x96xi32>
    %399 = arith.sitofp %398 : vector<8x8x96xi32> to vector<8x8x96xf32>
    %400 = vector.shape_cast %392 : vector<8x8xf32> to vector<8x8x1xf32>
    %401 = vector.broadcast %400 : vector<8x8x1xf32> to vector<8x8x96xf32>
    %402 = arith.cmpf oeq, %121, %401 : vector<8x8x96xf32>
    %403 = arith.extui %402 : vector<8x8x96xi1> to vector<8x8x96xi32>
    %404 = arith.sitofp %403 : vector<8x8x96xi32> to vector<8x8x96xf32>
    %405 = arith.addf %399, %404 : vector<8x8x96xf32>
    %406 = vector.shape_cast %394 : vector<8x8xf32> to vector<8x8x1xf32>
    %407 = vector.broadcast %406 : vector<8x8x1xf32> to vector<8x8x96xf32>
    %408 = arith.cmpf oeq, %121, %407 : vector<8x8x96xf32>
    %409 = arith.extui %408 : vector<8x8x96xi1> to vector<8x8x96xi32>
    %410 = arith.sitofp %409 : vector<8x8x96xi32> to vector<8x8x96xf32>
    %411 = arith.addf %405, %410 : vector<8x8x96xf32>
    %412 = vector.shape_cast %411 : vector<8x8x96xf32> to vector<64x96xf32>
    %c0_122 = arith.constant 0 : index
    %c0_123 = arith.constant 0 : index
    %413 = vector.load %arg10[%c0_122, %c0_123] : memref<96x64xf32, #tpu.memory_space<vmem>>, vector<96x64xf32>
    %cst_124 = arith.constant dense<0.000000e+00> : vector<64x64xf32>
    %414 = tpu.matmul %412, %413, %cst_124 {dimension_numbers = #tpu.dot_dimension_numbers<[1], [0], [0], [1], [0, 0, 1, 1], [], []>} : vector<64x96xf32>, vector<96x64xf32>, vector<64x64xf32> -> vector<64x64xf32>
    %415 = vector.shape_cast %414 : vector<64x64xf32> to vector<8x8x64xf32>
    %416 = vector.shape_cast %369 : vector<8x64xf32> to vector<8x1x64xf32>
    %417 = vector.broadcast %416 : vector<8x1x64xf32> to vector<8x8x64xf32>
    %418 = arith.mulf %415, %417 : vector<8x8x64xf32>
    %cst_125 = arith.constant dense<0.000000e+00> : vector<8x8xf32>
    %419 = vector.multi_reduction <add>, %418, %cst_125 [2] : vector<8x8x64xf32> to vector<8x8xf32>
    %cst_126 = arith.constant -1.000000e+09 : f32
    %420 = vector.broadcast %cst_126 : f32 to vector<8x8xf32>
    %421 = arith.mulf %384, %420 : vector<8x8xf32>
    %422 = arith.addf %419, %421 : vector<8x8xf32>
    %cst_127 = arith.constant dense<0xFF800000> : vector<8xf32>
    %423 = vector.multi_reduction <maximumf>, %422, %cst_127 [1] : vector<8x8xf32> to vector<8xf32>
    %424 = vector.shape_cast %423 : vector<8xf32> to vector<8x1xf32>
    %425 = vector.broadcast %424 : vector<8x1xf32> to vector<8x8xf32>
    %426 = arith.subf %422, %425 : vector<8x8xf32>
    %427 = math.exp %426 : vector<8x8xf32>
    %cst_128 = arith.constant dense<0.000000e+00> : vector<8xf32>
    %428 = vector.multi_reduction <add>, %427, %cst_128 [1] : vector<8x8xf32> to vector<8xf32>
    %429 = vector.shape_cast %428 : vector<8xf32> to vector<8x1xf32>
    %430 = math.log %429 : vector<8x1xf32>
    %431 = vector.broadcast %430 : vector<8x1xf32> to vector<8x8xf32>
    %432 = arith.subf %426, %431 : vector<8x8xf32>
    %433 = vector.shape_cast %105 : vector<8x64xf32> to vector<8x1x64xf32>
    %434 = vector.broadcast %433 : vector<8x1x64xf32> to vector<8x8x64xf32>
    %435 = arith.mulf %415, %434 : vector<8x8x64xf32>
    %cst_129 = arith.constant dense<0.000000e+00> : vector<8x8xf32>
    %436 = vector.multi_reduction <add>, %435, %cst_129 [2] : vector<8x8x64xf32> to vector<8x8xf32>
    %437 = arith.negf %436 : vector<8x8xf32>
    %438 = math.exp %437 : vector<8x8xf32>
    %cst_130 = arith.constant 1.000000e+00 : f32
    %439 = vector.broadcast %cst_130 : f32 to vector<8x8xf32>
    %440 = arith.addf %439, %438 : vector<8x8xf32>
    %441 = arith.divf %439, %440 : vector<8x8xf32>
    %cst_131 = arith.constant 1.000000e+00 : f32
    %442 = vector.broadcast %cst_131 : f32 to vector<8x1xf32>
    %443 = arith.subf %442, %107 : vector<8x1xf32>
    %444 = vector.broadcast %443 : vector<8x1xf32> to vector<8x8xf32>
    %445 = arith.mulf %441, %444 : vector<8x8xf32>
    %cst_132 = arith.constant dense<0xFF800000> : vector<8xf32>
    %446 = vector.multi_reduction <maximumf>, %432, %cst_132 [1] : vector<8x8xf32> to vector<8xf32>
    %447 = vector.shape_cast %446 : vector<8xf32> to vector<8x1xf32>
    %448 = vector.broadcast %447 : vector<8x1xf32> to vector<8x8xf32>
    %449 = arith.cmpf oeq, %432, %448 : vector<8x8xf32>
    %cst_133 = arith.constant 8.000000e+00 : f32
    %450 = vector.broadcast %cst_133 : f32 to vector<8x8xf32>
    %451 = arith.select %449, %117, %450 : vector<8x8xi1>, vector<8x8xf32>
    %cst_134 = arith.constant dense<0x7F800000> : vector<8xf32>
    %452 = vector.multi_reduction <minimumf>, %451, %cst_134 [1] : vector<8x8xf32> to vector<8xf32>
    %453 = vector.shape_cast %452 : vector<8xf32> to vector<8x1xf32>
    %454 = vector.broadcast %453 : vector<8x1xf32> to vector<8x8xf32>
    %455 = arith.cmpf oeq, %117, %454 : vector<8x8xf32>
    %456 = arith.extui %455 : vector<8x8xi1> to vector<8x8xi32>
    %457 = arith.sitofp %456 : vector<8x8xi32> to vector<8x8xf32>
    %458 = arith.mulf %432, %457 : vector<8x8xf32>
    %cst_135 = arith.constant dense<0.000000e+00> : vector<8xf32>
    %459 = vector.multi_reduction <add>, %458, %cst_135 [1] : vector<8x8xf32> to vector<8xf32>
    %460 = vector.shape_cast %459 : vector<8xf32> to vector<8x1xf32>
    %cst_136 = arith.constant 0.000000e+00 : f32
    %461 = vector.broadcast %cst_136 : f32 to vector<8x1xf32>
    %462 = arith.subf %461, %460 : vector<8x1xf32>
    %463 = arith.mulf %445, %457 : vector<8x8xf32>
    %cst_137 = arith.constant dense<0.000000e+00> : vector<8xf32>
    %464 = vector.multi_reduction <add>, %463, %cst_137 [1] : vector<8x8xf32> to vector<8xf32>
    %465 = vector.shape_cast %464 : vector<8xf32> to vector<8x1xf32>
    %466 = arith.mulf %376, %457 : vector<8x8xf32>
    %cst_138 = arith.constant dense<0.000000e+00> : vector<8xf32>
    %467 = vector.multi_reduction <add>, %466, %cst_138 [1] : vector<8x8xf32> to vector<8xf32>
    %468 = vector.shape_cast %467 : vector<8xf32> to vector<8x1xf32>
    %469 = arith.mulf %377, %457 : vector<8x8xf32>
    %cst_139 = arith.constant dense<0.000000e+00> : vector<8xf32>
    %470 = vector.multi_reduction <add>, %469, %cst_139 [1] : vector<8x8xf32> to vector<8xf32>
    %471 = vector.shape_cast %470 : vector<8xf32> to vector<8x1xf32>
    %472 = arith.mulf %378, %457 : vector<8x8xf32>
    %cst_140 = arith.constant dense<0.000000e+00> : vector<8xf32>
    %473 = vector.multi_reduction <add>, %472, %cst_140 [1] : vector<8x8xf32> to vector<8xf32>
    %474 = vector.shape_cast %473 : vector<8xf32> to vector<8x1xf32>
    %475 = vector.broadcast %462 : vector<8x1xf32> to vector<8x8xf32>
    %476 = vector.broadcast %126 : vector<1x8xf32> to vector<8x8xf32>
    %477 = arith.mulf %475, %476 : vector<8x8xf32>
    %478 = vector.broadcast %453 : vector<8x1xf32> to vector<8x8xf32>
    %479 = vector.broadcast %131 : vector<1x8xf32> to vector<8x8xf32>
    %480 = arith.mulf %478, %479 : vector<8x8xf32>
    %481 = arith.addf %477, %480 : vector<8x8xf32>
    %482 = vector.broadcast %465 : vector<8x1xf32> to vector<8x8xf32>
    %483 = vector.broadcast %136 : vector<1x8xf32> to vector<8x8xf32>
    %484 = arith.mulf %482, %483 : vector<8x8xf32>
    %485 = arith.addf %481, %484 : vector<8x8xf32>
    %486 = vector.broadcast %471 : vector<8x1xf32> to vector<8x8xf32>
    %487 = vector.broadcast %141 : vector<1x8xf32> to vector<8x8xf32>
    %488 = arith.mulf %486, %487 : vector<8x8xf32>
    %489 = arith.addf %485, %488 : vector<8x8xf32>
    %490 = vector.broadcast %474 : vector<8x1xf32> to vector<8x8xf32>
    %491 = vector.broadcast %146 : vector<1x8xf32> to vector<8x8xf32>
    %492 = arith.mulf %490, %491 : vector<8x8xf32>
    %493 = arith.addf %489, %492 : vector<8x8xf32>
    %494 = vector.broadcast %468 : vector<8x1xf32> to vector<8x8xf32>
    %495 = vector.broadcast %151 : vector<1x8xf32> to vector<8x8xf32>
    %496 = arith.mulf %494, %495 : vector<8x8xf32>
    %497 = arith.addf %493, %496 : vector<8x8xf32>
    %cst_141 = arith.constant 0.000000e+00 : f32
    %498 = vector.broadcast %cst_141 : f32 to vector<8x112xf32>
    %499 = tpu.concatenate %432, %497, %498 in 1 : vector<8x8xf32>, vector<8x8xf32>, vector<8x112xf32> -> vector<8x128xf32>
    %500 = tpu.concatenate %323, %499 in 0 : vector<8x128xf32>, vector<8x128xf32> -> vector<16x128xf32>
    %c0_142 = arith.constant 0 : index
    %c0_143 = arith.constant 0 : index
    %501 = vector.load %arg12[%c0_142, %c0_143] : memref<16x128xf32, #tpu.memory_space<vmem>>, vector<16x128xf32>
    tpu.vector_store %arg12[%c0_142, %c0_143], %500 {strides = array<i32>} : memref<16x128xf32, #tpu.memory_space<vmem>>, vector<16x128xf32>,
    return
  }
  func.func @transform_0(%arg0: i32) -> (i32, i32) {
    %c0_i32 = arith.constant 0 : i32
    %c0_i32_0 = arith.constant 0 : i32
    return %arg0, %c0_i32 : i32, i32
  }
  func.func @transform_1(%arg0: i32) -> (i32, i32) {
    %c0_i32 = arith.constant 0 : i32
    %c0_i32_0 = arith.constant 0 : i32
    return %arg0, %c0_i32 : i32, i32
  }
  func.func @transform_2(%arg0: i32) -> (i32, i32) {
    %c0_i32 = arith.constant 0 : i32
    %c0_i32_0 = arith.constant 0 : i32
    return %arg0, %c0_i32 : i32, i32
  }
  func.func @transform_3(%arg0: i32) -> (i32, i32) {
    %c0_i32 = arith.constant 0 : i32
    %c0_i32_0 = arith.constant 0 : i32
    return %arg0, %c0_i32 : i32, i32
  }
  func.func @transform_4(%arg0: i32) -> (i32, i32) {
    %c0_i32 = arith.constant 0 : i32
    %c0_i32_0 = arith.constant 0 : i32
    return %arg0, %c0_i32 : i32, i32
  }
  func.func @transform_5(%arg0: i32) -> (i32, i32, i32) {
    %c0_i32 = arith.constant 0 : i32
    %c0_i32_0 = arith.constant 0 : i32
    %c0_i32_1 = arith.constant 0 : i32
    %c0_i32_2 = arith.constant 0 : i32
    return %c0_i32, %c0_i32_0, %c0_i32_1 : i32, i32, i32
  }
  func.func @transform_6(%arg0: i32) -> (i32, i32, i32) {
    %c0_i32 = arith.constant 0 : i32
    %c0_i32_0 = arith.constant 0 : i32
    %c0_i32_1 = arith.constant 0 : i32
    %c0_i32_2 = arith.constant 0 : i32
    return %c0_i32, %c0_i32_0, %c0_i32_1 : i32, i32, i32
  }
  func.func @transform_7(%arg0: i32) -> (i32, i32) {
    %c0_i32 = arith.constant 0 : i32
    %c0_i32_0 = arith.constant 0 : i32
    %c0_i32_1 = arith.constant 0 : i32
    return %c0_i32, %c0_i32_0 : i32, i32
  }
  func.func @transform_8(%arg0: i32) -> (i32, i32) {
    %c0_i32 = arith.constant 0 : i32
    %c0_i32_0 = arith.constant 0 : i32
    %c0_i32_1 = arith.constant 0 : i32
    return %c0_i32, %c0_i32_0 : i32, i32
  }
  func.func @transform_9(%arg0: i32) -> (i32, i32) {
    %c0_i32 = arith.constant 0 : i32
    %c0_i32_0 = arith.constant 0 : i32
    %c0_i32_1 = arith.constant 0 : i32
    return %c0_i32, %c0_i32_0 : i32, i32
  }
  func.func @transform_10(%arg0: i32) -> (i32, i32) {
    %c0_i32 = arith.constant 0 : i32
    %c0_i32_0 = arith.constant 0 : i32
    %c0_i32_1 = arith.constant 0 : i32
    return %c0_i32, %c0_i32_0 : i32, i32
  }
  func.func @transform_11(%arg0: i32) -> (i32, i32) {
    %c0_i32 = arith.constant 0 : i32
    %c0_i32_0 = arith.constant 0 : i32
    return %arg0, %c0_i32 : i32, i32
  }
}

</mosaic_0001>

<llo_original>
// kernel: episode_forward.1
$region0: #{episode_forward.1}
  #allocation0 [shape = 'u32[]', space=smem, size = 0x4, offset = 0x4, fixed_abs, tag = 'smem constant byte address 0x4 - core index']
  #allocation1 [shape = 'u32[144,128]{1,0:T(1,128)}', space=vmem, size = 0x12000, scoped, tag = 'internal scratch']
  %s0 = inlined_call_operand.vmem [shape: f32[128,32], index: 0, kind: input, shape index: {}]
  %s1 = inlined_call_operand.vmem [shape: f32[128,64], index: 1, kind: input, shape index: {}]
  %s2 = inlined_call_operand.vmem [shape: f32[16,32], index: 2, kind: input, shape index: {}]
  %s3 = inlined_call_operand.vmem [shape: f32[16,128], index: 3, kind: input, shape index: {}]
  %s4 = inlined_call_operand.vmem [shape: f32[16,8], index: 4, kind: input, shape index: {}]
  %s5 = inlined_call_operand.vmem [shape: f32[4,32,128], index: 5, kind: input, shape index: {}]
  %s6 = inlined_call_operand.vmem [shape: f32[2,128,128], index: 6, kind: input, shape index: {}]
  %s7 = inlined_call_operand.vmem [shape: f32[96,128], index: 7, kind: input, shape index: {}]
  %s8 = inlined_call_operand.vmem [shape: f32[16,128], index: 8, kind: input, shape index: {}]
  %s9 = inlined_call_operand.vmem [shape: f32[96,64], index: 9, kind: input, shape index: {}]
  %s10 = inlined_call_operand.vmem [shape: f32[24,32], index: 10, kind: input, shape index: {}]
  %s11 = inlined_call_operand.vmem [shape: f32[32,128], index: 11, kind: output, shape index: {}]
  %s12 = sld [smem:[#allocation0]]
  $region77: #{episode_forward.1} parent=0
    _
  %s14 = ssub.s32 1, %s12
  %s15 = scalar_select 0, %s14, %s12
  loop: start=0, step=1, limit=4
  $region2: #{episode_forward.1} parent=0 // loop_pre_header
    _
  $region3: #{episode_forward.1} parent=0 // loop_header
    %s17 = sphi 0, %s21
    %p18 = scmp.ge.s32.totalorder %s17, 4
    %s27 = sphi 0, %s29
    %s30 = sphi 0, %s27
    %s31 = sphi 0, %s30
    %s47 = sphi 0, %s31
    %s53 = sphi 0, %s55
    %s56 = sphi 0, %s53
    %s57 = sphi 0, %s56
    %s73 = sphi 0, %s57
    %s79 = sphi 0, %s81
    %s82 = sphi 0, %s79
    %s83 = sphi 0, %s82
    %s99 = sphi 0, %s83
    %s105 = sphi 0, %s107
    %s108 = sphi 0, %s105
    %s109 = sphi 0, %s108
    %s125 = sphi 0, %s109
    %s131 = sphi 0, %s133
    %s134 = sphi 0, %s131
    %s135 = sphi 0, %s134
    %s151 = sphi 0, %s135
    %s155 = sphi 0, %s155
    %s157 = sphi 0, %s155
    %s158 = sphi 0, %s157
    %s172 = sphi 0, %s158
    %s176 = sphi 0, %s176
    %s178 = sphi 0, %s176
    %s179 = sphi 0, %s178
    %s193 = sphi 0, %s179
    %s197 = sphi 0, %s197
    %s199 = sphi 0, %s197
    %s200 = sphi 0, %s199
    %s214 = sphi 0, %s200
    %s218 = sphi 0, %s218
    %s220 = sphi 0, %s218
    %s221 = sphi 0, %s220
    %s235 = sphi 0, %s221
    %s239 = sphi 0, %s239
    %s241 = sphi 0, %s239
    %s242 = sphi 0, %s241
    %s256 = sphi 0, %s242
    %s260 = sphi 0, %s260
    %s262 = sphi 0, %s260
    %s263 = sphi 0, %s262
    %s277 = sphi 0, %s263
    %s283 = sphi 0, %s285
    %s286 = sphi 0, %s283
    %s287 = sphi 0, %s286
    %s303 = sphi 0, %s287
  $region4: #{episode_forward.1} parent=0 // loop_header_branch
    %20 = sbr.rel (%p18) target = $region8
  $region5: #{episode_forward.1} parent=0 // loop_body
    %s22 = ssub.s32 %s17, 1
    %s23 = ssub.s32 %s17, 2
    %s24 = sadd.s32 %s17, 1
    %s25 = ssub.s32 %s17, %s24
    %p26 = scmp.eq.s32.totalorder %s25, 0
    %s28 = sadd.s32 %s27, 1
    %s29 = scalar_select %p26, %s27, %s28
    %p32 = pneg %p26
    %p33 = scmp.eq.s32.totalorder %s17, 1
    %p34 = por %p32, %p33
    %p35 = scmp.ne.s32.totalorder %s27, %s30
    %p36 = scmp.eq.s32.totalorder %s17, 0
    %p37 = por %p35, %p36
    %p38 = scmp.ne.s32.totalorder %s27, %s30
    %p39 = scmp.eq.s32.totalorder %s22, 1
    %p40 = por %p38, %p39
    %p41 = scmp.ne.s32.totalorder %s30, %s31
    %p42 = scmp.eq.s32.totalorder %s22, 0
    %p43 = por %p41, %p42
    %p44 = scmp.ne.s32.totalorder %s30, %s31
    %p45 = scmp.eq.s32.totalorder %s23, 1
    %p46 = por %p44, %p45
    %p48 = scmp.ne.s32.totalorder %s31, %s47
    %p49 = scmp.eq.s32.totalorder %s23, 0
    %p50 = por %p48, %p49
    %s51 = ssub.s32 %s17, %s24
    %p52 = scmp.eq.s32.totalorder %s51, 0
    %s54 = sadd.s32 %s53, 1
    %s55 = scalar_select %p52, %s53, %s54
    %p58 = pneg %p52
    %p59 = scmp.eq.s32.totalorder %s17, 1
    %p60 = por %p58, %p59
    %p61 = scmp.ne.s32.totalorder %s53, %s56
    %p62 = scmp.eq.s32.totalorder %s17, 0
    %p63 = por %p61, %p62
    %p64 = scmp.ne.s32.totalorder %s53, %s56
    %p65 = scmp.eq.s32.totalorder %s22, 1
    %p66 = por %p64, %p65
    %p67 = scmp.ne.s32.totalorder %s56, %s57
    %p68 = scmp.eq.s32.totalorder %s22, 0
    %p69 = por %p67, %p68
    %p70 = scmp.ne.s32.totalorder %s56, %s57
    %p71 = scmp.eq.s32.totalorder %s23, 1
    %p72 = por %p70, %p71
    %p74 = scmp.ne.s32.totalorder %s57, %s73
    %p75 = scmp.eq.s32.totalorder %s23, 0
    %p76 = por %p74, %p75
    %s77 = ssub.s32 %s17, %s24
    %p78 = scmp.eq.s32.totalorder %s77, 0
    %s80 = sadd.s32 %s79, 1
    %s81 = scalar_select %p78, %s79, %s80
    %p84 = pneg %p78
    %p85 = scmp.eq.s32.totalorder %s17, 1
    %p86 = por %p84, %p85
    %p87 = scmp.ne.s32.totalorder %s79, %s82
    %p88 = scmp.eq.s32.totalorder %s17, 0
    %p89 = por %p87, %p88
    %p90 = scmp.ne.s32.totalorder %s79, %s82
    %p91 = scmp.eq.s32.totalorder %s22, 1
    %p92 = por %p90, %p91
    %p93 = scmp.ne.s32.totalorder %s82, %s83
    %p94 = scmp.eq.s32.totalorder %s22, 0
    %p95 = por %p93, %p94
    %p96 = scmp.ne.s32.totalorder %s82, %s83
    %p97 = scmp.eq.s32.totalorder %s23, 1
    %p98 = por %p96, %p97
    %p100 = scmp.ne.s32.totalorder %s83, %s99
    %p101 = scmp.eq.s32.totalorder %s23, 0
    %p102 = por %p100, %p101
    %s103 = ssub.s32 %s17, %s24
    %p104 = scmp.eq.s32.totalorder %s103, 0
    %s106 = sadd.s32 %s105, 1
    %s107 = scalar_select %p104, %s105, %s106
    %p110 = pneg %p104
    %p111 = scmp.eq.s32.totalorder %s17, 1
    %p112 = por %p110, %p111
    %p113 = scmp.ne.s32.totalorder %s105, %s108
    %p114 = scmp.eq.s32.totalorder %s17, 0
    %p115 = por %p113, %p114
    %p116 = scmp.ne.s32.totalorder %s105, %s108
    %p117 = scmp.eq.s32.totalorder %s22, 1
    %p118 = por %p116, %p117
    %p119 = scmp.ne.s32.totalorder %s108, %s109
    %p120 = scmp.eq.s32.totalorder %s22, 0
    %p121 = por %p119, %p120
    %p122 = scmp.ne.s32.totalorder %s108, %s109
    %p123 = scmp.eq.s32.totalorder %s23, 1
    %p124 = por %p122, %p123
    %p126 = scmp.ne.s32.totalorder %s109, %s125
    %p127 = scmp.eq.s32.totalorder %s23, 0
    %p128 = por %p126, %p127
    %s129 = ssub.s32 %s17, %s24
    %p130 = scmp.eq.s32.totalorder %s129, 0
    %s132 = sadd.s32 %s131, 1
    %s133 = scalar_select %p130, %s131, %s132
    %p136 = pneg %p130
    %p137 = scmp.eq.s32.totalorder %s17, 1
    %p138 = por %p136, %p137
    %p139 = scmp.ne.s32.totalorder %s131, %s134
    %p140 = scmp.eq.s32.totalorder %s17, 0
    %p141 = por %p139, %p140
    %p142 = scmp.ne.s32.totalorder %s131, %s134
    %p143 = scmp.eq.s32.totalorder %s22, 1
    %p144 = por %p142, %p143
    %p145 = scmp.ne.s32.totalorder %s134, %s135
    %p146 = scmp.eq.s32.totalorder %s22, 0
    %p147 = por %p145, %p146
    %p148 = scmp.ne.s32.totalorder %s134, %s135
    %p149 = scmp.eq.s32.totalorder %s23, 1
    %p150 = por %p148, %p149
    %p152 = scmp.ne.s32.totalorder %s135, %s151
    %p153 = scmp.eq.s32.totalorder %s23, 0
    %p154 = por %p152, %p153
    %s156 = sadd.s32 %s155, 1
    %p159 = scmp.eq.s32.totalorder %s17, 1
    %p160 = scmp.ne.s32.totalorder %s155, %s157
    %p161 = scmp.eq.s32.totalorder %s17, 0
    %p162 = por %p160, %p161
    %p163 = scmp.ne.s32.totalorder %s155, %s157
    %p164 = scmp.eq.s32.totalorder %s22, 1
    %p165 = por %p163, %p164
    %p166 = scmp.ne.s32.totalorder %s157, %s158
    %p167 = scmp.eq.s32.totalorder %s22, 0
    %p168 = por %p166, %p167
    %p169 = scmp.ne.s32.totalorder %s157, %s158
    %p170 = scmp.eq.s32.totalorder %s23, 1
    %p171 = por %p169, %p170
    %p173 = scmp.ne.s32.totalorder %s158, %s172
    %p174 = scmp.eq.s32.totalorder %s23, 0
    %p175 = por %p173, %p174
    %s177 = sadd.s32 %s176, 1
    %p180 = scmp.eq.s32.totalorder %s17, 1
    %p181 = scmp.ne.s32.totalorder %s176, %s178
    %p182 = scmp.eq.s32.totalorder %s17, 0
    %p183 = por %p181, %p182
    %p184 = scmp.ne.s32.totalorder %s176, %s178
    %p185 = scmp.eq.s32.totalorder %s22, 1
    %p186 = por %p184, %p185
    %p187 = scmp.ne.s32.totalorder %s178, %s179
    %p188 = scmp.eq.s32.totalorder %s22, 0
    %p189 = por %p187, %p188
    %p190 = scmp.ne.s32.totalorder %s178, %s179
    %p191 = scmp.eq.s32.totalorder %s23, 1
    %p192 = por %p190, %p191
    %p194 = scmp.ne.s32.totalorder %s179, %s193
    %p195 = scmp.eq.s32.totalorder %s23, 0
    %p196 = por %p194, %p195
    %s198 = sadd.s32 %s197, 1
    %p201 = scmp.eq.s32.totalorder %s17, 1
    %p202 = scmp.ne.s32.totalorder %s197, %s199
    %p203 = scmp.eq.s32.totalorder %s17, 0
    %p204 = por %p202, %p203
    %p205 = scmp.ne.s32.totalorder %s197, %s199
    %p206 = scmp.eq.s32.totalorder %s22, 1
    %p207 = por %p205, %p206
    %p208 = scmp.ne.s32.totalorder %s199, %s200
    %p209 = scmp.eq.s32.totalorder %s22, 0
    %p210 = por %p208, %p209
    %p211 = scmp.ne.s32.totalorder %s199, %s200
    %p212 = scmp.eq.s32.totalorder %s23, 1
    %p213 = por %p211, %p212
    %p215 = scmp.ne.s32.totalorder %s200, %s214
    %p216 = scmp.eq.s32.totalorder %s23, 0
    %p217 = por %p215, %p216
    %s219 = sadd.s32 %s218, 1
    %p222 = scmp.eq.s32.totalorder %s17, 1
    %p223 = scmp.ne.s32.totalorder %s218, %s220
    %p224 = scmp.eq.s32.totalorder %s17, 0
    %p225 = por %p223, %p224
    %p226 = scmp.ne.s32.totalorder %s218, %s220
    %p227 = scmp.eq.s32.totalorder %s22, 1
    %p228 = por %p226, %p227
    %p229 = scmp.ne.s32.totalorder %s220, %s221
    %p230 = scmp.eq.s32.totalorder %s22, 0
    %p231 = por %p229, %p230
    %p232 = scmp.ne.s32.totalorder %s220, %s221
    %p233 = scmp.eq.s32.totalorder %s23, 1
    %p234 = por %p232, %p233
    %p236 = scmp.ne.s32.totalorder %s221, %s235
    %p237 = scmp.eq.s32.totalorder %s23, 0
    %p238 = por %p236, %p237
    %s240 = sadd.s32 %s239, 1
    %p243 = scmp.eq.s32.totalorder %s17, 1
    %p244 = scmp.ne.s32.totalorder %s239, %s241
    %p245 = scmp.eq.s32.totalorder %s17, 0
    %p246 = por %p244, %p245
    %p247 = scmp.ne.s32.totalorder %s239, %s241
    %p248 = scmp.eq.s32.totalorder %s22, 1
    %p249 = por %p247, %p248
    %p250 = scmp.ne.s32.totalorder %s241, %s242
    %p251 = scmp.eq.s32.totalorder %s22, 0
    %p252 = por %p250, %p251
    %p253 = scmp.ne.s32.totalorder %s241, %s242
    %p254 = scmp.eq.s32.totalorder %s23, 1
    %p255 = por %p253, %p254
    %p257 = scmp.ne.s32.totalorder %s242, %s256
    %p258 = scmp.eq.s32.totalorder %s23, 0
    %p259 = por %p257, %p258
    %s261 = sadd.s32 %s260, 1
    %p264 = scmp.eq.s32.totalorder %s17, 1
    %p265 = scmp.ne.s32.totalorder %s260, %s262
    %p266 = scmp.eq.s32.totalorder %s17, 0
    %p267 = por %p265, %p266
    %p268 = scmp.ne.s32.totalorder %s260, %s262
    %p269 = scmp.eq.s32.totalorder %s22, 1
    %p270 = por %p268, %p269
    %p271 = scmp.ne.s32.totalorder %s262, %s263
    %p272 = scmp.eq.s32.totalorder %s22, 0
    %p273 = por %p271, %p272
    %p274 = scmp.ne.s32.totalorder %s262, %s263
    %p275 = scmp.eq.s32.totalorder %s23, 1
    %p276 = por %p274, %p275
    %p278 = scmp.ne.s32.totalorder %s263, %s277
    %p279 = scmp.eq.s32.totalorder %s23, 0
    %p280 = por %p278, %p279
    %s281 = ssub.s32 %s17, %s24
    %p282 = scmp.eq.s32.totalorder %s281, 0
    %s284 = sadd.s32 %s283, 1
    %s285 = scalar_select %p282, %s283, %s284
    %p288 = pneg %p282
    %p289 = scmp.eq.s32.totalorder %s17, 1
    %p290 = por %p288, %p289
    %p291 = scmp.ne.s32.totalorder %s283, %s286
    %p292 = scmp.eq.s32.totalorder %s17, 0
    %p293 = por %p291, %p292
    %p294 = scmp.ne.s32.totalorder %s283, %s286
    %p295 = scmp.eq.s32.totalorder %s22, 1
    %p296 = por %p294, %p295
    %p297 = scmp.ne.s32.totalorder %s286, %s287
    %p298 = scmp.eq.s32.totalorder %s22, 0
    %p299 = por %p297, %p298
    %p300 = scmp.ne.s32.totalorder %s286, %s287
    %p301 = scmp.eq.s32.totalorder %s23, 1
    %p302 = por %p300, %p301
    %p304 = scmp.ne.s32.totalorder %s287, %s303
    %p305 = scmp.eq.s32.totalorder %s23, 0
    %p306 = por %p304, %p305
    %p307 = scmp.le.s32.totalorder 1, %s17
    %p308 = scmp.lt.s32.totalorder %s17, 3
    %p309 = pnand %p307, %p308
    %p310 = pneg %p309
    // Predicated region
    $region9: #{episode_forward.1} parent=5 // pred_check
      _
    $region10: #{episode_forward.1} parent=5 // pred_check_branch
      %312 = sbr.rel (%p309) target = $region12
    $region11: #{episode_forward.1} parent=5 // pred_region
      %s313 = ssub.s32 %s17, 1
      // Predicated region
      $region13: #{episode_forward.1} parent=11 // pred_check
        %p314 = pneg %p168
      $region14: #{episode_forward.1} parent=11 // pred_check_branch
        %316 = sbr.rel (%p314) target = $region16
      $region15: #{episode_forward.1} parent=11 // pred_region
        _
      $region16: #{episode_forward.1} parent=11 // pred_fallthru
        _
      // Predicated region
      $region17: #{episode_forward.1} parent=11 // pred_check
        %p317 = pneg %p189
      $region18: #{episode_forward.1} parent=11 // pred_check_branch
        %319 = sbr.rel (%p317) target = $region20
      $region19: #{episode_forward.1} parent=11 // pred_region
        _
      $region20: #{episode_forward.1} parent=11 // pred_fallthru
        _
      // Predicated region
      $region21: #{episode_forward.1} parent=11 // pred_check
        %p320 = pneg %p210
      $region22: #{episode_forward.1} parent=11 // pred_check_branch
        %322 = sbr.rel (%p320) target = $region24
      $region23: #{episode_forward.1} parent=11 // pred_region
        _
      $region24: #{episode_forward.1} parent=11 // pred_fallthru
        _
      // Predicated region
      $region25: #{episode_forward.1} parent=11 // pred_check
        %p323 = pneg %p231
      $region26: #{episode_forward.1} parent=11 // pred_check_branch
        %325 = sbr.rel (%p323) target = $region28
      $region27: #{episode_forward.1} parent=11 // pred_region
        _
      $region28: #{episode_forward.1} parent=11 // pred_fallthru
        _
      // Predicated region
      $region29: #{episode_forward.1} parent=11 // pred_check
        %p326 = pneg %p252
      $region30: #{episode_forward.1} parent=11 // pred_check_branch
        %328 = sbr.rel (%p326) target = $region32
      $region31: #{episode_forward.1} parent=11 // pred_region
        _
      $region32: #{episode_forward.1} parent=11 // pred_fallthru
        _
      // Predicated region
      $region33: #{episode_forward.1} parent=11 // pred_check
        %p329 = pneg %p273
      $region34: #{episode_forward.1} parent=11 // pred_check_branch
        %331 = sbr.rel (%p329) target = $region36
      $region35: #{episode_forward.1} parent=11 // pred_region
        _
      $region36: #{episode_forward.1} parent=11 // pred_fallthru
        _
    $region12: #{episode_forward.1} parent=5 // pred_fallthru
      _
    %p332 = scmp.lt.s32.totalorder %s17, 2
    // Predicated region
    $region37: #{episode_forward.1} parent=5 // pred_check
      %p333 = pneg %p332
    $region38: #{episode_forward.1} parent=5 // pred_check_branch
      %335 = sbr.rel (%p333) target = $region40
    $region39: #{episode_forward.1} parent=5 // pred_region
      // Predicated region
      $region41: #{episode_forward.1} parent=39 // pred_check
        %p336 = pneg %p37
      $region42: #{episode_forward.1} parent=39 // pred_check_branch
        %338 = sbr.rel (%p336) target = $region44
      $region43: #{episode_forward.1} parent=39 // pred_region
        %s339 = smul.u32 8, %s17
        %p340 = scmp.lt.s32.totalorder %s339, 15
        %s341 = scalar_select %p340, %s339, 15
        %s342 = smul.addr %s341, 8
        %s343 = scalar_lea.vmem %s0, %s342
        %s344 = smul.u32 8, %s17
      $region44: #{episode_forward.1} parent=39 // pred_fallthru
        _
      // Predicated region
      $region45: #{episode_forward.1} parent=39 // pred_check
        %p345 = pneg %p63
      $region46: #{episode_forward.1} parent=39 // pred_check_branch
        %347 = sbr.rel (%p345) target = $region48
      $region47: #{episode_forward.1} parent=39 // pred_region
        %s348 = smul.u32 8, %s17
        %p349 = scmp.lt.s32.totalorder %s348, 15
        %s350 = scalar_select %p349, %s348, 15
        %s351 = smul.addr %s350, 8
        %s352 = scalar_lea.vmem %s1, %s351
        %s353 = smul.u32 8, %s17
      $region48: #{episode_forward.1} parent=39 // pred_fallthru
        _
      // Predicated region
      $region49: #{episode_forward.1} parent=39 // pred_check
        %p354 = pneg %p89
      $region50: #{episode_forward.1} parent=39 // pred_check_branch
        %356 = sbr.rel (%p354) target = $region52
      $region51: #{episode_forward.1} parent=39 // pred_region
        %p357 = scmp.lt.s32.totalorder %s17, 1
        %s358 = scalar_select %p357, %s17, 1
        %s359 = smul.addr %s358, 8
        %s360 = scalar_lea.vmem %s2, %s359
      $region52: #{episode_forward.1} parent=39 // pred_fallthru
        _
      // Predicated region
      $region53: #{episode_forward.1} parent=39 // pred_check
        %p361 = pneg %p115
      $region54: #{episode_forward.1} parent=39 // pred_check_branch
        %363 = sbr.rel (%p361) target = $region56
      $region55: #{episode_forward.1} parent=39 // pred_region
        %p364 = scmp.lt.s32.totalorder %s17, 1
        %s365 = scalar_select %p364, %s17, 1
        %s366 = smul.addr %s365, 8
        %s367 = scalar_lea.vmem %s3, %s366
      $region56: #{episode_forward.1} parent=39 // pred_fallthru
        _
      // Predicated region
      $region57: #{episode_forward.1} parent=39 // pred_check
        %p368 = pneg %p141
      $region58: #{episode_forward.1} parent=39 // pred_check_branch
        %370 = sbr.rel (%p368) target = $region60
      $region59: #{episode_forward.1} parent=39 // pred_region
        %p371 = scmp.lt.s32.totalorder %s17, 1
        %s372 = scalar_select %p371, %s17, 1
        %s373 = smul.addr %s372, 8
        %s374 = scalar_lea.vmem %s4, %s373
      $region60: #{episode_forward.1} parent=39 // pred_fallthru
        _
    $region40: #{episode_forward.1} parent=5 // pred_fallthru
      _
    %p375 = scmp.le.s32.totalorder 1, %s17
    %p376 = scmp.lt.s32.totalorder %s17, 3
    %p377 = pnand %p375, %p376
    %p378 = pneg %p377
    // Predicated region
    $region61: #{episode_forward.1} parent=5 // pred_check
      _
    $region62: #{episode_forward.1} parent=5 // pred_check_branch
      %380 = sbr.rel (%p377) target = $region64
    $region63: #{episode_forward.1} parent=5 // pred_region
      %s381 = ssub.s32 %s17, 1
      %s382 = smul.u32 8, %s22
      %p383 = scmp.lt.s32.totalorder %s382, 15
      %s384 = scalar_select %p383, %s382, 15
      %s385 = smul.addr %s384, 8
      %s386 = scalar_lea.vmem %s0, %s385
      %p387 = pneg %p43
      %p388 = pneg %p40
      %s389 = smul.u32 8, %s22
      %p390 = scmp.lt.s32.totalorder %s389, 15
      %s391 = scalar_select %p390, %s389, 15
      %s392 = smul.addr %s391, 8
      %s393 = scalar_lea.vmem %s1, %s392
      %p394 = pneg %p69
      %p395 = pneg %p66
      %p396 = scmp.lt.s32.totalorder %s22, 1
      %s397 = scalar_select %p396, %s22, 1
      %s398 = smul.addr %s397, 8
      %s399 = scalar_lea.vmem %s2, %s398
      %p400 = pneg %p95
      %p401 = pneg %p92
      %p402 = scmp.lt.s32.totalorder %s22, 1
      %s403 = scalar_select %p402, %s22, 1
      %s404 = smul.addr %s403, 8
      %s405 = scalar_lea.vmem %s3, %s404
      %p406 = pneg %p121
      %p407 = pneg %p118
      %p408 = scmp.lt.s32.totalorder %s22, 1
      %s409 = scalar_select %p408, %s22, 1
      %s410 = smul.addr %s409, 8
      %s411 = scalar_lea.vmem %s4, %s410
      %p412 = pneg %p147
      %p413 = pneg %p144
      %p414 = pneg %p168
      %p415 = pneg %p165
      %p416 = pneg %p189
      %p417 = pneg %p186
      %p418 = pneg %p210
      %p419 = pneg %p207
      %p420 = pneg %p231
      %p421 = pneg %p228
      %p422 = pneg %p252
      %p423 = pneg %p249
      %p424 = pneg %p273
      %p425 = pneg %p270
      %p426 = pneg %p299
      %p427 = pneg %p296
      %s428 = smul.u32 2, %s22
      %p429 = scmp.lt.s32.totalorder %s428, 3
      %s430 = scalar_select %p429, %s428, 3
      %s431 = smul.addr %s430, 8
      %s432 = scalar_lea.vmem %s11, %s431
      %s433 = smul.u32 8, %s22
      %p434 = scmp.lt.s32.totalorder %s433, 15
      %s435 = scalar_select %p434, %s433, 15
      %s436 = smul.addr %s435, 8
      %s437 = scalar_lea.vmem %s0, %s436
      %s438 = smul.u32 8, %s22
      %s439 = smul.u32 8, %s22
      %p440 = scmp.lt.s32.totalorder %s439, 15
      %s441 = scalar_select %p440, %s439, 15
      %s442 = smul.addr %s441, 8
      %s443 = scalar_lea.vmem %s1, %s442
      %s444 = smul.u32 8, %s22
      %p445 = scmp.lt.s32.totalorder %s22, 1
      %s446 = scalar_select %p445, %s22, 1
      %s447 = smul.addr %s446, 8
      %s448 = scalar_lea.vmem %s2, %s447
      %p449 = scmp.lt.s32.totalorder %s22, 1
      %s450 = scalar_select %p449, %s22, 1
      %s451 = smul.addr %s450, 8
      %s452 = scalar_lea.vmem %s3, %s451
      %p453 = scmp.lt.s32.totalorder %s22, 1
      %s454 = scalar_select %p453, %s22, 1
      %s455 = smul.addr %s454, 8
      %s456 = scalar_lea.vmem %s4, %s455
      %s457 = smul.u32 2, %s22
      %p458 = scmp.lt.s32.totalorder %s457, 3
      %s459 = scalar_select %p458, %s457, 3
      %s460 = smul.addr %s459, 8
      %s461 = scalar_lea.vmem %s11, %s460
      %s462 = smul.u32 2, %s22
      %v463 = vld [vmem:[%s8] sm:$0xff]
      %v464 = vld [vmem:[%s8 + $0x8] sm:$0xff]
      %v465 = vld [vmem:[%s437] sm:$0xff]
      %v466 = vld [vmem:[%s437 + $0x8] sm:$0xff]
      %v467 = vld [vmem:[%s437 + $0x10] sm:$0xff]
      %v468 = vld [vmem:[%s437 + $0x18] sm:$0xff]
      %v469 = vld [vmem:[%s437 + $0x20] sm:$0xff]
      %v470 = vld [vmem:[%s437 + $0x28] sm:$0xff]
      %v471 = vld [vmem:[%s437 + $0x30] sm:$0xff]
      %v472 = vld [vmem:[%s437 + $0x38] sm:$0xff]
      %v473 = vld [vmem:[%s5] sm:$0xff]
      %v474 = vld [vmem:[%s5 + $0x8] sm:$0xff]
      %v475 = vld [vmem:[%s5 + $0x10] sm:$0xff]
      %v476 = vld [vmem:[%s5 + $0x18] sm:$0xff]
      %v477 = vlaneseq
      %v478 = vshrl.u32 %v477, 7
      %v479 = vsub.s32 0, %v478
      %v480 = vrot.slane %v463, %v479
      %vm481 = vcmask 261120
      %v483 = vsel %vm481, %v465, 0
      %v486 = vsel %vm481, %v466, 0
      %v489 = vsel %vm481, %v467, 0
      %v492 = vsel %vm481, %v468, 0
      %v495 = vsel %vm481, %v469, 0
      %v498 = vsel %vm481, %v470, 0
      %v501 = vsel %vm481, %v471, 0
      %v504 = vsel %vm481, %v472, 0
      %506 = vmatprep.subr.mxu0 0.0
      %507 = vmatpush1.msra.mxu0 %v473
      %508 = vmatprep.subr.mxu0 0.0
      %509 = vmatpush1.msra.mxu0 %v474
      %510 = vmatprep.subr.mxu0 0.0
      %511 = vmatpush1.msra.mxu0 %v475
      %512 = vmatprep.subr.mxu0 0.0
      %513 = vmatpush1.msra.mxu0 %v476
      %514 = vmatprep.subr.mxu0 0.0
      %515 = vmatpush1.msra.mxu0 0.0
      %516 = vmatprep.subr.mxu0 0.0
      %517 = vmatpush1.msra.mxu0 0.0
      %518 = vmatprep.subr.mxu0 0.0
      %519 = vmatpush1.msra.mxu0 0.0
      %520 = vmatprep.subr.mxu0 0.0
      %521 = vmatpush1.msra.mxu0 0.0
      %522 = vmatprep.subr.mxu0 0.0
      %523 = vmatpush1.msra.mxu0 0.0
      %524 = vmatprep.subr.mxu0 0.0
      %525 = vmatpush1.msra.mxu0 0.0
      %526 = vmatprep.subr.mxu0 0.0
      %527 = vmatpush1.msra.mxu0 0.0
      %528 = vmatprep.subr.mxu0 0.0
      %529 = vmatpush1.msra.mxu0 0.0
      %530 = vmatprep.subr.mxu0 0.0
      %531 = vmatpush1.msra.mxu0 0.0
      %532 = vmatprep.subr.mxu0 0.0
      %533 = vmatpush1.msra.mxu0 0.0
      %534 = vmatprep.subr.mxu0 0.0
      %535 = vmatpush1.msra.mxu0 0.0
      %536 = vmatprep.subr.mxu0 0.0
      %537 = vmatpush1.msra.mxu0 0.0
      %538 = vmatprep.subr.mxu0 0.0
      %539 = vmatpush1.msra.mxu0 0.0
      %540 = vmatprep.subr.mxu0 0.0
      %541 = vmatpush1.msra.mxu0 0.0
      %542 = vmatprep.subr.mxu0 0.0
      %543 = vmatpush1.msra.mxu0 0.0
      %544 = vmatprep.subr.mxu0 0.0
      %545 = vmatpush1.msra.mxu0 0.0
      %546 = vmatprep.subr.mxu0 0.0
      %547 = vmatpush1.msra.mxu0 0.0
      %548 = vmatprep.subr.mxu0 0.0
      %549 = vmatpush1.msra.mxu0 0.0
      %550 = vmatprep.subr.mxu0 0.0
      %551 = vmatpush1.msra.mxu0 0.0
      %552 = vmatprep.subr.mxu0 0.0
      %553 = vmatpush1.msra.mxu0 0.0
      %554 = vmatprep.subr.mxu0 0.0
      %555 = vmatpush1.msra.mxu0 0.0
      %556 = vmatprep.subr.mxu0 0.0
      %557 = vmatpush1.msra.mxu0 0.0
      %558 = vmatprep.subr.mxu0 0.0
      %559 = vmatpush1.msra.mxu0 0.0
      %560 = vmatprep.subr.mxu0 0.0
      %561 = vmatpush1.msra.mxu0 0.0
      %562 = vmatprep.subr.mxu0 0.0
      %563 = vmatpush1.msra.mxu0 0.0
      %564 = vmatprep.subr.mxu0 0.0
      %565 = vmatpush1.msra.mxu0 0.0
      %566 = vmatprep.subr.mxu0 0.0
      %567 = vmatpush1.msra.mxu0 0.0
      %568 = vmatprep.subr.mxu0 0.0
      %569 = vmatpush1.msra.mxu0 0.0
      %570 = vmatprep.mubr.f32.mxu0 0.0
      %571 = vmatmul.mubr.f32.gmra.mrb[0].mxu0 %v483
      %v572 = vpop.f32.mrb[0].mxu0
      %v573 = vadd.f32 %v480, %v572
      %v574 = vpop.f32.mrb[0].mxu0
      %575 = vmatprep.mubr.f32.mxu0 0.0
      %576 = vmatmul.mubr.f32.gmra.mrb[0].mxu0 %v486
      %v577 = vpop.f32.mrb[0].mxu0
      %v578 = vadd.f32 %v480, %v577
      %v579 = vpop.f32.mrb[0].mxu0
      %580 = vmatprep.mubr.f32.mxu0 0.0
      %581 = vmatmul.mubr.f32.gmra.mrb[0].mxu0 %v489
      %v582 = vpop.f32.mrb[0].mxu0
      %v583 = vadd.f32 %v480, %v582
      %v584 = vpop.f32.mrb[0].mxu0
      %585 = vmatprep.mubr.f32.mxu0 0.0
      %586 = vmatmul.mubr.f32.gmra.mrb[0].mxu0 %v492
      %v587 = vpop.f32.mrb[0].mxu0
      %v588 = vadd.f32 %v480, %v587
      %v589 = vpop.f32.mrb[0].mxu0
      %590 = vmatprep.mubr.f32.mxu0 0.0
      %591 = vmatmul.mubr.f32.gmra.mrb[0].mxu0 %v495
      %v592 = vpop.f32.mrb[0].mxu0
      %v593 = vadd.f32 %v480, %v592
      %v594 = vpop.f32.mrb[0].mxu0
      %595 = vmatprep.mubr.f32.mxu0 0.0
      %596 = vmatmul.mubr.f32.gmra.mrb[0].mxu0 %v498
      %v597 = vpop.f32.mrb[0].mxu0
      %v598 = vadd.f32 %v480, %v597
      %v599 = vpop.f32.mrb[0].mxu0
      %600 = vmatprep.mubr.f32.mxu0 0.0
      %601 = vmatmul.mubr.f32.gmra.mrb[0].mxu0 %v501
      %v602 = vpop.f32.mrb[0].mxu0
      %v603 = vadd.f32 %v480, %v602
      %v604 = vpop.f32.mrb[0].mxu0
      %605 = vmatprep.mubr.f32.mxu0 0.0
      %606 = vmatmul.mubr.f32.gmra.mrb[0].mxu0 %v504
      %v607 = vpop.f32.mrb[0].mxu0
      %v608 = vadd.f32 %v480, %v607
      %v609 = vpop.f32.mrb[0].mxu0
      %610 = vdwg.mxu0
      %v611 = vld [vmem:[%s443] sm:$0xff]
      %v612 = vld [vmem:[%s443 + $0x8] sm:$0xff]
      %v613 = vld [vmem:[%s443 + $0x10] sm:$0xff]
      %v614 = vld [vmem:[%s443 + $0x18] sm:$0xff]
      %v615 = vld [vmem:[%s443 + $0x20] sm:$0xff]
      %v616 = vld [vmem:[%s443 + $0x28] sm:$0xff]
      %v617 = vld [vmem:[%s443 + $0x30] sm:$0xff]
      %v618 = vld [vmem:[%s443 + $0x38] sm:$0xff]
      %627 = vrot.lane.b32.xlu0 %v573, 96
      %v628 = vpop.permute.xlu0 %627
      %629 = vrot.lane.b32.xlu0 %v578, 96
      %v630 = vpop.permute.xlu0 %629
      %631 = vrot.lane.b32.xlu0 %v583, 96
      %v632 = vpop.permute.xlu0 %631
      %633 = vrot.lane.b32.xlu0 %v588, 96
      %v634 = vpop.permute.xlu0 %633
      %635 = vrot.lane.b32.xlu0 %v593, 96
      %v636 = vpop.permute.xlu0 %635
      %637 = vrot.lane.b32.xlu0 %v598, 96
      %v638 = vpop.permute.xlu0 %637
      %639 = vrot.lane.b32.xlu0 %v603, 96
      %v640 = vpop.permute.xlu0 %639
      %641 = vrot.lane.b32.xlu0 %v608, 96
      %v642 = vpop.permute.xlu0 %641
      %v643 = vsel %vm481, %v573, 0
      %v645 = vsel %vm481, %v578, 0
      %v647 = vsel %vm481, %v583, 0
      %v649 = vsel %vm481, %v588, 0
      %v651 = vsel %vm481, %v593, 0
      %v653 = vsel %vm481, %v598, 0
      %v655 = vsel %vm481, %v603, 0
      %v657 = vsel %vm481, %v608, 0
      %v659 = vsel %vm481, %v628, 0
      %v661 = vsel %vm481, %v630, 0
      %v663 = vsel %vm481, %v632, 0
      %v665 = vsel %vm481, %v634, 0
      %v667 = vsel %vm481, %v636, 0
      %v669 = vsel %vm481, %v638, 0
      %v671 = vsel %vm481, %v640, 0
      %v673 = vsel %vm481, %v642, 0
      %675 = vmatprep.subr.mxu0 0.0
      %676 = vmatpush1.xpose.msra.mxu0 %v659
      %677 = vmatprep.subr.mxu0 0.0
      %678 = vmatpush1.xpose.msra.mxu0 %v661
      %679 = vmatprep.subr.mxu0 0.0
      %680 = vmatpush1.xpose.msra.mxu0 %v663
      %681 = vmatprep.subr.mxu0 0.0
      %682 = vmatpush1.xpose.msra.mxu0 %v665
      %683 = vmatprep.subr.mxu0 0.0
      %684 = vmatpush1.xpose.msra.mxu0 %v667
      %685 = vmatprep.subr.mxu0 0.0
      %686 = vmatpush1.xpose.msra.mxu0 %v669
      %687 = vmatprep.subr.mxu0 0.0
      %688 = vmatpush1.xpose.msra.mxu0 %v671
      %689 = vmatprep.subr.mxu0 0.0
      %690 = vmatpush1.xpose.msra.mxu0 %v673
      %691 = vmatprep.subr.mxu0 0.0
      %692 = vmatpush1.xpose.msra.mxu0 0.0
      %693 = vmatprep.subr.mxu0 0.0
      %694 = vmatpush1.xpose.msra.mxu0 0.0
      %695 = vmatprep.subr.mxu0 0.0
      %696 = vmatpush1.xpose.msra.mxu0 0.0
      %697 = vmatprep.subr.mxu0 0.0
      %698 = vmatpush1.xpose.msra.mxu0 0.0
      %699 = vmatprep.subr.mxu0 0.0
      %700 = vmatpush1.xpose.msra.mxu0 0.0
      %701 = vmatprep.subr.mxu0 0.0
      %702 = vmatpush1.xpose.msra.mxu0 0.0
      %703 = vmatprep.subr.mxu0 0.0
      %704 = vmatpush1.xpose.msra.mxu0 0.0
      %705 = vmatprep.subr.mxu0 0.0
      %706 = vmatpush1.xpose.msra.mxu0 0.0
      %707 = vmatprep.subr.mxu0 0.0
      %708 = vmatpush1.xpose.msra.mxu0 0.0
      %709 = vmatprep.subr.mxu0 0.0
      %710 = vmatpush1.xpose.msra.mxu0 0.0
      %711 = vmatprep.subr.mxu0 0.0
      %712 = vmatpush1.xpose.msra.mxu0 0.0
      %713 = vmatprep.subr.mxu0 0.0
      %714 = vmatpush1.xpose.msra.mxu0 0.0
      %715 = vmatprep.subr.mxu0 0.0
      %716 = vmatpush1.xpose.msra.mxu0 0.0
      %717 = vmatprep.subr.mxu0 0.0
      %718 = vmatpush1.xpose.msra.mxu0 0.0
      %719 = vmatprep.subr.mxu0 0.0
      %720 = vmatpush1.xpose.msra.mxu0 0.0
      %721 = vmatprep.subr.mxu0 0.0
      %722 = vmatpush1.xpose.msra.mxu0 0.0
      %723 = vmatprep.subr.mxu0 0.0
      %724 = vmatpush1.xpose.msra.mxu0 0.0
      %725 = vmatprep.subr.mxu0 0.0
      %726 = vmatpush1.xpose.msra.mxu0 0.0
      %727 = vmatprep.subr.mxu0 0.0
      %728 = vmatpush1.xpose.msra.mxu0 0.0
      %729 = vmatprep.subr.mxu0 0.0
      %730 = vmatpush1.xpose.msra.mxu0 0.0
      %731 = vmatprep.subr.mxu0 0.0
      %732 = vmatpush1.xpose.msra.mxu0 0.0
      %733 = vmatprep.subr.mxu0 0.0
      %734 = vmatpush1.xpose.msra.mxu0 0.0
      %735 = vmatprep.subr.mxu0 0.0
      %736 = vmatpush1.xpose.msra.mxu0 0.0
      %737 = vmatprep.subr.mxu0 0.0
      %738 = vmatpush1.xpose.msra.mxu0 0.0
      %739 = vmatprep.mubr.f32.mxu0 0.0
      %740 = vmatmul.mubr.f32.gmra.mrb[0].mxu0 %v643
      %v741 = vpop.f32.mrb[0].mxu0
      %v742 = vadd.f32 %v611, %v741
      %v743 = vpop.f32.mrb[0].mxu0
      %744 = vmatprep.mubr.f32.mxu0 0.0
      %745 = vmatmul.mubr.f32.gmra.mrb[0].mxu0 %v645
      %v746 = vpop.f32.mrb[0].mxu0
      %v747 = vadd.f32 %v612, %v746
      %v748 = vpop.f32.mrb[0].mxu0
      %749 = vmatprep.mubr.f32.mxu0 0.0
      %750 = vmatmul.mubr.f32.gmra.mrb[0].mxu0 %v647
      %v751 = vpop.f32.mrb[0].mxu0
      %v752 = vadd.f32 %v613, %v751
      %v753 = vpop.f32.mrb[0].mxu0
      %754 = vmatprep.mubr.f32.mxu0 0.0
      %755 = vmatmul.mubr.f32.gmra.mrb[0].mxu0 %v649
      %v756 = vpop.f32.mrb[0].mxu0
      %v757 = vadd.f32 %v614, %v756
      %v758 = vpop.f32.mrb[0].mxu0
      %759 = vmatprep.mubr.f32.mxu0 0.0
      %760 = vmatmul.mubr.f32.gmra.mrb[0].mxu0 %v651
      %v761 = vpop.f32.mrb[0].mxu0
      %v762 = vadd.f32 %v615, %v761
      %v763 = vpop.f32.mrb[0].mxu0
      %764 = vmatprep.mubr.f32.mxu0 0.0
      %765 = vmatmul.mubr.f32.gmra.mrb[0].mxu0 %v653
      %v766 = vpop.f32.mrb[0].mxu0
      %v767 = vadd.f32 %v616, %v766
      %v768 = vpop.f32.mrb[0].mxu0
      %769 = vmatprep.mubr.f32.mxu0 0.0
      %770 = vmatmul.mubr.f32.gmra.mrb[0].mxu0 %v655
      %v771 = vpop.f32.mrb[0].mxu0
      %v772 = vadd.f32 %v617, %v771
      %v773 = vpop.f32.mrb[0].mxu0
      %774 = vmatprep.mubr.f32.mxu0 0.0
      %775 = vmatmul.mubr.f32.gmra.mrb[0].mxu0 %v657
      %v776 = vpop.f32.mrb[0].mxu0
      %v777 = vadd.f32 %v618, %v776
      %v778 = vpop.f32.mrb[0].mxu0
      %779 = vdwg.mxu0
      %vm780 = vcmask 523264
      %v781 = vsel %vm780, %v742, -inf
      %782 = vmax.xlane.f32.xlu0 %v781
      %v783 = vpop.xlane.xlu0 %782
      %v784 = vsel %vm780, %v747, -inf
      %785 = vmax.xlane.f32.xlu0 %v784
      %v786 = vpop.xlane.xlu0 %785
      %v787 = vsel %vm780, %v752, -inf
      %788 = vmax.xlane.f32.xlu0 %v787
      %v789 = vpop.xlane.xlu0 %788
      %v790 = vsel %vm780, %v757, -inf
      %791 = vmax.xlane.f32.xlu0 %v790
      %v792 = vpop.xlane.xlu0 %791
      %v793 = vsel %vm780, %v762, -inf
      %794 = vmax.xlane.f32.xlu0 %v793
      %v795 = vpop.xlane.xlu0 %794
      %v796 = vsel %vm780, %v767, -inf
      %797 = vmax.xlane.f32.xlu0 %v796
      %v798 = vpop.xlane.xlu0 %797
      %v799 = vsel %vm780, %v772, -inf
      %800 = vmax.xlane.f32.xlu0 %v799
      %v801 = vpop.xlane.xlu0 %800
      %v802 = vsel %vm780, %v777, -inf
      %803 = vmax.xlane.f32.xlu0 %v802
      %v804 = vpop.xlane.xlu0 %803
      %v805 = vsub.f32 %v742, %v783
      %v806 = vsub.f32 %v747, %v786
      %v807 = vsub.f32 %v752, %v789
      %v808 = vsub.f32 %v757, %v792
      %v809 = vsub.f32 %v762, %v795
      %v810 = vsub.f32 %v767, %v798
      %v811 = vsub.f32 %v772, %v801
      %v812 = vsub.f32 %v777, %v804
      %v813 = vmul.f32 %v805, 1.442695
      %v814 = vpow.pop %v813
      %v815 = vmul.f32 %v806, 1.442695
      %v816 = vpow.pop %v815
      %v817 = vmul.f32 %v807, 1.442695
      %v818 = vpow.pop %v817
      %v819 = vmul.f32 %v808, 1.442695
      %v820 = vpow.pop %v819
      %v821 = vmul.f32 %v809, 1.442695
      %v822 = vpow.pop %v821
      %v823 = vmul.f32 %v810, 1.442695
      %v824 = vpow.pop %v823
      %v825 = vmul.f32 %v811, 1.442695
      %v826 = vpow.pop %v825
      %v827 = vmul.f32 %v812, 1.442695
      %v828 = vpow.pop %v827
      %v829 = vsel %vm780, %v814, 0.0
      %830 = vadd.xlane.f32.xlu0 %v829
      %v831 = vpop.xlane.xlu0 %830
      %v832 = vsel %vm780, %v816, 0.0
      %833 = vadd.xlane.f32.xlu0 %v832
      %v834 = vpop.xlane.xlu0 %833
      %v835 = vsel %vm780, %v818, 0.0
      %836 = vadd.xlane.f32.xlu0 %v835
      %v837 = vpop.xlane.xlu0 %836
      %v838 = vsel %vm780, %v820, 0.0
      %839 = vadd.xlane.f32.xlu0 %v838
      %v840 = vpop.xlane.xlu0 %839
      %v841 = vsel %vm780, %v822, 0.0
      %842 = vadd.xlane.f32.xlu0 %v841
      %v843 = vpop.xlane.xlu0 %842
      %v844 = vsel %vm780, %v824, 0.0
      %845 = vadd.xlane.f32.xlu0 %v844
      %v846 = vpop.xlane.xlu0 %845
      %v847 = vsel %vm780, %v826, 0.0
      %848 = vadd.xlane.f32.xlu0 %v847
      %v849 = vpop.xlane.xlu0 %848
      %v850 = vsel %vm780, %v828, 0.0
      %851 = vadd.xlane.f32.xlu0 %v850
      %v852 = vpop.xlane.xlu0 %851
      %v853 = vrcp.pop %v831
      %v854 = vrcp.pop %v834
      %v855 = vrcp.pop %v837
      %v856 = vrcp.pop %v840
      %v857 = vrcp.pop %v843
      %v858 = vrcp.pop %v846
      %v859 = vrcp.pop %v849
      %v860 = vrcp.pop %v852
      %v861 = vmul.f32 %v814, %v853
      %v862 = vmul.f32 %v816, %v854
      %v863 = vmul.f32 %v818, %v855
      %v864 = vmul.f32 %v820, %v856
      %v865 = vmul.f32 %v822, %v857
      %v866 = vmul.f32 %v824, %v858
      %v867 = vmul.f32 %v826, %v859
      %v868 = vmul.f32 %v828, %v860
      %869 = vrot.lane.b32.xlu0 %v573, 64
      %v870 = vpop.permute.xlu0 %869
      %871 = vrot.lane.b32.xlu0 %v578, 64
      %v872 = vpop.permute.xlu0 %871
      %873 = vrot.lane.b32.xlu0 %v583, 64
      %v874 = vpop.permute.xlu0 %873
      %875 = vrot.lane.b32.xlu0 %v588, 64
      %v876 = vpop.permute.xlu0 %875
      %877 = vrot.lane.b32.xlu0 %v593, 64
      %v878 = vpop.permute.xlu0 %877
      %879 = vrot.lane.b32.xlu0 %v598, 64
      %v880 = vpop.permute.xlu0 %879
      %881 = vrot.lane.b32.xlu0 %v603, 64
      %v882 = vpop.permute.xlu0 %881
      %883 = vrot.lane.b32.xlu0 %v608, 64
      %v884 = vpop.permute.xlu0 %883
      %v894 = vsel %vm780, %v861, 0
      %v897 = vsel %vm780, %v862, 0
      %v900 = vsel %vm780, %v863, 0
      %v903 = vsel %vm780, %v864, 0
      %v906 = vsel %vm780, %v865, 0
      %v909 = vsel %vm780, %v866, 0
      %v912 = vsel %vm780, %v867, 0
      %v915 = vsel %vm780, %v868, 0
      %917 = vmatprep.subr.mxu0 0.0
      %918 = vmatpush1.msra.mxu0 %v870
      %919 = vmatprep.subr.mxu0 0.0
      %920 = vmatpush1.msra.mxu0 %v872
      %921 = vmatprep.subr.mxu0 0.0
      %922 = vmatpush1.msra.mxu0 %v874
      %923 = vmatprep.subr.mxu0 0.0
      %924 = vmatpush1.msra.mxu0 %v876
      %925 = vmatprep.subr.mxu0 0.0
      %926 = vmatpush1.msra.mxu0 %v878
      %927 = vmatprep.subr.mxu0 0.0
      %928 = vmatpush1.msra.mxu0 %v880
      %929 = vmatprep.subr.mxu0 0.0
      %930 = vmatpush1.msra.mxu0 %v882
      %931 = vmatprep.subr.mxu0 0.0
      %932 = vmatpush1.msra.mxu0 %v884
      %933 = vmatprep.subr.mxu0 0.0
      %934 = vmatpush1.msra.mxu0 0.0
      %935 = vmatprep.subr.mxu0 0.0
      %936 = vmatpush1.msra.mxu0 0.0
      %937 = vmatprep.subr.mxu0 0.0
      %938 = vmatpush1.msra.mxu0 0.0
      %939 = vmatprep.subr.mxu0 0.0
      %940 = vmatpush1.msra.mxu0 0.0
      %941 = vmatprep.subr.mxu0 0.0
      %942 = vmatpush1.msra.mxu0 0.0
      %943 = vmatprep.subr.mxu0 0.0
      %944 = vmatpush1.msra.mxu0 0.0
      %945 = vmatprep.subr.mxu0 0.0
      %946 = vmatpush1.msra.mxu0 0.0
      %947 = vmatprep.subr.mxu0 0.0
      %948 = vmatpush1.msra.mxu0 0.0
      %949 = vmatprep.subr.mxu0 0.0
      %950 = vmatpush1.msra.mxu0 0.0
      %951 = vmatprep.subr.mxu0 0.0
      %952 = vmatpush1.msra.mxu0 0.0
      %953 = vmatprep.subr.mxu0 0.0
      %954 = vmatpush1.msra.mxu0 0.0
      %955 = vmatprep.subr.mxu0 0.0
      %956 = vmatpush1.msra.mxu0 0.0
      %957 = vmatprep.subr.mxu0 0.0
      %958 = vmatpush1.msra.mxu0 0.0
      %959 = vmatprep.subr.mxu0 0.0
      %960 = vmatpush1.msra.mxu0 0.0
      %961 = vmatprep.subr.mxu0 0.0
      %962 = vmatpush1.msra.mxu0 0.0
      %963 = vmatprep.subr.mxu0 0.0
      %964 = vmatpush1.msra.mxu0 0.0
      %965 = vmatprep.subr.mxu0 0.0
      %966 = vmatpush1.msra.mxu0 0.0
      %967 = vmatprep.subr.mxu0 0.0
      %968 = vmatpush1.msra.mxu0 0.0
      %969 = vmatprep.subr.mxu0 0.0
      %970 = vmatpush1.msra.mxu0 0.0
      %971 = vmatprep.subr.mxu0 0.0
      %972 = vmatpush1.msra.mxu0 0.0
      %973 = vmatprep.subr.mxu0 0.0
      %974 = vmatpush1.msra.mxu0 0.0
      %975 = vmatprep.subr.mxu0 0.0
      %976 = vmatpush1.msra.mxu0 0.0
      %977 = vmatprep.subr.mxu0 0.0
      %978 = vmatpush1.msra.mxu0 0.0
      %979 = vmatprep.subr.mxu0 0.0
      %980 = vmatpush1.msra.mxu0 0.0
      %981 = vmatprep.mubr.f32.mxu0 0.0
      %982 = vmatmul.mubr.f32.gmra.mrb[0].mxu0 %v894
      %v983 = vpop.f32.mrb[0].mxu0
      %v984 = vadd.f32 0.0, %v983
      %v985 = vpop.f32.mrb[0].mxu0
      %986 = vmatprep.mubr.f32.mxu0 0.0
      %987 = vmatmul.mubr.f32.gmra.mrb[0].mxu0 %v897
      %v988 = vpop.f32.mrb[0].mxu0
      %v989 = vadd.f32 0.0, %v988
      %v990 = vpop.f32.mrb[0].mxu0
      %991 = vmatprep.mubr.f32.mxu0 0.0
      %992 = vmatmul.mubr.f32.gmra.mrb[0].mxu0 %v900
      %v993 = vpop.f32.mrb[0].mxu0
      %v994 = vadd.f32 0.0, %v993
      %v995 = vpop.f32.mrb[0].mxu0
      %996 = vmatprep.mubr.f32.mxu0 0.0
      %997 = vmatmul.mubr.f32.gmra.mrb[0].mxu0 %v903
      %v998 = vpop.f32.mrb[0].mxu0
      %v999 = vadd.f32 0.0, %v998
      %v1000 = vpop.f32.mrb[0].mxu0
      %1001 = vmatprep.mubr.f32.mxu0 0.0
      %1002 = vmatmul.mubr.f32.gmra.mrb[0].mxu0 %v906
      %v1003 = vpop.f32.mrb[0].mxu0
      %v1004 = vadd.f32 0.0, %v1003
      %v1005 = vpop.f32.mrb[0].mxu0
      %1006 = vmatprep.mubr.f32.mxu0 0.0
      %1007 = vmatmul.mubr.f32.gmra.mrb[0].mxu0 %v909
      %v1008 = vpop.f32.mrb[0].mxu0
      %v1009 = vadd.f32 0.0, %v1008
      %v1010 = vpop.f32.mrb[0].mxu0
      %1011 = vmatprep.mubr.f32.mxu0 0.0
      %1012 = vmatmul.mubr.f32.gmra.mrb[0].mxu0 %v912
      %v1013 = vpop.f32.mrb[0].mxu0
      %v1014 = vadd.f32 0.0, %v1013
      %v1015 = vpop.f32.mrb[0].mxu0
      %1016 = vmatprep.mubr.f32.mxu0 0.0
      %1017 = vmatmul.mubr.f32.gmra.mrb[0].mxu0 %v915
      %v1018 = vpop.f32.mrb[0].mxu0
      %v1019 = vadd.f32 0.0, %v1018
      %v1020 = vpop.f32.mrb[0].mxu0
      %1021 = vdwg.mxu0
      %s1022 = scalar_lea.vmem %s5, 32
      %v1023 = vld [vmem:[%s1022] sm:$0xff]
      %v1024 = vld [vmem:[%s1022 + $0x8] sm:$0xff]
      %v1025 = vld [vmem:[%s1022 + $0x10] sm:$0xff]
      %v1026 = vld [vmem:[%s1022 + $0x18] sm:$0xff]
      %v1027 = vlaneseq
      %v1028 = vshrl.u32 %v1027, 7
      %v1029 = vsub.s32 1, %v1028
      %v1030 = vrot.slane %v463, %v1029
      %v1032 = vsel %vm481, %v984, 0
      %v1035 = vsel %vm481, %v989, 0
      %v1038 = vsel %vm481, %v994, 0
      %v1041 = vsel %vm481, %v999, 0
      %v1044 = vsel %vm481, %v1004, 0
      %v1047 = vsel %vm481, %v1009, 0
      %v1050 = vsel %vm481, %v1014, 0
      %v1053 = vsel %vm481, %v1019, 0
      %1055 = vmatprep.subr.mxu0 0.0
      %1056 = vmatpush1.msra.mxu0 %v1023
      %1057 = vmatprep.subr.mxu0 0.0
      %1058 = vmatpush1.msra.mxu0 %v1024
      %1059 = vmatprep.subr.mxu0 0.0
      %1060 = vmatpush1.msra.mxu0 %v1025
      %1061 = vmatprep.subr.mxu0 0.0
      %1062 = vmatpush1.msra.mxu0 %v1026
      %1063 = vmatprep.subr.mxu0 0.0
      %1064 = vmatpush1.msra.mxu0 0.0
      %1065 = vmatprep.subr.mxu0 0.0
      %1066 = vmatpush1.msra.mxu0 0.0
      %1067 = vmatprep.subr.mxu0 0.0
      %1068 = vmatpush1.msra.mxu0 0.0
      %1069 = vmatprep.subr.mxu0 0.0
      %1070 = vmatpush1.msra.mxu0 0.0
      %1071 = vmatprep.subr.mxu0 0.0
      %1072 = vmatpush1.msra.mxu0 0.0
      %1073 = vmatprep.subr.mxu0 0.0
      %1074 = vmatpush1.msra.mxu0 0.0
      %1075 = vmatprep.subr.mxu0 0.0
      %1076 = vmatpush1.msra.mxu0 0.0
      %1077 = vmatprep.subr.mxu0 0.0
      %1078 = vmatpush1.msra.mxu0 0.0
      %1079 = vmatprep.subr.mxu0 0.0
      %1080 = vmatpush1.msra.mxu0 0.0
      %1081 = vmatprep.subr.mxu0 0.0
      %1082 = vmatpush1.msra.mxu0 0.0
      %1083 = vmatprep.subr.mxu0 0.0
      %1084 = vmatpush1.msra.mxu0 0.0
      %1085 = vmatprep.subr.mxu0 0.0
      %1086 = vmatpush1.msra.mxu0 0.0
      %1087 = vmatprep.subr.mxu0 0.0
      %1088 = vmatpush1.msra.mxu0 0.0
      %1089 = vmatprep.subr.mxu0 0.0
      %1090 = vmatpush1.msra.mxu0 0.0
      %1091 = vmatprep.subr.mxu0 0.0
      %1092 = vmatpush1.msra.mxu0 0.0
      %1093 = vmatprep.subr.mxu0 0.0
      %1094 = vmatpush1.msra.mxu0 0.0
      %1095 = vmatprep.subr.mxu0 0.0
      %1096 = vmatpush1.msra.mxu0 0.0
      %1097 = vmatprep.subr.mxu0 0.0
      %1098 = vmatpush1.msra.mxu0 0.0
      %1099 = vmatprep.subr.mxu0 0.0
      %1100 = vmatpush1.msra.mxu0 0.0
      %1101 = vmatprep.subr.mxu0 0.0
      %1102 = vmatpush1.msra.mxu0 0.0
      %1103 = vmatprep.subr.mxu0 0.0
      %1104 = vmatpush1.msra.mxu0 0.0
      %1105 = vmatprep.subr.mxu0 0.0
      %1106 = vmatpush1.msra.mxu0 0.0
      %1107 = vmatprep.subr.mxu0 0.0
      %1108 = vmatpush1.msra.mxu0 0.0
      %1109 = vmatprep.subr.mxu0 0.0
      %1110 = vmatpush1.msra.mxu0 0.0
      %1111 = vmatprep.subr.mxu0 0.0
      %1112 = vmatpush1.msra.mxu0 0.0
      %1113 = vmatprep.subr.mxu0 0.0
      %1114 = vmatpush1.msra.mxu0 0.0
      %1115 = vmatprep.subr.mxu0 0.0
      %1116 = vmatpush1.msra.mxu0 0.0
      %1117 = vmatprep.subr.mxu0 0.0
      %1118 = vmatpush1.msra.mxu0 0.0
      %1119 = vmatprep.mubr.f32.mxu0 0.0
      %1120 = vmatmul.mubr.f32.gmra.mrb[0].mxu0 %v1032
      %v1121 = vpop.f32.mrb[0].mxu0
      %v1122 = vadd.f32 %v1030, %v1121
      %v1123 = vpop.f32.mrb[0].mxu0
      %1124 = vmatprep.mubr.f32.mxu0 0.0
      %1125 = vmatmul.mubr.f32.gmra.mrb[0].mxu0 %v1035
      %v1126 = vpop.f32.mrb[0].mxu0
      %v1127 = vadd.f32 %v1030, %v1126
      %v1128 = vpop.f32.mrb[0].mxu0
      %1129 = vmatprep.mubr.f32.mxu0 0.0
      %1130 = vmatmul.mubr.f32.gmra.mrb[0].mxu0 %v1038
      %v1131 = vpop.f32.mrb[0].mxu0
      %v1132 = vadd.f32 %v1030, %v1131
      %v1133 = vpop.f32.mrb[0].mxu0
      %1134 = vmatprep.mubr.f32.mxu0 0.0
      %1135 = vmatmul.mubr.f32.gmra.mrb[0].mxu0 %v1041
      %v1136 = vpop.f32.mrb[0].mxu0
      %v1137 = vadd.f32 %v1030, %v1136
      %v1138 = vpop.f32.mrb[0].mxu0
      %1139 = vmatprep.mubr.f32.mxu0 0.0
      %1140 = vmatmul.mubr.f32.gmra.mrb[0].mxu0 %v1044
      %v1141 = vpop.f32.mrb[0].mxu0
      %v1142 = vadd.f32 %v1030, %v1141
      %v1143 = vpop.f32.mrb[0].mxu0
      %1144 = vmatprep.mubr.f32.mxu0 0.0
      %1145 = vmatmul.mubr.f32.gmra.mrb[0].mxu0 %v1047
      %v1146 = vpop.f32.mrb[0].mxu0
      %v1147 = vadd.f32 %v1030, %v1146
      %v1148 = vpop.f32.mrb[0].mxu0
      %1149 = vmatprep.mubr.f32.mxu0 0.0
      %1150 = vmatmul.mubr.f32.gmra.mrb[0].mxu0 %v1050
      %v1151 = vpop.f32.mrb[0].mxu0
      %v1152 = vadd.f32 %v1030, %v1151
      %v1153 = vpop.f32.mrb[0].mxu0
      %1154 = vmatprep.mubr.f32.mxu0 0.0
      %1155 = vmatmul.mubr.f32.gmra.mrb[0].mxu0 %v1053
      %v1156 = vpop.f32.mrb[0].mxu0
      %v1157 = vadd.f32 %v1030, %v1156
      %v1158 = vpop.f32.mrb[0].mxu0
      %1159 = vdwg.mxu0
      %v1160 = vadd.f32 %v465, %v1122
      %v1161 = vadd.f32 %v466, %v1127
      %v1162 = vadd.f32 %v467, %v1132
      %v1163 = vadd.f32 %v468, %v1137
      %v1164 = vadd.f32 %v469, %v1142
      %v1165 = vadd.f32 %v470, %v1147
      %v1166 = vadd.f32 %v471, %v1152
      %v1167 = vadd.f32 %v472, %v1157
      %v1168 = vsel %vm481, %v1160, 0.0
      %1169 = vadd.xlane.f32.xlu0 %v1168
      %v1170 = vpop.xlane.xlu0 %1169
      %v1171 = vsel %vm481, %v1161, 0.0
      %1172 = vadd.xlane.f32.xlu0 %v1171
      %v1173 = vpop.xlane.xlu0 %1172
      %v1174 = vsel %vm481, %v1162, 0.0
      %1175 = vadd.xlane.f32.xlu0 %v1174
      %v1176 = vpop.xlane.xlu0 %1175
      %v1177 = vsel %vm481, %v1163, 0.0
      %1178 = vadd.xlane.f32.xlu0 %v1177
      %v1179 = vpop.xlane.xlu0 %1178
      %v1180 = vsel %vm481, %v1164, 0.0
      %1181 = vadd.xlane.f32.xlu0 %v1180
      %v1182 = vpop.xlane.xlu0 %1181
      %v1183 = vsel %vm481, %v1165, 0.0
      %1184 = vadd.xlane.f32.xlu0 %v1183
      %v1185 = vpop.xlane.xlu0 %1184
      %v1186 = vsel %vm481, %v1166, 0.0
      %1187 = vadd.xlane.f32.xlu0 %v1186
      %v1188 = vpop.xlane.xlu0 %1187
      %v1189 = vsel %vm481, %v1167, 0.0
      %1190 = vadd.xlane.f32.xlu0 %v1189
      %v1191 = vpop.xlane.xlu0 %1190
      %v1192 = vrcp.pop 32.0
      %v1193 = vmul.f32 %v1170, %v1192
      %v1194 = vmul.f32 %v1173, %v1192
      %v1195 = vmul.f32 %v1176, %v1192
      %v1196 = vmul.f32 %v1179, %v1192
      %v1197 = vmul.f32 %v1182, %v1192
      %v1198 = vmul.f32 %v1185, %v1192
      %v1199 = vmul.f32 %v1188, %v1192
      %v1200 = vmul.f32 %v1191, %v1192
      %v1201 = vsub.f32 %v1160, %v1193
      %v1202 = vsub.f32 %v1161, %v1194
      %v1203 = vsub.f32 %v1162, %v1195
      %v1204 = vsub.f32 %v1163, %v1196
      %v1205 = vsub.f32 %v1164, %v1197
      %v1206 = vsub.f32 %v1165, %v1198
      %v1207 = vsub.f32 %v1166, %v1199
      %v1208 = vsub.f32 %v1167, %v1200
      %v1209 = vmul.f32 %v1201, %v1201
      %v1210 = vmul.f32 %v1202, %v1202
      %v1211 = vmul.f32 %v1203, %v1203
      %v1212 = vmul.f32 %v1204, %v1204
      %v1213 = vmul.f32 %v1205, %v1205
      %v1214 = vmul.f32 %v1206, %v1206
      %v1215 = vmul.f32 %v1207, %v1207
      %v1216 = vmul.f32 %v1208, %v1208
      %v1217 = vsel %vm481, %v1209, 0.0
      %1218 = vadd.xlane.f32.xlu0 %v1217
      %v1219 = vpop.xlane.xlu0 %1218
      %v1220 = vsel %vm481, %v1210, 0.0
      %1221 = vadd.xlane.f32.xlu0 %v1220
      %v1222 = vpop.xlane.xlu0 %1221
      %v1223 = vsel %vm481, %v1211, 0.0
      %1224 = vadd.xlane.f32.xlu0 %v1223
      %v1225 = vpop.xlane.xlu0 %1224
      %v1226 = vsel %vm481, %v1212, 0.0
      %1227 = vadd.xlane.f32.xlu0 %v1226
      %v1228 = vpop.xlane.xlu0 %1227
      %v1229 = vsel %vm481, %v1213, 0.0
      %1230 = vadd.xlane.f32.xlu0 %v1229
      %v1231 = vpop.xlane.xlu0 %1230
      %v1232 = vsel %vm481, %v1214, 0.0
      %1233 = vadd.xlane.f32.xlu0 %v1232
      %v1234 = vpop.xlane.xlu0 %1233
      %v1235 = vsel %vm481, %v1215, 0.0
      %1236 = vadd.xlane.f32.xlu0 %v1235
      %v1237 = vpop.xlane.xlu0 %1236
      %v1238 = vsel %vm481, %v1216, 0.0
      %1239 = vadd.xlane.f32.xlu0 %v1238
      %v1240 = vpop.xlane.xlu0 %1239
      %v1241 = vmul.f32 %v1219, %v1192
      %v1242 = vmul.f32 %v1222, %v1192
      %v1243 = vmul.f32 %v1225, %v1192
      %v1244 = vmul.f32 %v1228, %v1192
      %v1245 = vmul.f32 %v1231, %v1192
      %v1246 = vmul.f32 %v1234, %v1192
      %v1247 = vmul.f32 %v1237, %v1192
      %v1248 = vmul.f32 %v1240, %v1192
      %v1249 = vadd.f32 %v1241, 1e-05
      %v1250 = vadd.f32 %v1242, 1e-05
      %v1251 = vadd.f32 %v1243, 1e-05
      %v1252 = vadd.f32 %v1244, 1e-05
      %v1253 = vadd.f32 %v1245, 1e-05
      %v1254 = vadd.f32 %v1246, 1e-05
      %v1255 = vadd.f32 %v1247, 1e-05
      %v1256 = vadd.f32 %v1248, 1e-05
      %v1257 = vrsqrt.pop %v1249
      %v1258 = vrsqrt.pop %v1250
      %v1259 = vrsqrt.pop %v1251
      %v1260 = vrsqrt.pop %v1252
      %v1261 = vrsqrt.pop %v1253
      %v1262 = vrsqrt.pop %v1254
      %v1263 = vrsqrt.pop %v1255
      %v1264 = vrsqrt.pop %v1256
      %v1265 = vmul.f32 %v1201, %v1257
      %v1266 = vmul.f32 %v1202, %v1258
      %v1267 = vmul.f32 %v1203, %v1259
      %v1268 = vmul.f32 %v1204, %v1260
      %v1269 = vmul.f32 %v1205, %v1261
      %v1270 = vmul.f32 %v1206, %v1262
      %v1271 = vmul.f32 %v1207, %v1263
      %v1272 = vmul.f32 %v1208, %v1264
      %v1273 = vlaneseq
      %v1274 = vshrl.u32 %v1273, 7
      %v1275 = vsub.s32 4, %v1274
      %v1276 = vrot.slane %v463, %v1275
      %v1277 = vmul.f32 %v1265, %v1276
      %v1278 = vmul.f32 %v1266, %v1276
      %v1279 = vmul.f32 %v1267, %v1276
      %v1280 = vmul.f32 %v1268, %v1276
      %v1281 = vmul.f32 %v1269, %v1276
      %v1282 = vmul.f32 %v1270, %v1276
      %v1283 = vmul.f32 %v1271, %v1276
      %v1284 = vmul.f32 %v1272, %v1276
      %v1285 = vlaneseq
      %v1286 = vshrl.u32 %v1285, 7
      %v1287 = vsub.s32 5, %v1286
      %v1288 = vrot.slane %v463, %v1287
      %v1289 = vadd.f32 %v1277, %v1288
      %v1290 = vadd.f32 %v1278, %v1288
      %v1291 = vadd.f32 %v1279, %v1288
      %v1292 = vadd.f32 %v1280, %v1288
      %v1293 = vadd.f32 %v1281, %v1288
      %v1294 = vadd.f32 %v1282, %v1288
      %v1295 = vadd.f32 %v1283, %v1288
      %v1296 = vadd.f32 %v1284, %v1288
      %s1297 = scalar_lea.vmem %s5, 64
      %v1298 = vld [vmem:[%s1297] sm:$0xff]
      %v1299 = vld [vmem:[%s1297 + $0x8] sm:$0xff]
      %v1300 = vld [vmem:[%s1297 + $0x10] sm:$0xff]
      %v1301 = vld [vmem:[%s1297 + $0x18] sm:$0xff]
      %v1302 = vlaneseq
      %v1303 = vshrl.u32 %v1302, 7
      %v1304 = vsub.s32 2, %v1303
      %v1305 = vrot.slane %v463, %v1304
      %v1307 = vsel %vm481, %v1289, 0
      %v1310 = vsel %vm481, %v1290, 0
      %v1313 = vsel %vm481, %v1291, 0
      %v1316 = vsel %vm481, %v1292, 0
      %v1319 = vsel %vm481, %v1293, 0
      %v1322 = vsel %vm481, %v1294, 0
      %v1325 = vsel %vm481, %v1295, 0
      %v1328 = vsel %vm481, %v1296, 0
      %1330 = vmatprep.subr.mxu0 0.0
      %1331 = vmatpush1.msra.mxu0 %v1298
      %1332 = vmatprep.subr.mxu0 0.0
      %1333 = vmatpush1.msra.mxu0 %v1299
      %1334 = vmatprep.subr.mxu0 0.0
      %1335 = vmatpush1.msra.mxu0 %v1300
      %1336 = vmatprep.subr.mxu0 0.0
      %1337 = vmatpush1.msra.mxu0 %v1301
      %1338 = vmatprep.subr.mxu0 0.0
      %1339 = vmatpush1.msra.mxu0 0.0
      %1340 = vmatprep.subr.mxu0 0.0
      %1341 = vmatpush1.msra.mxu0 0.0
      %1342 = vmatprep.subr.mxu0 0.0
      %1343 = vmatpush1.msra.mxu0 0.0
      %1344 = vmatprep.subr.mxu0 0.0
      %1345 = vmatpush1.msra.mxu0 0.0
      %1346 = vmatprep.subr.mxu0 0.0
      %1347 = vmatpush1.msra.mxu0 0.0
      %1348 = vmatprep.subr.mxu0 0.0
      %1349 = vmatpush1.msra.mxu0 0.0
      %1350 = vmatprep.subr.mxu0 0.0
      %1351 = vmatpush1.msra.mxu0 0.0
      %1352 = vmatprep.subr.mxu0 0.0
      %1353 = vmatpush1.msra.mxu0 0.0
      %1354 = vmatprep.subr.mxu0 0.0
      %1355 = vmatpush1.msra.mxu0 0.0
      %1356 = vmatprep.subr.mxu0 0.0
      %1357 = vmatpush1.msra.mxu0 0.0
      %1358 = vmatprep.subr.mxu0 0.0
      %1359 = vmatpush1.msra.mxu0 0.0
      %1360 = vmatprep.subr.mxu0 0.0
      %1361 = vmatpush1.msra.mxu0 0.0
      %1362 = vmatprep.subr.mxu0 0.0
      %1363 = vmatpush1.msra.mxu0 0.0
      %1364 = vmatprep.subr.mxu0 0.0
      %1365 = vmatpush1.msra.mxu0 0.0
      %1366 = vmatprep.subr.mxu0 0.0
      %1367 = vmatpush1.msra.mxu0 0.0
      %1368 = vmatprep.subr.mxu0 0.0
      %1369 = vmatpush1.msra.mxu0 0.0
      %1370 = vmatprep.subr.mxu0 0.0
      %1371 = vmatpush1.msra.mxu0 0.0
      %1372 = vmatprep.subr.mxu0 0.0
      %1373 = vmatpush1.msra.mxu0 0.0
      %1374 = vmatprep.subr.mxu0 0.0
      %1375 = vmatpush1.msra.mxu0 0.0
      %1376 = vmatprep.subr.mxu0 0.0
      %1377 = vmatpush1.msra.mxu0 0.0
      %1378 = vmatprep.subr.mxu0 0.0
      %1379 = vmatpush1.msra.mxu0 0.0
      %1380 = vmatprep.subr.mxu0 0.0
      %1381 = vmatpush1.msra.mxu0 0.0
      %1382 = vmatprep.subr.mxu0 0.0
      %1383 = vmatpush1.msra.mxu0 0.0
      %1384 = vmatprep.subr.mxu0 0.0
      %1385 = vmatpush1.msra.mxu0 0.0
      %1386 = vmatprep.subr.mxu0 0.0
      %1387 = vmatpush1.msra.mxu0 0.0
      %1388 = vmatprep.subr.mxu0 0.0
      %1389 = vmatpush1.msra.mxu0 0.0
      %1390 = vmatprep.subr.mxu0 0.0
      %1391 = vmatpush1.msra.mxu0 0.0
      %1392 = vmatprep.subr.mxu0 0.0
      %1393 = vmatpush1.msra.mxu0 0.0
      %1394 = vmatprep.mubr.f32.mxu0 0.0
      %1395 = vmatmul.mubr.f32.gmra.mrb[0].mxu0 %v1307
      %v1396 = vpop.f32.mrb[0].mxu0
      %v1397 = vadd.f32 %v1305, %v1396
      %v1398 = vpop.f32.mrb[0].mxu0
      %1399 = vmatprep.mubr.f32.mxu0 0.0
      %1400 = vmatmul.mubr.f32.gmra.mrb[0].mxu0 %v1310
      %v1401 = vpop.f32.mrb[0].mxu0
      %v1402 = vadd.f32 %v1305, %v1401
      %v1403 = vpop.f32.mrb[0].mxu0
      %1404 = vmatprep.mubr.f32.mxu0 0.0
      %1405 = vmatmul.mubr.f32.gmra.mrb[0].mxu0 %v1313
      %v1406 = vpop.f32.mrb[0].mxu0
      %v1407 = vadd.f32 %v1305, %v1406
      %v1408 = vpop.f32.mrb[0].mxu0
      %1409 = vmatprep.mubr.f32.mxu0 0.0
      %1410 = vmatmul.mubr.f32.gmra.mrb[0].mxu0 %v1316
      %v1411 = vpop.f32.mrb[0].mxu0
      %v1412 = vadd.f32 %v1305, %v1411
      %v1413 = vpop.f32.mrb[0].mxu0
      %1414 = vmatprep.mubr.f32.mxu0 0.0
      %1415 = vmatmul.mubr.f32.gmra.mrb[0].mxu0 %v1319
      %v1416 = vpop.f32.mrb[0].mxu0
      %v1417 = vadd.f32 %v1305, %v1416
      %v1418 = vpop.f32.mrb[0].mxu0
      %1419 = vmatprep.mubr.f32.mxu0 0.0
      %1420 = vmatmul.mubr.f32.gmra.mrb[0].mxu0 %v1322
      %v1421 = vpop.f32.mrb[0].mxu0
      %v1422 = vadd.f32 %v1305, %v1421
      %v1423 = vpop.f32.mrb[0].mxu0
      %1424 = vmatprep.mubr.f32.mxu0 0.0
      %1425 = vmatmul.mubr.f32.gmra.mrb[0].mxu0 %v1325
      %v1426 = vpop.f32.mrb[0].mxu0
      %v1427 = vadd.f32 %v1305, %v1426
      %v1428 = vpop.f32.mrb[0].mxu0
      %1429 = vmatprep.mubr.f32.mxu0 0.0
      %1430 = vmatmul.mubr.f32.gmra.mrb[0].mxu0 %v1328
      %v1431 = vpop.f32.mrb[0].mxu0
      %v1432 = vadd.f32 %v1305, %v1431
      %v1433 = vpop.f32.mrb[0].mxu0
      %1434 = vdwg.mxu0
      %v1435 = vmax.f32 %v1397, 0.0
      %v1436 = vmax.f32 %v1402, 0.0
      %v1437 = vmax.f32 %v1407, 0.0
      %v1438 = vmax.f32 %v1412, 0.0
      %v1439 = vmax.f32 %v1417, 0.0
      %v1440 = vmax.f32 %v1422, 0.0
      %v1441 = vmax.f32 %v1427, 0.0
      %v1442 = vmax.f32 %v1432, 0.0
      %v1443 = vld [vmem:[%s6] sm:$0xff]
      %v1444 = vld [vmem:[%s6 + $0x8] sm:$0xff]
      %v1445 = vld [vmem:[%s6 + $0x10] sm:$0xff]
      %v1446 = vld [vmem:[%s6 + $0x18] sm:$0xff]
      %v1447 = vld [vmem:[%s6 + $0x20] sm:$0xff]
      %v1448 = vld [vmem:[%s6 + $0x28] sm:$0xff]
      %v1449 = vld [vmem:[%s6 + $0x30] sm:$0xff]
      %v1450 = vld [vmem:[%s6 + $0x38] sm:$0xff]
      %v1451 = vld [vmem:[%s6 + $0x40] sm:$0xff]
      %v1452 = vld [vmem:[%s6 + $0x48] sm:$0xff]
      %v1453 = vld [vmem:[%s6 + $0x50] sm:$0xff]
      %v1454 = vld [vmem:[%s6 + $0x58] sm:$0xff]
      %v1455 = vld [vmem:[%s6 + $0x60] sm:$0xff]
      %v1456 = vld [vmem:[%s6 + $0x68] sm:$0xff]
      %v1457 = vld [vmem:[%s6 + $0x70] sm:$0xff]
      %v1458 = vld [vmem:[%s6 + $0x78] sm:$0xff]
      %v1459 = vlaneseq
      %v1460 = vshrl.u32 %v1459, 7
      %v1461 = vsub.s32 3, %v1460
      %v1462 = vrot.slane %v463, %v1461
      %1463 = vmatprep.subr.mxu0 0.0
      %1464 = vmatpush1.msra.mxu0 %v1443
      %1465 = vmatprep.subr.mxu0 0.0
      %1466 = vmatpush1.msra.mxu0 %v1444
      %1467 = vmatprep.subr.mxu0 0.0
      %1468 = vmatpush1.msra.mxu0 %v1445
      %1469 = vmatprep.subr.mxu0 0.0
      %1470 = vmatpush1.msra.mxu0 %v1446
      %1471 = vmatprep.subr.mxu0 0.0
      %1472 = vmatpush1.msra.mxu0 %v1447
      %1473 = vmatprep.subr.mxu0 0.0
      %1474 = vmatpush1.msra.mxu0 %v1448
      %1475 = vmatprep.subr.mxu0 0.0
      %1476 = vmatpush1.msra.mxu0 %v1449
      %1477 = vmatprep.subr.mxu0 0.0
      %1478 = vmatpush1.msra.mxu0 %v1450
      %1479 = vmatprep.subr.mxu0 0.0
      %1480 = vmatpush1.msra.mxu0 %v1451
      %1481 = vmatprep.subr.mxu0 0.0
      %1482 = vmatpush1.msra.mxu0 %v1452
      %1483 = vmatprep.subr.mxu0 0.0
      %1484 = vmatpush1.msra.mxu0 %v1453
      %1485 = vmatprep.subr.mxu0 0.0
      %1486 = vmatpush1.msra.mxu0 %v1454
      %1487 = vmatprep.subr.mxu0 0.0
      %1488 = vmatpush1.msra.mxu0 %v1455
      %1489 = vmatprep.subr.mxu0 0.0
      %1490 = vmatpush1.msra.mxu0 %v1456
      %1491 = vmatprep.subr.mxu0 0.0
      %1492 = vmatpush1.msra.mxu0 %v1457
      %1493 = vmatprep.subr.mxu0 0.0
      %1494 = vmatpush1.msra.mxu0 %v1458
      %1495 = vmatprep.subr.mxu0 0.0
      %1496 = vmatpush1.msra.mxu0 0.0
      %1497 = vmatprep.subr.mxu0 0.0
      %1498 = vmatpush1.msra.mxu0 0.0
      %1499 = vmatprep.subr.mxu0 0.0
      %1500 = vmatpush1.msra.mxu0 0.0
      %1501 = vmatprep.subr.mxu0 0.0
      %1502 = vmatpush1.msra.mxu0 0.0
      %1503 = vmatprep.subr.mxu0 0.0
      %1504 = vmatpush1.msra.mxu0 0.0
      %1505 = vmatprep.subr.mxu0 0.0
      %1506 = vmatpush1.msra.mxu0 0.0
      %1507 = vmatprep.subr.mxu0 0.0
      %1508 = vmatpush1.msra.mxu0 0.0
      %1509 = vmatprep.subr.mxu0 0.0
      %1510 = vmatpush1.msra.mxu0 0.0
      %1511 = vmatprep.subr.mxu0 0.0
      %1512 = vmatpush1.msra.mxu0 0.0
      %1513 = vmatprep.subr.mxu0 0.0
      %1514 = vmatpush1.msra.mxu0 0.0
      %1515 = vmatprep.subr.mxu0 0.0
      %1516 = vmatpush1.msra.mxu0 0.0
      %1517 = vmatprep.subr.mxu0 0.0
      %1518 = vmatpush1.msra.mxu0 0.0
      %1519 = vmatprep.subr.mxu0 0.0
      %1520 = vmatpush1.msra.mxu0 0.0
      %1521 = vmatprep.subr.mxu0 0.0
      %1522 = vmatpush1.msra.mxu0 0.0
      %1523 = vmatprep.subr.mxu0 0.0
      %1524 = vmatpush1.msra.mxu0 0.0
      %1525 = vmatprep.subr.mxu0 0.0
      %1526 = vmatpush1.msra.mxu0 0.0
      %1527 = vmatprep.mubr.f32.mxu0 0.0
      %1528 = vmatmul.mubr.f32.gmra.mrb[0].mxu0 %v1435
      %v1529 = vpop.f32.mrb[0].mxu0
      %v1530 = vadd.f32 %v1462, %v1529
      %v1531 = vpop.f32.mrb[0].mxu0
      %1532 = vmatprep.mubr.f32.mxu0 0.0
      %1533 = vmatmul.mubr.f32.gmra.mrb[0].mxu0 %v1436
      %v1534 = vpop.f32.mrb[0].mxu0
      %v1535 = vadd.f32 %v1462, %v1534
      %v1536 = vpop.f32.mrb[0].mxu0
      %1537 = vmatprep.mubr.f32.mxu0 0.0
      %1538 = vmatmul.mubr.f32.gmra.mrb[0].mxu0 %v1437
      %v1539 = vpop.f32.mrb[0].mxu0
      %v1540 = vadd.f32 %v1462, %v1539
      %v1541 = vpop.f32.mrb[0].mxu0
      %1542 = vmatprep.mubr.f32.mxu0 0.0
      %1543 = vmatmul.mubr.f32.gmra.mrb[0].mxu0 %v1438
      %v1544 = vpop.f32.mrb[0].mxu0
      %v1545 = vadd.f32 %v1462, %v1544
      %v1546 = vpop.f32.mrb[0].mxu0
      %1547 = vmatprep.mubr.f32.mxu0 0.0
      %1548 = vmatmul.mubr.f32.gmra.mrb[0].mxu0 %v1439
      %v1549 = vpop.f32.mrb[0].mxu0
      %v1550 = vadd.f32 %v1462, %v1549
      %v1551 = vpop.f32.mrb[0].mxu0
      %1552 = vmatprep.mubr.f32.mxu0 0.0
      %1553 = vmatmul.mubr.f32.gmra.mrb[0].mxu0 %v1440
      %v1554 = vpop.f32.mrb[0].mxu0
      %v1555 = vadd.f32 %v1462, %v1554
      %v1556 = vpop.f32.mrb[0].mxu0
      %1557 = vmatprep.mubr.f32.mxu0 0.0
      %1558 = vmatmul.mubr.f32.gmra.mrb[0].mxu0 %v1441
      %v1559 = vpop.f32.mrb[0].mxu0
      %v1560 = vadd.f32 %v1462, %v1559
      %v1561 = vpop.f32.mrb[0].mxu0
      %1562 = vmatprep.mubr.f32.mxu0 0.0
      %1563 = vmatmul.mubr.f32.gmra.mrb[0].mxu0 %v1442
      %v1564 = vpop.f32.mrb[0].mxu0
      %v1565 = vadd.f32 %v1462, %v1564
      %v1566 = vpop.f32.mrb[0].mxu0
      %1567 = vdwg.mxu0
      %v1568 = vadd.f32 %v1289, %v1530
      %v1569 = vadd.f32 %v1290, %v1535
      %v1570 = vadd.f32 %v1291, %v1540
      %v1571 = vadd.f32 %v1292, %v1545
      %v1572 = vadd.f32 %v1293, %v1550
      %v1573 = vadd.f32 %v1294, %v1555
      %v1574 = vadd.f32 %v1295, %v1560
      %v1575 = vadd.f32 %v1296, %v1565
      %v1576 = vsel %vm481, %v1568, 0.0
      %1577 = vadd.xlane.f32.xlu0 %v1576
      %v1578 = vpop.xlane.xlu0 %1577
      %v1579 = vsel %vm481, %v1569, 0.0
      %1580 = vadd.xlane.f32.xlu0 %v1579
      %v1581 = vpop.xlane.xlu0 %1580
      %v1582 = vsel %vm481, %v1570, 0.0
      %1583 = vadd.xlane.f32.xlu0 %v1582
      %v1584 = vpop.xlane.xlu0 %1583
      %v1585 = vsel %vm481, %v1571, 0.0
      %1586 = vadd.xlane.f32.xlu0 %v1585
      %v1587 = vpop.xlane.xlu0 %1586
      %v1588 = vsel %vm481, %v1572, 0.0
      %1589 = vadd.xlane.f32.xlu0 %v1588
      %v1590 = vpop.xlane.xlu0 %1589
      %v1591 = vsel %vm481, %v1573, 0.0
      %1592 = vadd.xlane.f32.xlu0 %v1591
      %v1593 = vpop.xlane.xlu0 %1592
      %v1594 = vsel %vm481, %v1574, 0.0
      %1595 = vadd.xlane.f32.xlu0 %v1594
      %v1596 = vpop.xlane.xlu0 %1595
      %v1597 = vsel %vm481, %v1575, 0.0
      %1598 = vadd.xlane.f32.xlu0 %v1597
      %v1599 = vpop.xlane.xlu0 %1598
      %v1600 = vmul.f32 %v1578, %v1192
      %v1601 = vmul.f32 %v1581, %v1192
      %v1602 = vmul.f32 %v1584, %v1192
      %v1603 = vmul.f32 %v1587, %v1192
      %v1604 = vmul.f32 %v1590, %v1192
      %v1605 = vmul.f32 %v1593, %v1192
      %v1606 = vmul.f32 %v1596, %v1192
      %v1607 = vmul.f32 %v1599, %v1192
      %v1608 = vsub.f32 %v1568, %v1600
      %v1609 = vsub.f32 %v1569, %v1601
      %v1610 = vsub.f32 %v1570, %v1602
      %v1611 = vsub.f32 %v1571, %v1603
      %v1612 = vsub.f32 %v1572, %v1604
      %v1613 = vsub.f32 %v1573, %v1605
      %v1614 = vsub.f32 %v1574, %v1606
      %v1615 = vsub.f32 %v1575, %v1607
      %v1616 = vmul.f32 %v1608, %v1608
      %v1617 = vmul.f32 %v1609, %v1609
      %v1618 = vmul.f32 %v1610, %v1610
      %v1619 = vmul.f32 %v1611, %v1611
      %v1620 = vmul.f32 %v1612, %v1612
      %v1621 = vmul.f32 %v1613, %v1613
      %v1622 = vmul.f32 %v1614, %v1614
      %v1623 = vmul.f32 %v1615, %v1615
      %v1624 = vsel %vm481, %v1616, 0.0
      %1625 = vadd.xlane.f32.xlu0 %v1624
      %v1626 = vpop.xlane.xlu0 %1625
      %v1627 = vsel %vm481, %v1617, 0.0
      %1628 = vadd.xlane.f32.xlu0 %v1627
      %v1629 = vpop.xlane.xlu0 %1628
      %v1630 = vsel %vm481, %v1618, 0.0
      %1631 = vadd.xlane.f32.xlu0 %v1630
      %v1632 = vpop.xlane.xlu0 %1631
      %v1633 = vsel %vm481, %v1619, 0.0
      %1634 = vadd.xlane.f32.xlu0 %v1633
      %v1635 = vpop.xlane.xlu0 %1634
      %v1636 = vsel %vm481, %v1620, 0.0
      %1637 = vadd.xlane.f32.xlu0 %v1636
      %v1638 = vpop.xlane.xlu0 %1637
      %v1639 = vsel %vm481, %v1621, 0.0
      %1640 = vadd.xlane.f32.xlu0 %v1639
      %v1641 = vpop.xlane.xlu0 %1640
      %v1642 = vsel %vm481, %v1622, 0.0
      %1643 = vadd.xlane.f32.xlu0 %v1642
      %v1644 = vpop.xlane.xlu0 %1643
      %v1645 = vsel %vm481, %v1623, 0.0
      %1646 = vadd.xlane.f32.xlu0 %v1645
      %v1647 = vpop.xlane.xlu0 %1646
      %v1648 = vmul.f32 %v1626, %v1192
      %v1649 = vmul.f32 %v1629, %v1192
      %v1650 = vmul.f32 %v1632, %v1192
      %v1651 = vmul.f32 %v1635, %v1192
      %v1652 = vmul.f32 %v1638, %v1192
      %v1653 = vmul.f32 %v1641, %v1192
      %v1654 = vmul.f32 %v1644, %v1192
      %v1655 = vmul.f32 %v1647, %v1192
      %v1656 = vadd.f32 %v1648, 1e-05
      %v1657 = vadd.f32 %v1649, 1e-05
      %v1658 = vadd.f32 %v1650, 1e-05
      %v1659 = vadd.f32 %v1651, 1e-05
      %v1660 = vadd.f32 %v1652, 1e-05
      %v1661 = vadd.f32 %v1653, 1e-05
      %v1662 = vadd.f32 %v1654, 1e-05
      %v1663 = vadd.f32 %v1655, 1e-05
      %v1664 = vrsqrt.pop %v1656
      %v1665 = vrsqrt.pop %v1657
      %v1666 = vrsqrt.pop %v1658
      %v1667 = vrsqrt.pop %v1659
      %v1668 = vrsqrt.pop %v1660
      %v1669 = vrsqrt.pop %v1661
      %v1670 = vrsqrt.pop %v1662
      %v1671 = vrsqrt.pop %v1663
      %v1672 = vmul.f32 %v1608, %v1664
      %v1673 = vmul.f32 %v1609, %v1665
      %v1674 = vmul.f32 %v1610, %v1666
      %v1675 = vmul.f32 %v1611, %v1667
      %v1676 = vmul.f32 %v1612, %v1668
      %v1677 = vmul.f32 %v1613, %v1669
      %v1678 = vmul.f32 %v1614, %v1670
      %v1679 = vmul.f32 %v1615, %v1671
      %v1680 = vlaneseq
      %v1681 = vshrl.u32 %v1680, 7
      %v1682 = vsub.s32 6, %v1681
      %v1683 = vrot.slane %v463, %v1682
      %v1684 = vmul.f32 %v1672, %v1683
      %v1685 = vmul.f32 %v1673, %v1683
      %v1686 = vmul.f32 %v1674, %v1683
      %v1687 = vmul.f32 %v1675, %v1683
      %v1688 = vmul.f32 %v1676, %v1683
      %v1689 = vmul.f32 %v1677, %v1683
      %v1690 = vmul.f32 %v1678, %v1683
      %v1691 = vmul.f32 %v1679, %v1683
      %v1692 = vlaneseq
      %v1693 = vshrl.u32 %v1692, 7
      %v1694 = vsub.s32 7, %v1693
      %v1695 = vrot.slane %v463, %v1694
      %v1696 = vadd.f32 %v1684, %v1695
      %v1697 = vadd.f32 %v1685, %v1695
      %v1698 = vadd.f32 %v1686, %v1695
      %v1699 = vadd.f32 %v1687, %v1695
      %v1700 = vadd.f32 %v1688, %v1695
      %v1701 = vadd.f32 %v1689, %v1695
      %v1702 = vadd.f32 %v1690, %v1695
      %v1703 = vadd.f32 %v1691, %v1695
      %v1704 = vsel %vm481, %v1696, 0.0
      %v1705 = vrot.slane %v1704, 4
      %v1706 = vadd.f32 %v1704, %v1705
      %v1707 = vrot.slane %v1706, 2
      %v1708 = vadd.f32 %v1706, %v1707
      %v1709 = vrot.slane %v1708, 1
      %v1710 = vadd.f32 %v1708, %v1709
      %v1711 = vsel %vm481, %v1697, 0.0
      %v1712 = vrot.slane %v1711, 4
      %v1713 = vadd.f32 %v1711, %v1712
      %v1714 = vrot.slane %v1713, 2
      %v1715 = vadd.f32 %v1713, %v1714
      %v1716 = vrot.slane %v1715, 1
      %v1717 = vadd.f32 %v1715, %v1716
      %v1718 = vsel %vm481, %v1698, 0.0
      %v1719 = vrot.slane %v1718, 4
      %v1720 = vadd.f32 %v1718, %v1719
      %v1721 = vrot.slane %v1720, 2
      %v1722 = vadd.f32 %v1720, %v1721
      %v1723 = vrot.slane %v1722, 1
      %v1724 = vadd.f32 %v1722, %v1723
      %v1725 = vsel %vm481, %v1699, 0.0
      %v1726 = vrot.slane %v1725, 4
      %v1727 = vadd.f32 %v1725, %v1726
      %v1728 = vrot.slane %v1727, 2
      %v1729 = vadd.f32 %v1727, %v1728
      %v1730 = vrot.slane %v1729, 1
      %v1731 = vadd.f32 %v1729, %v1730
      %v1732 = vsel %vm481, %v1700, 0.0
      %v1733 = vrot.slane %v1732, 4
      %v1734 = vadd.f32 %v1732, %v1733
      %v1735 = vrot.slane %v1734, 2
      %v1736 = vadd.f32 %v1734, %v1735
      %v1737 = vrot.slane %v1736, 1
      %v1738 = vadd.f32 %v1736, %v1737
      %v1739 = vsel %vm481, %v1701, 0.0
      %v1740 = vrot.slane %v1739, 4
      %v1741 = vadd.f32 %v1739, %v1740
      %v1742 = vrot.slane %v1741, 2
      %v1743 = vadd.f32 %v1741, %v1742
      %v1744 = vrot.slane %v1743, 1
      %v1745 = vadd.f32 %v1743, %v1744
      %v1746 = vsel %vm481, %v1702, 0.0
      %v1747 = vrot.slane %v1746, 4
      %v1748 = vadd.f32 %v1746, %v1747
      %v1749 = vrot.slane %v1748, 2
      %v1750 = vadd.f32 %v1748, %v1749
      %v1751 = vrot.slane %v1750, 1
      %v1752 = vadd.f32 %v1750, %v1751
      %v1753 = vsel %vm481, %v1703, 0.0
      %v1754 = vrot.slane %v1753, 4
      %v1755 = vadd.f32 %v1753, %v1754
      %v1756 = vrot.slane %v1755, 2
      %v1757 = vadd.f32 %v1755, %v1756
      %v1758 = vrot.slane %v1757, 1
      %v1759 = vadd.f32 %v1757, %v1758
      %v1760 = vrcp.pop 8.0
      %v1761 = vmul.f32 %v1710, %v1760
      %v1762 = vmul.f32 %v1717, %v1760
      %v1763 = vmul.f32 %v1724, %v1760
      %v1764 = vmul.f32 %v1731, %v1760
      %v1765 = vmul.f32 %v1738, %v1760
      %v1766 = vmul.f32 %v1745, %v1760
      %v1767 = vmul.f32 %v1752, %v1760
      %v1768 = vmul.f32 %v1759, %v1760
      %vm1777 = vcmask 1041409
      %v1778 = vsel %vm1777, %v1762, %v1761
      %vm1779 = vcmask 1042434
      %v1780 = vsel %vm1779, %v1763, %v1778
      %vm1781 = vcmask 1043459
      %v1782 = vsel %vm1781, %v1764, %v1780
      %vm1783 = vcmask 1044484
      %v1784 = vsel %vm1783, %v1765, %v1782
      %vm1785 = vcmask 1045509
      %v1786 = vsel %vm1785, %v1766, %v1784
      %vm1787 = vcmask 1046534
      %v1788 = vsel %vm1787, %v1767, %v1786
      %vm1789 = vcmask 1047559
      %v1790 = vsel %vm1789, %v1768, %v1788
      %v1792 = vsel %vm481, %v1790, 0.0
      %v1793 = vld [vmem:[%s456] sm:$0xff]
      %v1794 = vld [vmem:[%s448] sm:$0xff]
      %v1795 = vlaneseq
      %v1796 = vshrl.u32 %v1795, 7
      %v1797 = vsub.s32 2, %v1796
      %v1798 = vrot.slane %v464, %v1797
      %1800 = vrot.lane.b32.xlu0 %v1798, 32
      %v1801 = vpop.permute.xlu0 %1800
      %v1803 = vsel %vm481, %v1794, %v1801
      %v1804 = vld [vmem:[%s452] sm:$0xff]
      %v1805 = vlaneseq
      %v1806 = vand.u32 %v1805, 127
      %v1807 = vcvt.s32.f32 %v1806
      %vm1808 = vcmp.eq.f32.partialorder %v1807, 0.0
      %v1809 = vsel %vm1808, 1, 0
      %v1810 = vcvt.s32.f32 %v1809
      %vm1811 = vcmp.eq.f32.partialorder %v1807, 1.0
      %v1812 = vsel %vm1811, 1, 0
      %v1813 = vcvt.s32.f32 %v1812
      %vm1814 = vcmp.eq.f32.partialorder %v1807, 2.0
      %v1815 = vsel %vm1814, 1, 0
      %v1816 = vcvt.s32.f32 %v1815
      %vm1817 = vcmp.eq.f32.partialorder %v1807, 3.0
      %v1818 = vsel %vm1817, 1, 0
      %v1819 = vcvt.s32.f32 %v1818
      %vm1820 = vcmp.eq.f32.partialorder %v1807, 4.0
      %v1821 = vsel %vm1820, 1, 0
      %v1822 = vcvt.s32.f32 %v1821
      %vm1823 = vcmp.eq.f32.partialorder %v1807, 5.0
      %v1824 = vsel %vm1823, 1, 0
      %v1825 = vcvt.s32.f32 %v1824
      %v1826 = vsel %vm780, %v1803, 0.0
      %v1827 = vld [vmem:[%s7] sm:$0xff]
      %v1828 = vld [vmem:[%s7 + $0x8] sm:$0xff]
      %v1829 = vld [vmem:[%s7 + $0x10] sm:$0xff]
      %v1830 = vld [vmem:[%s7 + $0x18] sm:$0xff]
      %v1831 = vld [vmem:[%s7 + $0x20] sm:$0xff]
      %v1832 = vld [vmem:[%s7 + $0x28] sm:$0xff]
      %v1833 = vld [vmem:[%s7 + $0x30] sm:$0xff]
      %v1834 = vld [vmem:[%s7 + $0x38] sm:$0xff]
      %v1835 = vld [vmem:[%s7 + $0x40] sm:$0xff]
      %v1836 = vld [vmem:[%s7 + $0x48] sm:$0xff]
      %v1837 = vld [vmem:[%s7 + $0x50] sm:$0xff]
      %v1838 = vld [vmem:[%s7 + $0x58] sm:$0xff]
      %v1839 = vlaneseq
      %v1840 = vshrl.u32 %v1839, 7
      %v1841 = vsub.s32 0, %v1840
      %v1842 = vrot.slane %v464, %v1841
      %vm1843 = vcmask 785408
      %v1845 = vsel %vm1843, %v1826, 0
      %1847 = vmatprep.subr.mxu0 0.0
      %1848 = vmatpush1.msra.mxu0 %v1827
      %1849 = vmatprep.subr.mxu0 0.0
      %1850 = vmatpush1.msra.mxu0 %v1828
      %1851 = vmatprep.subr.mxu0 0.0
      %1852 = vmatpush1.msra.mxu0 %v1829
      %1853 = vmatprep.subr.mxu0 0.0
      %1854 = vmatpush1.msra.mxu0 %v1830
      %1855 = vmatprep.subr.mxu0 0.0
      %1856 = vmatpush1.msra.mxu0 %v1831
      %1857 = vmatprep.subr.mxu0 0.0
      %1858 = vmatpush1.msra.mxu0 %v1832
      %1859 = vmatprep.subr.mxu0 0.0
      %1860 = vmatpush1.msra.mxu0 %v1833
      %1861 = vmatprep.subr.mxu0 0.0
      %1862 = vmatpush1.msra.mxu0 %v1834
      %1863 = vmatprep.subr.mxu0 0.0
      %1864 = vmatpush1.msra.mxu0 %v1835
      %1865 = vmatprep.subr.mxu0 0.0
      %1866 = vmatpush1.msra.mxu0 %v1836
      %1867 = vmatprep.subr.mxu0 0.0
      %1868 = vmatpush1.msra.mxu0 %v1837
      %1869 = vmatprep.subr.mxu0 0.0
      %1870 = vmatpush1.msra.mxu0 %v1838
      %1871 = vmatprep.subr.mxu0 0.0
      %1872 = vmatpush1.msra.mxu0 0.0
      %1873 = vmatprep.subr.mxu0 0.0
      %1874 = vmatpush1.msra.mxu0 0.0
      %1875 = vmatprep.subr.mxu0 0.0
      %1876 = vmatpush1.msra.mxu0 0.0
      %1877 = vmatprep.subr.mxu0 0.0
      %1878 = vmatpush1.msra.mxu0 0.0
      %1879 = vmatprep.subr.mxu0 0.0
      %1880 = vmatpush1.msra.mxu0 0.0
      %1881 = vmatprep.subr.mxu0 0.0
      %1882 = vmatpush1.msra.mxu0 0.0
      %1883 = vmatprep.subr.mxu0 0.0
      %1884 = vmatpush1.msra.mxu0 0.0
      %1885 = vmatprep.subr.mxu0 0.0
      %1886 = vmatpush1.msra.mxu0 0.0
      %1887 = vmatprep.subr.mxu0 0.0
      %1888 = vmatpush1.msra.mxu0 0.0
      %1889 = vmatprep.subr.mxu0 0.0
      %1890 = vmatpush1.msra.mxu0 0.0
      %1891 = vmatprep.subr.mxu0 0.0
      %1892 = vmatpush1.msra.mxu0 0.0
      %1893 = vmatprep.subr.mxu0 0.0
      %1894 = vmatpush1.msra.mxu0 0.0
      %1895 = vmatprep.subr.mxu0 0.0
      %1896 = vmatpush1.msra.mxu0 0.0
      %1897 = vmatprep.subr.mxu0 0.0
      %1898 = vmatpush1.msra.mxu0 0.0
      %1899 = vmatprep.subr.mxu0 0.0
      %1900 = vmatpush1.msra.mxu0 0.0
      %1901 = vmatprep.subr.mxu0 0.0
      %1902 = vmatpush1.msra.mxu0 0.0
      %1903 = vmatprep.subr.mxu0 0.0
      %1904 = vmatpush1.msra.mxu0 0.0
      %1905 = vmatprep.subr.mxu0 0.0
      %1906 = vmatpush1.msra.mxu0 0.0
      %1907 = vmatprep.subr.mxu0 0.0
      %1908 = vmatpush1.msra.mxu0 0.0
      %1909 = vmatprep.subr.mxu0 0.0
      %1910 = vmatpush1.msra.mxu0 0.0
      %1911 = vmatprep.mubr.f32.mxu0 0.0
      %1912 = vmatmul.mubr.f32.gmra.mrb[0].mxu0 %v1845
      %v1913 = vpop.f32.mrb[0].mxu0
      %v1914 = vadd.f32 %v1842, %v1913
      %v1915 = vpop.f32.mrb[0].mxu0
      %1916 = vdwg.mxu0
      %v1917 = vxor.u32 %v1914, 2147483648
      %v1918 = vmul.f32 %v1917, 1.442695
      %v1919 = vpow.pop %v1918
      %v1920 = vadd.f32 %v1919, 1.0
      %v1921 = vrcp.pop %v1920
      %v1922 = vmul.f32 1.0, %v1921
      %v1923 = vtanh.pop %v1914
      %v1924 = vmul.f32 %v1922, 0.0
      %1926 = vrot.lane.b32.xlu0 %v1923, 64
      %v1927 = vpop.permute.xlu0 %1926
      %v1929 = vmul.f32 %v1922, %v1927
      %1931 = vrot.lane.b32.xlu0 %v1929, 32
      %v1932 = vpop.permute.xlu0 %1931
      %v1934 = vadd.f32 %v1924, %v1932
      %v1935 = vtanh.pop %v1934
      %1937 = vrot.lane.b32.xlu0 %v1935, 64
      %v1938 = vpop.permute.xlu0 %1937
      %v1940 = vmul.f32 %v1922, %v1938
      %s1941 = scalar_lea.vmem %s5, 96
      %v1942 = vld [vmem:[%s1941] sm:$0xff]
      %v1943 = vld [vmem:[%s1941 + $0x8] sm:$0xff]
      %v1944 = vld [vmem:[%s1941 + $0x10] sm:$0xff]
      %v1945 = vld [vmem:[%s1941 + $0x18] sm:$0xff]
      %1947 = vrot.lane.b32.xlu0 %v1940, 32
      %v1948 = vpop.permute.xlu0 %1947
      %v1949 = vsel %vm481, %v1948, 0
      %1951 = vmatprep.subr.mxu0 0.0
      %1952 = vmatpush1.msra.mxu0 %v1942
      %1953 = vmatprep.subr.mxu0 0.0
      %1954 = vmatpush1.msra.mxu0 %v1943
      %1955 = vmatprep.subr.mxu0 0.0
      %1956 = vmatpush1.msra.mxu0 %v1944
      %1957 = vmatprep.subr.mxu0 0.0
      %1958 = vmatpush1.msra.mxu0 %v1945
      %1959 = vmatprep.subr.mxu0 0.0
      %1960 = vmatpush1.msra.mxu0 0.0
      %1961 = vmatprep.subr.mxu0 0.0
      %1962 = vmatpush1.msra.mxu0 0.0
      %1963 = vmatprep.subr.mxu0 0.0
      %1964 = vmatpush1.msra.mxu0 0.0
      %1965 = vmatprep.subr.mxu0 0.0
      %1966 = vmatpush1.msra.mxu0 0.0
      %1967 = vmatprep.subr.mxu0 0.0
      %1968 = vmatpush1.msra.mxu0 0.0
      %1969 = vmatprep.subr.mxu0 0.0
      %1970 = vmatpush1.msra.mxu0 0.0
      %1971 = vmatprep.subr.mxu0 0.0
      %1972 = vmatpush1.msra.mxu0 0.0
      %1973 = vmatprep.subr.mxu0 0.0
      %1974 = vmatpush1.msra.mxu0 0.0
      %1975 = vmatprep.subr.mxu0 0.0
      %1976 = vmatpush1.msra.mxu0 0.0
      %1977 = vmatprep.subr.mxu0 0.0
      %1978 = vmatpush1.msra.mxu0 0.0
      %1979 = vmatprep.subr.mxu0 0.0
      %1980 = vmatpush1.msra.mxu0 0.0
      %1981 = vmatprep.subr.mxu0 0.0
      %1982 = vmatpush1.msra.mxu0 0.0
      %1983 = vmatprep.subr.mxu0 0.0
      %1984 = vmatpush1.msra.mxu0 0.0
      %1985 = vmatprep.subr.mxu0 0.0
      %1986 = vmatpush1.msra.mxu0 0.0
      %1987 = vmatprep.subr.mxu0 0.0
      %1988 = vmatpush1.msra.mxu0 0.0
      %1989 = vmatprep.subr.mxu0 0.0
      %1990 = vmatpush1.msra.mxu0 0.0
      %1991 = vmatprep.subr.mxu0 0.0
      %1992 = vmatpush1.msra.mxu0 0.0
      %1993 = vmatprep.subr.mxu0 0.0
      %1994 = vmatpush1.msra.mxu0 0.0
      %1995 = vmatprep.subr.mxu0 0.0
      %1996 = vmatpush1.msra.mxu0 0.0
      %1997 = vmatprep.subr.mxu0 0.0
      %1998 = vmatpush1.msra.mxu0 0.0
      %1999 = vmatprep.subr.mxu0 0.0
      %2000 = vmatpush1.msra.mxu0 0.0
      %2001 = vmatprep.subr.mxu0 0.0
      %2002 = vmatpush1.msra.mxu0 0.0
      %2003 = vmatprep.subr.mxu0 0.0
      %2004 = vmatpush1.msra.mxu0 0.0
      %2005 = vmatprep.subr.mxu0 0.0
      %2006 = vmatpush1.msra.mxu0 0.0
      %2007 = vmatprep.subr.mxu0 0.0
      %2008 = vmatpush1.msra.mxu0 0.0
      %2009 = vmatprep.subr.mxu0 0.0
      %2010 = vmatpush1.msra.mxu0 0.0
      %2011 = vmatprep.subr.mxu0 0.0
      %2012 = vmatpush1.msra.mxu0 0.0
      %2013 = vmatprep.subr.mxu0 0.0
      %2014 = vmatpush1.msra.mxu0 0.0
      %2015 = vmatprep.mubr.f32.mxu0 0.0
      %2016 = vmatmul.mubr.f32.gmra.mrb[0].mxu0 %v1949
      %v2017 = vpop.f32.mrb[0].mxu0
      %v2018 = vadd.f32 %v1804, %v2017
      %v2019 = vpop.f32.mrb[0].mxu0
      %2020 = vdwg.mxu0
      %v2021 = vmax.f32 %v2018, 0.0
      %s2022 = scalar_lea.vmem %s6, 128
      %v2023 = vld [vmem:[%s2022] sm:$0xff]
      %v2024 = vld [vmem:[%s2022 + $0x8] sm:$0xff]
      %v2025 = vld [vmem:[%s2022 + $0x10] sm:$0xff]
      %v2026 = vld [vmem:[%s2022 + $0x18] sm:$0xff]
      %v2027 = vld [vmem:[%s2022 + $0x20] sm:$0xff]
      %v2028 = vld [vmem:[%s2022 + $0x28] sm:$0xff]
      %v2029 = vld [vmem:[%s2022 + $0x30] sm:$0xff]
      %v2030 = vld [vmem:[%s2022 + $0x38] sm:$0xff]
      %v2031 = vld [vmem:[%s2022 + $0x40] sm:$0xff]
      %v2032 = vld [vmem:[%s2022 + $0x48] sm:$0xff]
      %v2033 = vld [vmem:[%s2022 + $0x50] sm:$0xff]
      %v2034 = vld [vmem:[%s2022 + $0x58] sm:$0xff]
      %v2035 = vld [vmem:[%s2022 + $0x60] sm:$0xff]
      %v2036 = vld [vmem:[%s2022 + $0x68] sm:$0xff]
      %v2037 = vld [vmem:[%s2022 + $0x70] sm:$0xff]
      %v2038 = vld [vmem:[%s2022 + $0x78] sm:$0xff]
      %v2039 = vlaneseq
      %v2040 = vshrl.u32 %v2039, 7
      %v2041 = vsub.s32 1, %v2040
      %v2042 = vrot.slane %v464, %v2041
      %2043 = vmatprep.subr.mxu0 0.0
      %2044 = vmatpush1.msra.mxu0 %v2023
      %2045 = vmatprep.subr.mxu0 0.0
      %2046 = vmatpush1.msra.mxu0 %v2024
      %2047 = vmatprep.subr.mxu0 0.0
      %2048 = vmatpush1.msra.mxu0 %v2025
      %2049 = vmatprep.subr.mxu0 0.0
      %2050 = vmatpush1.msra.mxu0 %v2026
      %2051 = vmatprep.subr.mxu0 0.0
      %2052 = vmatpush1.msra.mxu0 %v2027
      %2053 = vmatprep.subr.mxu0 0.0
      %2054 = vmatpush1.msra.mxu0 %v2028
      %2055 = vmatprep.subr.mxu0 0.0
      %2056 = vmatpush1.msra.mxu0 %v2029
      %2057 = vmatprep.subr.mxu0 0.0
      %2058 = vmatpush1.msra.mxu0 %v2030
      %2059 = vmatprep.subr.mxu0 0.0
      %2060 = vmatpush1.msra.mxu0 %v2031
      %2061 = vmatprep.subr.mxu0 0.0
      %2062 = vmatpush1.msra.mxu0 %v2032
      %2063 = vmatprep.subr.mxu0 0.0
      %2064 = vmatpush1.msra.mxu0 %v2033
      %2065 = vmatprep.subr.mxu0 0.0
      %2066 = vmatpush1.msra.mxu0 %v2034
      %2067 = vmatprep.subr.mxu0 0.0
      %2068 = vmatpush1.msra.mxu0 %v2035
      %2069 = vmatprep.subr.mxu0 0.0
      %2070 = vmatpush1.msra.mxu0 %v2036
      %2071 = vmatprep.subr.mxu0 0.0
      %2072 = vmatpush1.msra.mxu0 %v2037
      %2073 = vmatprep.subr.mxu0 0.0
      %2074 = vmatpush1.msra.mxu0 %v2038
      %2075 = vmatprep.subr.mxu0 0.0
      %2076 = vmatpush1.msra.mxu0 0.0
      %2077 = vmatprep.subr.mxu0 0.0
      %2078 = vmatpush1.msra.mxu0 0.0
      %2079 = vmatprep.subr.mxu0 0.0
      %2080 = vmatpush1.msra.mxu0 0.0
      %2081 = vmatprep.subr.mxu0 0.0
      %2082 = vmatpush1.msra.mxu0 0.0
      %2083 = vmatprep.subr.mxu0 0.0
      %2084 = vmatpush1.msra.mxu0 0.0
      %2085 = vmatprep.subr.mxu0 0.0
      %2086 = vmatpush1.msra.mxu0 0.0
      %2087 = vmatprep.subr.mxu0 0.0
      %2088 = vmatpush1.msra.mxu0 0.0
      %2089 = vmatprep.subr.mxu0 0.0
      %2090 = vmatpush1.msra.mxu0 0.0
      %2091 = vmatprep.subr.mxu0 0.0
      %2092 = vmatpush1.msra.mxu0 0.0
      %2093 = vmatprep.subr.mxu0 0.0
      %2094 = vmatpush1.msra.mxu0 0.0
      %2095 = vmatprep.subr.mxu0 0.0
      %2096 = vmatpush1.msra.mxu0 0.0
      %2097 = vmatprep.subr.mxu0 0.0
      %2098 = vmatpush1.msra.mxu0 0.0
      %2099 = vmatprep.subr.mxu0 0.0
      %2100 = vmatpush1.msra.mxu0 0.0
      %2101 = vmatprep.subr.mxu0 0.0
      %2102 = vmatpush1.msra.mxu0 0.0
      %2103 = vmatprep.subr.mxu0 0.0
      %2104 = vmatpush1.msra.mxu0 0.0
      %2105 = vmatprep.subr.mxu0 0.0
      %2106 = vmatpush1.msra.mxu0 0.0
      %2107 = vmatprep.mubr.f32.mxu0 0.0
      %2108 = vmatmul.mubr.f32.gmra.mrb[0].mxu0 %v2021
      %v2109 = vpop.f32.mrb[0].mxu0
      %v2110 = vadd.f32 %v2042, %v2109
      %v2111 = vpop.f32.mrb[0].mxu0
      %2112 = vdwg.mxu0
      %2114 = vset.pattern.permute.xlu0 2
      %2115 = vperm.xlu0 %2114, %v1793
      %v2116 = vpop.permute.xlu0 %2115
      %vm2118 = vcmp.eq.f32.partialorder %v2116, %v1807
      %v2119 = vsel %vm2118, 1, 0
      %v2120 = vcvt.s32.f32 %v2119
      %v2121 = vld [vmem:[%s10] sm:$0xff]
      %v2122 = vld [vmem:[%s10 + $0x8] sm:$0xff]
      %v2123 = vld [vmem:[%s10 + $0x10] sm:$0xff]
      %vm2124 = vcmask 195584
      %v2126 = vsel %vm2124, %v2120, 0
      %2128 = vmatprep.subr.mxu0 0.0
      %2129 = vmatpush1.msra.mxu0 %v2121
      %2130 = vmatprep.subr.mxu0 0.0
      %2131 = vmatpush1.msra.mxu0 %v2122
      %2132 = vmatprep.subr.mxu0 0.0
      %2133 = vmatpush1.msra.mxu0 %v2123
      %2134 = vmatprep.subr.mxu0 0.0
      %2135 = vmatpush1.msra.mxu0 0.0
      %2136 = vmatprep.subr.mxu0 0.0
      %2137 = vmatpush1.msra.mxu0 0.0
      %2138 = vmatprep.subr.mxu0 0.0
      %2139 = vmatpush1.msra.mxu0 0.0
      %2140 = vmatprep.subr.mxu0 0.0
      %2141 = vmatpush1.msra.mxu0 0.0
      %2142 = vmatprep.subr.mxu0 0.0
      %2143 = vmatpush1.msra.mxu0 0.0
      %2144 = vmatprep.subr.mxu0 0.0
      %2145 = vmatpush1.msra.mxu0 0.0
      %2146 = vmatprep.subr.mxu0 0.0
      %2147 = vmatpush1.msra.mxu0 0.0
      %2148 = vmatprep.subr.mxu0 0.0
      %2149 = vmatpush1.msra.mxu0 0.0
      %2150 = vmatprep.subr.mxu0 0.0
      %2151 = vmatpush1.msra.mxu0 0.0
      %2152 = vmatprep.subr.mxu0 0.0
      %2153 = vmatpush1.msra.mxu0 0.0
      %2154 = vmatprep.subr.mxu0 0.0
      %2155 = vmatpush1.msra.mxu0 0.0
      %2156 = vmatprep.subr.mxu0 0.0
      %2157 = vmatpush1.msra.mxu0 0.0
      %2158 = vmatprep.subr.mxu0 0.0
      %2159 = vmatpush1.msra.mxu0 0.0
      %2160 = vmatprep.subr.mxu0 0.0
      %2161 = vmatpush1.msra.mxu0 0.0
      %2162 = vmatprep.subr.mxu0 0.0
      %2163 = vmatpush1.msra.mxu0 0.0
      %2164 = vmatprep.subr.mxu0 0.0
      %2165 = vmatpush1.msra.mxu0 0.0
      %2166 = vmatprep.subr.mxu0 0.0
      %2167 = vmatpush1.msra.mxu0 0.0
      %2168 = vmatprep.subr.mxu0 0.0
      %2169 = vmatpush1.msra.mxu0 0.0
      %2170 = vmatprep.subr.mxu0 0.0
      %2171 = vmatpush1.msra.mxu0 0.0
      %2172 = vmatprep.subr.mxu0 0.0
      %2173 = vmatpush1.msra.mxu0 0.0
      %2174 = vmatprep.subr.mxu0 0.0
      %2175 = vmatpush1.msra.mxu0 0.0
      %2176 = vmatprep.subr.mxu0 0.0
      %2177 = vmatpush1.msra.mxu0 0.0
      %2178 = vmatprep.subr.mxu0 0.0
      %2179 = vmatpush1.msra.mxu0 0.0
      %2180 = vmatprep.subr.mxu0 0.0
      %2181 = vmatpush1.msra.mxu0 0.0
      %2182 = vmatprep.subr.mxu0 0.0
      %2183 = vmatpush1.msra.mxu0 0.0
      %2184 = vmatprep.subr.mxu0 0.0
      %2185 = vmatpush1.msra.mxu0 0.0
      %2186 = vmatprep.subr.mxu0 0.0
      %2187 = vmatpush1.msra.mxu0 0.0
      %2188 = vmatprep.subr.mxu0 0.0
      %2189 = vmatpush1.msra.mxu0 0.0
      %2190 = vmatprep.subr.mxu0 0.0
      %2191 = vmatpush1.msra.mxu0 0.0
      %2192 = vmatprep.mubr.f32.mxu0 0.0
      %2193 = vmatmul.mubr.f32.gmra.mrb[0].mxu0 %v2126
      %v2194 = vpop.f32.mrb[0].mxu0
      %v2195 = vadd.f32 0.0, %v2194
      %v2196 = vpop.f32.mrb[0].mxu0
      %2197 = vdwg.mxu0
      %2198 = vset.pattern.permute.xlu0 0
      %2199 = vperm.xlu0 %2198, %v1793
      %v2200 = vpop.permute.xlu0 %2199
      %v2202 = vsub.f32 %v2200, %v2195
      %vm2203 = vcmp.eq.f32.partialorder %v2195, 16.0
      %v2204 = vsel %vm2203, 1, 0
      %v2205 = vcvt.s32.f32 %v2204
      %v2206 = vsub.f32 %v2202, -32.0
      %v2207 = vmax.f32 %v2206, 0.0
      %v2208 = vmin.f32 %v2207, 63.0
      %v2209 = vadd.f32 %v2208, 24.0
      %v2210 = vadd.f32 %v2195, 88.0
      %v2211 = vlaneseq
      %v2212 = vshrl.u32 %v2211, 7
      %v2213 = vsub.s32 0, %v2212
      %v2214 = vrot.slane %v2195, %v2213
      %s2216 = sor.u32 256, 8
      %2217 = vbcast.lane.b32.xlu0 %v2214, %s2216
      %v2218 = vpop.permute.xlu0 %2217
      %v2219 = vlaneseq
      %v2220 = vshrl.u32 %v2219, 7
      %v2221 = vsub.s32 1, %v2220
      %v2222 = vrot.slane %v2195, %v2221
      %s2224 = sor.u32 256, 8
      %2225 = vbcast.lane.b32.xlu0 %v2222, %s2224
      %v2226 = vpop.permute.xlu0 %2225
      %v2227 = vlaneseq
      %v2228 = vshrl.u32 %v2227, 7
      %v2229 = vsub.s32 2, %v2228
      %v2230 = vrot.slane %v2195, %v2229
      %s2232 = sor.u32 256, 8
      %2233 = vbcast.lane.b32.xlu0 %v2230, %s2232
      %v2234 = vpop.permute.xlu0 %2233
      %v2235 = vlaneseq
      %v2236 = vshrl.u32 %v2235, 7
      %v2237 = vsub.s32 3, %v2236
      %v2238 = vrot.slane %v2195, %v2237
      %s2240 = sor.u32 256, 8
      %2241 = vbcast.lane.b32.xlu0 %v2238, %s2240
      %v2242 = vpop.permute.xlu0 %2241
      %v2243 = vlaneseq
      %v2244 = vshrl.u32 %v2243, 7
      %v2245 = vsub.s32 4, %v2244
      %v2246 = vrot.slane %v2195, %v2245
      %s2248 = sor.u32 256, 8
      %2249 = vbcast.lane.b32.xlu0 %v2246, %s2248
      %v2250 = vpop.permute.xlu0 %2249
      %v2251 = vlaneseq
      %v2252 = vshrl.u32 %v2251, 7
      %v2253 = vsub.s32 5, %v2252
      %v2254 = vrot.slane %v2195, %v2253
      %s2256 = sor.u32 256, 8
      %2257 = vbcast.lane.b32.xlu0 %v2254, %s2256
      %v2258 = vpop.permute.xlu0 %2257
      %v2259 = vlaneseq
      %v2260 = vshrl.u32 %v2259, 7
      %v2261 = vsub.s32 6, %v2260
      %v2262 = vrot.slane %v2195, %v2261
      %s2264 = sor.u32 256, 8
      %2265 = vbcast.lane.b32.xlu0 %v2262, %s2264
      %v2266 = vpop.permute.xlu0 %2265
      %v2267 = vlaneseq
      %v2268 = vshrl.u32 %v2267, 7
      %v2269 = vsub.s32 7, %v2268
      %v2270 = vrot.slane %v2195, %v2269
      %s2272 = sor.u32 256, 8
      %2273 = vbcast.lane.b32.xlu0 %v2270, %s2272
      %v2274 = vpop.permute.xlu0 %2273
      %vm2275 = vcmp.eq.f32.partialorder %v1807, %v2218
      %vm2276 = vcmp.eq.f32.partialorder %v1807, %v2226
      %vm2277 = vcmp.eq.f32.partialorder %v1807, %v2234
      %vm2278 = vcmp.eq.f32.partialorder %v1807, %v2242
      %vm2279 = vcmp.eq.f32.partialorder %v1807, %v2250
      %vm2280 = vcmp.eq.f32.partialorder %v1807, %v2258
      %vm2281 = vcmp.eq.f32.partialorder %v1807, %v2266
      %vm2282 = vcmp.eq.f32.partialorder %v1807, %v2274
      %v2283 = vsel %vm2275, 1, 0
      %v2284 = vsel %vm2276, 1, 0
      %v2285 = vsel %vm2277, 1, 0
      %v2286 = vsel %vm2278, 1, 0
      %v2287 = vsel %vm2279, 1, 0
      %v2288 = vsel %vm2280, 1, 0
      %v2289 = vsel %vm2281, 1, 0
      %v2290 = vsel %vm2282, 1, 0
      %v2291 = vcvt.s32.f32 %v2283
      %v2292 = vcvt.s32.f32 %v2284
      %v2293 = vcvt.s32.f32 %v2285
      %v2294 = vcvt.s32.f32 %v2286
      %v2295 = vcvt.s32.f32 %v2287
      %v2296 = vcvt.s32.f32 %v2288
      %v2297 = vcvt.s32.f32 %v2289
      %v2298 = vcvt.s32.f32 %v2290
      %v2299 = vlaneseq
      %v2300 = vshrl.u32 %v2299, 7
      %v2301 = vsub.s32 0, %v2300
      %v2302 = vrot.slane %v2209, %v2301
      %s2304 = sor.u32 256, 16
      %2305 = vbcast.lane.b32.xlu0 %v2302, %s2304
      %v2306 = vpop.permute.xlu0 %2305
      %v2307 = vlaneseq
      %v2308 = vshrl.u32 %v2307, 7
      %v2309 = vsub.s32 1, %v2308
      %v2310 = vrot.slane %v2209, %v2309
      %s2312 = sor.u32 256, 16
      %2313 = vbcast.lane.b32.xlu0 %v2310, %s2312
      %v2314 = vpop.permute.xlu0 %2313
      %v2315 = vlaneseq
      %v2316 = vshrl.u32 %v2315, 7
      %v2317 = vsub.s32 2, %v2316
      %v2318 = vrot.slane %v2209, %v2317
      %s2320 = sor.u32 256, 16
      %2321 = vbcast.lane.b32.xlu0 %v2318, %s2320
      %v2322 = vpop.permute.xlu0 %2321
      %v2323 = vlaneseq
      %v2324 = vshrl.u32 %v2323, 7
      %v2325 = vsub.s32 3, %v2324
      %v2326 = vrot.slane %v2209, %v2325
      %s2328 = sor.u32 256, 16
      %2329 = vbcast.lane.b32.xlu0 %v2326, %s2328
      %v2330 = vpop.permute.xlu0 %2329
      %v2331 = vlaneseq
      %v2332 = vshrl.u32 %v2331, 7
      %v2333 = vsub.s32 4, %v2332
      %v2334 = vrot.slane %v2209, %v2333
      %s2336 = sor.u32 256, 16
      %2337 = vbcast.lane.b32.xlu0 %v2334, %s2336
      %v2338 = vpop.permute.xlu0 %2337
      %v2339 = vlaneseq
      %v2340 = vshrl.u32 %v2339, 7
      %v2341 = vsub.s32 5, %v2340
      %v2342 = vrot.slane %v2209, %v2341
      %s2344 = sor.u32 256, 16
      %2345 = vbcast.lane.b32.xlu0 %v2342, %s2344
      %v2346 = vpop.permute.xlu0 %2345
      %v2347 = vlaneseq
      %v2348 = vshrl.u32 %v2347, 7
      %v2349 = vsub.s32 6, %v2348
      %v2350 = vrot.slane %v2209, %v2349
      %s2352 = sor.u32 256, 16
      %2353 = vbcast.lane.b32.xlu0 %v2350, %s2352
      %v2354 = vpop.permute.xlu0 %2353
      %v2355 = vlaneseq
      %v2356 = vshrl.u32 %v2355, 7
      %v2357 = vsub.s32 7, %v2356
      %v2358 = vrot.slane %v2209, %v2357
      %s2360 = sor.u32 256, 16
      %2361 = vbcast.lane.b32.xlu0 %v2358, %s2360
      %v2362 = vpop.permute.xlu0 %2361
      %vm2363 = vcmp.eq.f32.partialorder %v1807, %v2306
      %vm2364 = vcmp.eq.f32.partialorder %v1807, %v2314
      %vm2365 = vcmp.eq.f32.partialorder %v1807, %v2322
      %vm2366 = vcmp.eq.f32.partialorder %v1807, %v2330
      %vm2367 = vcmp.eq.f32.partialorder %v1807, %v2338
      %vm2368 = vcmp.eq.f32.partialorder %v1807, %v2346
      %vm2369 = vcmp.eq.f32.partialorder %v1807, %v2354
      %vm2370 = vcmp.eq.f32.partialorder %v1807, %v2362
      %v2371 = vsel %vm2363, 1, 0
      %v2372 = vsel %vm2364, 1, 0
      %v2373 = vsel %vm2365, 1, 0
      %v2374 = vsel %vm2366, 1, 0
      %v2375 = vsel %vm2367, 1, 0
      %v2376 = vsel %vm2368, 1, 0
      %v2377 = vsel %vm2369, 1, 0
      %v2378 = vsel %vm2370, 1, 0
      %v2379 = vcvt.s32.f32 %v2371
      %v2380 = vcvt.s32.f32 %v2372
      %v2381 = vcvt.s32.f32 %v2373
      %v2382 = vcvt.s32.f32 %v2374
      %v2383 = vcvt.s32.f32 %v2375
      %v2384 = vcvt.s32.f32 %v2376
      %v2385 = vcvt.s32.f32 %v2377
      %v2386 = vcvt.s32.f32 %v2378
      %v2387 = vadd.f32 %v2291, %v2379
      %v2388 = vadd.f32 %v2292, %v2380
      %v2389 = vadd.f32 %v2293, %v2381
      %v2390 = vadd.f32 %v2294, %v2382
      %v2391 = vadd.f32 %v2295, %v2383
      %v2392 = vadd.f32 %v2296, %v2384
      %v2393 = vadd.f32 %v2297, %v2385
      %v2394 = vadd.f32 %v2298, %v2386
      %v2395 = vlaneseq
      %v2396 = vshrl.u32 %v2395, 7
      %v2397 = vsub.s32 0, %v2396
      %v2398 = vrot.slane %v2210, %v2397
      %2400 = vbcast.lane.b32.xlu0 %v2398, 256
      %v2401 = vpop.permute.xlu0 %2400
      %v2402 = vlaneseq
      %v2403 = vshrl.u32 %v2402, 7
      %v2404 = vsub.s32 1, %v2403
      %v2405 = vrot.slane %v2210, %v2404
      %2407 = vbcast.lane.b32.xlu0 %v2405, 256
      %v2408 = vpop.permute.xlu0 %2407
      %v2409 = vlaneseq
      %v2410 = vshrl.u32 %v2409, 7
      %v2411 = vsub.s32 2, %v2410
      %v2412 = vrot.slane %v2210, %v2411
      %2414 = vbcast.lane.b32.xlu0 %v2412, 256
      %v2415 = vpop.permute.xlu0 %2414
      %v2416 = vlaneseq
      %v2417 = vshrl.u32 %v2416, 7
      %v2418 = vsub.s32 3, %v2417
      %v2419 = vrot.slane %v2210, %v2418
      %2421 = vbcast.lane.b32.xlu0 %v2419, 256
      %v2422 = vpop.permute.xlu0 %2421
      %v2423 = vlaneseq
      %v2424 = vshrl.u32 %v2423, 7
      %v2425 = vsub.s32 4, %v2424
      %v2426 = vrot.slane %v2210, %v2425
      %2428 = vbcast.lane.b32.xlu0 %v2426, 256
      %v2429 = vpop.permute.xlu0 %2428
      %v2430 = vlaneseq
      %v2431 = vshrl.u32 %v2430, 7
      %v2432 = vsub.s32 5, %v2431
      %v2433 = vrot.slane %v2210, %v2432
      %2435 = vbcast.lane.b32.xlu0 %v2433, 256
      %v2436 = vpop.permute.xlu0 %2435
      %v2437 = vlaneseq
      %v2438 = vshrl.u32 %v2437, 7
      %v2439 = vsub.s32 6, %v2438
      %v2440 = vrot.slane %v2210, %v2439
      %2442 = vbcast.lane.b32.xlu0 %v2440, 256
      %v2443 = vpop.permute.xlu0 %2442
      %v2444 = vlaneseq
      %v2445 = vshrl.u32 %v2444, 7
      %v2446 = vsub.s32 7, %v2445
      %v2447 = vrot.slane %v2210, %v2446
      %2449 = vbcast.lane.b32.xlu0 %v2447, 256
      %v2450 = vpop.permute.xlu0 %2449
      %vm2451 = vcmp.eq.f32.partialorder %v1807, %v2401
      %vm2452 = vcmp.eq.f32.partialorder %v1807, %v2408
      %vm2453 = vcmp.eq.f32.partialorder %v1807, %v2415
      %vm2454 = vcmp.eq.f32.partialorder %v1807, %v2422
      %vm2455 = vcmp.eq.f32.partialorder %v1807, %v2429
      %vm2456 = vcmp.eq.f32.partialorder %v1807, %v2436
      %vm2457 = vcmp.eq.f32.partialorder %v1807, %v2443
      %vm2458 = vcmp.eq.f32.partialorder %v1807, %v2450
      %v2459 = vsel %vm2451, 1, 0
      %v2460 = vsel %vm2452, 1, 0
      %v2461 = vsel %vm2453, 1, 0
      %v2462 = vsel %vm2454, 1, 0
      %v2463 = vsel %vm2455, 1, 0
      %v2464 = vsel %vm2456, 1, 0
      %v2465 = vsel %vm2457, 1, 0
      %v2466 = vsel %vm2458, 1, 0
      %v2467 = vcvt.s32.f32 %v2459
      %v2468 = vcvt.s32.f32 %v2460
      %v2469 = vcvt.s32.f32 %v2461
      %v2470 = vcvt.s32.f32 %v2462
      %v2471 = vcvt.s32.f32 %v2463
      %v2472 = vcvt.s32.f32 %v2464
      %v2473 = vcvt.s32.f32 %v2465
      %v2474 = vcvt.s32.f32 %v2466
      %v2475 = vadd.f32 %v2387, %v2467
      %v2476 = vadd.f32 %v2388, %v2468
      %v2477 = vadd.f32 %v2389, %v2469
      %v2478 = vadd.f32 %v2390, %v2470
      %v2479 = vadd.f32 %v2391, %v2471
      %v2480 = vadd.f32 %v2392, %v2472
      %v2481 = vadd.f32 %v2393, %v2473
      %v2482 = vadd.f32 %v2394, %v2474
      %v2483 = vld [vmem:[%s9] sm:$0xff]
      %v2484 = vld [vmem:[%s9 + $0x8] sm:$0xff]
      %v2485 = vld [vmem:[%s9 + $0x10] sm:$0xff]
      %v2486 = vld [vmem:[%s9 + $0x18] sm:$0xff]
      %v2487 = vld [vmem:[%s9 + $0x20] sm:$0xff]
      %v2488 = vld [vmem:[%s9 + $0x28] sm:$0xff]
      %v2489 = vld [vmem:[%s9 + $0x30] sm:$0xff]
      %v2490 = vld [vmem:[%s9 + $0x38] sm:$0xff]
      %v2491 = vld [vmem:[%s9 + $0x40] sm:$0xff]
      %v2492 = vld [vmem:[%s9 + $0x48] sm:$0xff]
      %v2493 = vld [vmem:[%s9 + $0x50] sm:$0xff]
      %v2494 = vld [vmem:[%s9 + $0x58] sm:$0xff]
      %v2496 = vsel %vm1843, %v2475, 0
      %v2499 = vsel %vm1843, %v2476, 0
      %v2502 = vsel %vm1843, %v2477, 0
      %v2505 = vsel %vm1843, %v2478, 0
      %v2508 = vsel %vm1843, %v2479, 0
      %v2511 = vsel %vm1843, %v2480, 0
      %v2514 = vsel %vm1843, %v2481, 0
      %v2517 = vsel %vm1843, %v2482, 0
      %2519 = vmatprep.subr.mxu0 0.0
      %2520 = vmatpush1.msra.mxu0 %v2483
      %2521 = vmatprep.subr.mxu0 0.0
      %2522 = vmatpush1.msra.mxu0 %v2484
      %2523 = vmatprep.subr.mxu0 0.0
      %2524 = vmatpush1.msra.mxu0 %v2485
      %2525 = vmatprep.subr.mxu0 0.0
      %2526 = vmatpush1.msra.mxu0 %v2486
      %2527 = vmatprep.subr.mxu0 0.0
      %2528 = vmatpush1.msra.mxu0 %v2487
      %2529 = vmatprep.subr.mxu0 0.0
      %2530 = vmatpush1.msra.mxu0 %v2488
      %2531 = vmatprep.subr.mxu0 0.0
      %2532 = vmatpush1.msra.mxu0 %v2489
      %2533 = vmatprep.subr.mxu0 0.0
      %2534 = vmatpush1.msra.mxu0 %v2490
      %2535 = vmatprep.subr.mxu0 0.0
      %2536 = vmatpush1.msra.mxu0 %v2491
      %2537 = vmatprep.subr.mxu0 0.0
      %2538 = vmatpush1.msra.mxu0 %v2492
      %2539 = vmatprep.subr.mxu0 0.0
      %2540 = vmatpush1.msra.mxu0 %v2493
      %2541 = vmatprep.subr.mxu0 0.0
      %2542 = vmatpush1.msra.mxu0 %v2494
      %2543 = vmatprep.subr.mxu0 0.0
      %2544 = vmatpush1.msra.mxu0 0.0
      %2545 = vmatprep.subr.mxu0 0.0
      %2546 = vmatpush1.msra.mxu0 0.0
      %2547 = vmatprep.subr.mxu0 0.0
      %2548 = vmatpush1.msra.mxu0 0.0
      %2549 = vmatprep.subr.mxu0 0.0
      %2550 = vmatpush1.msra.mxu0 0.0
      %2551 = vmatprep.subr.mxu0 0.0
      %2552 = vmatpush1.msra.mxu0 0.0
      %2553 = vmatprep.subr.mxu0 0.0
      %2554 = vmatpush1.msra.mxu0 0.0
      %2555 = vmatprep.subr.mxu0 0.0
      %2556 = vmatpush1.msra.mxu0 0.0
      %2557 = vmatprep.subr.mxu0 0.0
      %2558 = vmatpush1.msra.mxu0 0.0
      %2559 = vmatprep.subr.mxu0 0.0
      %2560 = vmatpush1.msra.mxu0 0.0
      %2561 = vmatprep.subr.mxu0 0.0
      %2562 = vmatpush1.msra.mxu0 0.0
      %2563 = vmatprep.subr.mxu0 0.0
      %2564 = vmatpush1.msra.mxu0 0.0
      %2565 = vmatprep.subr.mxu0 0.0
      %2566 = vmatpush1.msra.mxu0 0.0
      %2567 = vmatprep.subr.mxu0 0.0
      %2568 = vmatpush1.msra.mxu0 0.0
      %2569 = vmatprep.subr.mxu0 0.0
      %2570 = vmatpush1.msra.mxu0 0.0
      %2571 = vmatprep.subr.mxu0 0.0
      %2572 = vmatpush1.msra.mxu0 0.0
      %2573 = vmatprep.subr.mxu0 0.0
      %2574 = vmatpush1.msra.mxu0 0.0
      %2575 = vmatprep.subr.mxu0 0.0
      %2576 = vmatpush1.msra.mxu0 0.0
      %2577 = vmatprep.subr.mxu0 0.0
      %2578 = vmatpush1.msra.mxu0 0.0
      %2579 = vmatprep.subr.mxu0 0.0
      %2580 = vmatpush1.msra.mxu0 0.0
      %2581 = vmatprep.subr.mxu0 0.0
      %2582 = vmatpush1.msra.mxu0 0.0
      %2583 = vmatprep.mubr.f32.mxu0 0.0
      %2584 = vmatmul.mubr.f32.gmra.mrb[0].mxu0 %v2496
      %v2585 = vpop.f32.mrb[0].mxu0
      %v2586 = vadd.f32 0.0, %v2585
      %v2587 = vpop.f32.mrb[0].mxu0
      %2588 = vmatprep.mubr.f32.mxu0 0.0
      %2589 = vmatmul.mubr.f32.gmra.mrb[0].mxu0 %v2499
      %v2590 = vpop.f32.mrb[0].mxu0
      %v2591 = vadd.f32 0.0, %v2590
      %v2592 = vpop.f32.mrb[0].mxu0
      %2593 = vmatprep.mubr.f32.mxu0 0.0
      %2594 = vmatmul.mubr.f32.gmra.mrb[0].mxu0 %v2502
      %v2595 = vpop.f32.mrb[0].mxu0
      %v2596 = vadd.f32 0.0, %v2595
      %v2597 = vpop.f32.mrb[0].mxu0
      %2598 = vmatprep.mubr.f32.mxu0 0.0
      %2599 = vmatmul.mubr.f32.gmra.mrb[0].mxu0 %v2505
      %v2600 = vpop.f32.mrb[0].mxu0
      %v2601 = vadd.f32 0.0, %v2600
      %v2602 = vpop.f32.mrb[0].mxu0
      %2603 = vmatprep.mubr.f32.mxu0 0.0
      %2604 = vmatmul.mubr.f32.gmra.mrb[0].mxu0 %v2508
      %v2605 = vpop.f32.mrb[0].mxu0
      %v2606 = vadd.f32 0.0, %v2605
      %v2607 = vpop.f32.mrb[0].mxu0
      %2608 = vmatprep.mubr.f32.mxu0 0.0
      %2609 = vmatmul.mubr.f32.gmra.mrb[0].mxu0 %v2511
      %v2610 = vpop.f32.mrb[0].mxu0
      %v2611 = vadd.f32 0.0, %v2610
      %v2612 = vpop.f32.mrb[0].mxu0
      %2613 = vmatprep.mubr.f32.mxu0 0.0
      %2614 = vmatmul.mubr.f32.gmra.mrb[0].mxu0 %v2514
      %v2615 = vpop.f32.mrb[0].mxu0
      %v2616 = vadd.f32 0.0, %v2615
      %v2617 = vpop.f32.mrb[0].mxu0
      %2618 = vmatprep.mubr.f32.mxu0 0.0
      %2619 = vmatmul.mubr.f32.gmra.mrb[0].mxu0 %v2517
      %v2620 = vpop.f32.mrb[0].mxu0
      %v2621 = vadd.f32 0.0, %v2620
      %v2622 = vpop.f32.mrb[0].mxu0
      %2623 = vdwg.mxu0
      %v2625 = vcombine.high %v2110, %v2110
      %v2627 = vunpack.c.l.s4 1966171168
      %v2628 = vunpack.c.0.s8 %v2627
      %v2629 = vlaneseq
      %v2630 = vshrl.u32 %v2629, 7
      %v2631 = vsub.s32 %v2628, %v2630
      %v2632 = vrot.slane %v2110, %v2631
      %v2634 = vunpack.c.l.s4 1966171168
      %v2635 = vunpack.c.0.s8 %v2634
      %v2636 = vlaneseq
      %v2637 = vshrl.u32 %v2636, 7
      %v2638 = vsub.s32 %v2635, %v2637
      %v2639 = vrot.slane %v2625, %v2638
      %v2640 = vcombine.high %v2632, %v2632
      %v2641 = vcombine.high %v2639, %v2639
      %v2643 = vunpack.c.l.s4 1966171168
      %v2644 = vunpack.c.0.s8 %v2643
      %v2645 = vlaneseq
      %v2646 = vshrl.u32 %v2645, 7
      %v2647 = vsub.s32 %v2644, %v2646
      %v2648 = vrot.slane %v2632, %v2647
      %v2650 = vunpack.c.l.s4 1966171168
      %v2651 = vunpack.c.0.s8 %v2650
      %v2652 = vlaneseq
      %v2653 = vshrl.u32 %v2652, 7
      %v2654 = vsub.s32 %v2651, %v2653
      %v2655 = vrot.slane %v2639, %v2654
      %v2657 = vunpack.c.l.s4 1966171168
      %v2658 = vunpack.c.0.s8 %v2657
      %v2659 = vlaneseq
      %v2660 = vshrl.u32 %v2659, 7
      %v2661 = vsub.s32 %v2658, %v2660
      %v2662 = vrot.slane %v2640, %v2661
      %v2664 = vunpack.c.l.s4 1966171168
      %v2665 = vunpack.c.0.s8 %v2664
      %v2666 = vlaneseq
      %v2667 = vshrl.u32 %v2666, 7
      %v2668 = vsub.s32 %v2665, %v2667
      %v2669 = vrot.slane %v2641, %v2668
      %v2670 = vcombine.high %v2648, %v2648
      %v2671 = vcombine.high %v2655, %v2655
      %v2672 = vcombine.high %v2662, %v2662
      %v2673 = vcombine.high %v2669, %v2669
      %v2674 = vlaneseq
      %v2675 = vshrl.u32 %v2674, 7
      %v2676 = vsub.s32 0, %v2675
      %v2677 = vrot.slane %v2648, %v2676
      %v2678 = vlaneseq
      %v2679 = vshrl.u32 %v2678, 7
      %v2680 = vsub.s32 0, %v2679
      %v2681 = vrot.slane %v2662, %v2680
      %v2682 = vlaneseq
      %v2683 = vshrl.u32 %v2682, 7
      %v2684 = vsub.s32 0, %v2683
      %v2685 = vrot.slane %v2670, %v2684
      %v2686 = vlaneseq
      %v2687 = vshrl.u32 %v2686, 7
      %v2688 = vsub.s32 0, %v2687
      %v2689 = vrot.slane %v2672, %v2688
      %v2690 = vlaneseq
      %v2691 = vshrl.u32 %v2690, 7
      %v2692 = vsub.s32 0, %v2691
      %v2693 = vrot.slane %v2655, %v2692
      %v2694 = vlaneseq
      %v2695 = vshrl.u32 %v2694, 7
      %v2696 = vsub.s32 0, %v2695
      %v2697 = vrot.slane %v2669, %v2696
      %v2698 = vlaneseq
      %v2699 = vshrl.u32 %v2698, 7
      %v2700 = vsub.s32 0, %v2699
      %v2701 = vrot.slane %v2671, %v2700
      %v2702 = vlaneseq
      %v2703 = vshrl.u32 %v2702, 7
      %v2704 = vsub.s32 0, %v2703
      %v2705 = vrot.slane %v2673, %v2704
      %v2714 = vmul.f32 %v2586, %v2677
      %v2715 = vmul.f32 %v2591, %v2681
      %v2716 = vmul.f32 %v2596, %v2685
      %v2717 = vmul.f32 %v2601, %v2689
      %v2718 = vmul.f32 %v2606, %v2693
      %v2719 = vmul.f32 %v2611, %v2697
      %v2720 = vmul.f32 %v2616, %v2701
      %v2721 = vmul.f32 %v2621, %v2705
      %v2722 = vsel %vm780, %v2714, 0.0
      %2723 = vadd.xlane.f32.xlu0 %v2722
      %v2724 = vpop.xlane.xlu0 %2723
      %v2725 = vsel %vm780, %v2715, 0.0
      %2726 = vadd.xlane.f32.xlu0 %v2725
      %v2727 = vpop.xlane.xlu0 %2726
      %v2728 = vsel %vm780, %v2716, 0.0
      %2729 = vadd.xlane.f32.xlu0 %v2728
      %v2730 = vpop.xlane.xlu0 %2729
      %v2731 = vsel %vm780, %v2717, 0.0
      %2732 = vadd.xlane.f32.xlu0 %v2731
      %v2733 = vpop.xlane.xlu0 %2732
      %v2734 = vsel %vm780, %v2718, 0.0
      %2735 = vadd.xlane.f32.xlu0 %v2734
      %v2736 = vpop.xlane.xlu0 %2735
      %v2737 = vsel %vm780, %v2719, 0.0
      %2738 = vadd.xlane.f32.xlu0 %v2737
      %v2739 = vpop.xlane.xlu0 %2738
      %v2740 = vsel %vm780, %v2720, 0.0
      %2741 = vadd.xlane.f32.xlu0 %v2740
      %v2742 = vpop.xlane.xlu0 %2741
      %v2743 = vsel %vm780, %v2721, 0.0
      %2744 = vadd.xlane.f32.xlu0 %v2743
      %v2745 = vpop.xlane.xlu0 %2744
      %v2746 = vmul.f32 %v2205, -1e+09
      %v2748 = vlaneseq
      %v2749 = vshrl.u32 %v2748, 7
      %v2750 = vsub.s32 0, %v2749
      %v2751 = vrot.slane %v2746, %v2750
      %s2753 = sor.u32 256, 8
      %2754 = vbcast.lane.b32.xlu0 %v2751, %s2753
      %v2755 = vpop.permute.xlu0 %2754
      %v2756 = vlaneseq
      %v2757 = vshrl.u32 %v2756, 7
      %v2758 = vsub.s32 1, %v2757
      %v2759 = vrot.slane %v2746, %v2758
      %s2761 = sor.u32 256, 8
      %2762 = vbcast.lane.b32.xlu0 %v2759, %s2761
      %v2763 = vpop.permute.xlu0 %2762
      %v2764 = vlaneseq
      %v2765 = vshrl.u32 %v2764, 7
      %v2766 = vsub.s32 2, %v2765
      %v2767 = vrot.slane %v2746, %v2766
      %s2769 = sor.u32 256, 8
      %2770 = vbcast.lane.b32.xlu0 %v2767, %s2769
      %v2771 = vpop.permute.xlu0 %2770
      %v2772 = vlaneseq
      %v2773 = vshrl.u32 %v2772, 7
      %v2774 = vsub.s32 3, %v2773
      %v2775 = vrot.slane %v2746, %v2774
      %s2777 = sor.u32 256, 8
      %2778 = vbcast.lane.b32.xlu0 %v2775, %s2777
      %v2779 = vpop.permute.xlu0 %2778
      %v2780 = vlaneseq
      %v2781 = vshrl.u32 %v2780, 7
      %v2782 = vsub.s32 4, %v2781
      %v2783 = vrot.slane %v2746, %v2782
      %s2785 = sor.u32 256, 8
      %2786 = vbcast.lane.b32.xlu0 %v2783, %s2785
      %v2787 = vpop.permute.xlu0 %2786
      %v2788 = vlaneseq
      %v2789 = vshrl.u32 %v2788, 7
      %v2790 = vsub.s32 5, %v2789
      %v2791 = vrot.slane %v2746, %v2790
      %s2793 = sor.u32 256, 8
      %2794 = vbcast.lane.b32.xlu0 %v2791, %s2793
      %v2795 = vpop.permute.xlu0 %2794
      %v2796 = vlaneseq
      %v2797 = vshrl.u32 %v2796, 7
      %v2798 = vsub.s32 6, %v2797
      %v2799 = vrot.slane %v2746, %v2798
      %s2801 = sor.u32 256, 8
      %2802 = vbcast.lane.b32.xlu0 %v2799, %s2801
      %v2803 = vpop.permute.xlu0 %2802
      %v2804 = vlaneseq
      %v2805 = vshrl.u32 %v2804, 7
      %v2806 = vsub.s32 7, %v2805
      %v2807 = vrot.slane %v2746, %v2806
      %s2809 = sor.u32 256, 8
      %2810 = vbcast.lane.b32.xlu0 %v2807, %s2809
      %v2811 = vpop.permute.xlu0 %2810
      %v2820 = vadd.f32 %v2724, %v2755
      %v2821 = vadd.f32 %v2727, %v2763
      %v2822 = vadd.f32 %v2730, %v2771
      %v2823 = vadd.f32 %v2733, %v2779
      %v2824 = vadd.f32 %v2736, %v2787
      %v2825 = vadd.f32 %v2739, %v2795
      %v2826 = vadd.f32 %v2742, %v2803
      %v2827 = vadd.f32 %v2745, %v2811
      %2836 = vset.pattern.permute.xlu0 0
      %2837 = vperm.xlu0 %2836, %v2820
      %v2838 = vpop.permute.xlu0 %2837
      %2839 = vset.pattern.permute.xlu0 0
      %2840 = vperm.xlu0 %2839, %v2821
      %v2841 = vpop.permute.xlu0 %2840
      %2842 = vset.pattern.permute.xlu0 0
      %2843 = vperm.xlu0 %2842, %v2822
      %v2844 = vpop.permute.xlu0 %2843
      %2845 = vset.pattern.permute.xlu0 0
      %2846 = vperm.xlu0 %2845, %v2823
      %v2847 = vpop.permute.xlu0 %2846
      %2848 = vset.pattern.permute.xlu0 0
      %2849 = vperm.xlu0 %2848, %v2824
      %v2850 = vpop.permute.xlu0 %2849
      %2851 = vset.pattern.permute.xlu0 0
      %2852 = vperm.xlu0 %2851, %v2825
      %v2853 = vpop.permute.xlu0 %2852
      %2854 = vset.pattern.permute.xlu0 0
      %2855 = vperm.xlu0 %2854, %v2826
      %v2856 = vpop.permute.xlu0 %2855
      %2857 = vset.pattern.permute.xlu0 0
      %2858 = vperm.xlu0 %2857, %v2827
      %v2859 = vpop.permute.xlu0 %2858
      %v2860 = vlaneseq
      %v2861 = vshrl.u32 %v2860, 7
      %v2862 = vsub.s32 %v1806, %v2861
      %v2863 = vrot.slane %v2838, %v2862
      %v2864 = vlaneseq
      %v2865 = vshrl.u32 %v2864, 7
      %v2866 = vsub.s32 %v1806, %v2865
      %v2867 = vrot.slane %v2841, %v2866
      %v2868 = vlaneseq
      %v2869 = vshrl.u32 %v2868, 7
      %v2870 = vsub.s32 %v1806, %v2869
      %v2871 = vrot.slane %v2844, %v2870
      %v2872 = vlaneseq
      %v2873 = vshrl.u32 %v2872, 7
      %v2874 = vsub.s32 %v1806, %v2873
      %v2875 = vrot.slane %v2847, %v2874
      %v2876 = vlaneseq
      %v2877 = vshrl.u32 %v2876, 7
      %v2878 = vsub.s32 %v1806, %v2877
      %v2879 = vrot.slane %v2850, %v2878
      %v2880 = vlaneseq
      %v2881 = vshrl.u32 %v2880, 7
      %v2882 = vsub.s32 %v1806, %v2881
      %v2883 = vrot.slane %v2853, %v2882
      %v2884 = vlaneseq
      %v2885 = vshrl.u32 %v2884, 7
      %v2886 = vsub.s32 %v1806, %v2885
      %v2887 = vrot.slane %v2856, %v2886
      %v2888 = vlaneseq
      %v2889 = vshrl.u32 %v2888, 7
      %v2890 = vsub.s32 %v1806, %v2889
      %v2891 = vrot.slane %v2859, %v2890
      %v2892 = vsel %vm1777, %v2867, %v2863
      %v2893 = vsel %vm1779, %v2871, %v2892
      %v2894 = vsel %vm1781, %v2875, %v2893
      %v2895 = vsel %vm1783, %v2879, %v2894
      %v2896 = vsel %vm1785, %v2883, %v2895
      %v2897 = vsel %vm1787, %v2887, %v2896
      %v2898 = vsel %vm1789, %v2891, %v2897
      %vm2900 = vcmask 64512
      %v2901 = vsel %vm2900, %v2898, -inf
      %2902 = vmax.xlane.f32.xlu0 %v2901
      %v2903 = vpop.xlane.xlu0 %2902
      %v2905 = vlaneseq
      %v2906 = vshrl.u32 %v2905, 7
      %v2907 = vsub.s32 0, %v2906
      %v2908 = vrot.slane %v2903, %v2907
      %v2909 = vlaneseq
      %v2910 = vshrl.u32 %v2909, 7
      %v2911 = vsub.s32 1, %v2910
      %v2912 = vrot.slane %v2903, %v2911
      %v2913 = vlaneseq
      %v2914 = vshrl.u32 %v2913, 7
      %v2915 = vsub.s32 2, %v2914
      %v2916 = vrot.slane %v2903, %v2915
      %v2917 = vlaneseq
      %v2918 = vshrl.u32 %v2917, 7
      %v2919 = vsub.s32 3, %v2918
      %v2920 = vrot.slane %v2903, %v2919
      %v2921 = vlaneseq
      %v2922 = vshrl.u32 %v2921, 7
      %v2923 = vsub.s32 4, %v2922
      %v2924 = vrot.slane %v2903, %v2923
      %v2925 = vlaneseq
      %v2926 = vshrl.u32 %v2925, 7
      %v2927 = vsub.s32 5, %v2926
      %v2928 = vrot.slane %v2903, %v2927
      %v2929 = vlaneseq
      %v2930 = vshrl.u32 %v2929, 7
      %v2931 = vsub.s32 6, %v2930
      %v2932 = vrot.slane %v2903, %v2931
      %v2933 = vlaneseq
      %v2934 = vshrl.u32 %v2933, 7
      %v2935 = vsub.s32 7, %v2934
      %v2936 = vrot.slane %v2903, %v2935
      %v2945 = vsub.f32 %v2820, %v2908
      %v2946 = vsub.f32 %v2821, %v2912
      %v2947 = vsub.f32 %v2822, %v2916
      %v2948 = vsub.f32 %v2823, %v2920
      %v2949 = vsub.f32 %v2824, %v2924
      %v2950 = vsub.f32 %v2825, %v2928
      %v2951 = vsub.f32 %v2826, %v2932
      %v2952 = vsub.f32 %v2827, %v2936
      %v2953 = vmul.f32 %v2945, 1.442695
      %v2954 = vpow.pop %v2953
      %v2955 = vmul.f32 %v2946, 1.442695
      %v2956 = vpow.pop %v2955
      %v2957 = vmul.f32 %v2947, 1.442695
      %v2958 = vpow.pop %v2957
      %v2959 = vmul.f32 %v2948, 1.442695
      %v2960 = vpow.pop %v2959
      %v2961 = vmul.f32 %v2949, 1.442695
      %v2962 = vpow.pop %v2961
      %v2963 = vmul.f32 %v2950, 1.442695
      %v2964 = vpow.pop %v2963
      %v2965 = vmul.f32 %v2951, 1.442695
      %v2966 = vpow.pop %v2965
      %v2967 = vmul.f32 %v2952, 1.442695
      %v2968 = vpow.pop %v2967
      %2977 = vset.pattern.permute.xlu0 0
      %2978 = vperm.xlu0 %2977, %v2954
      %v2979 = vpop.permute.xlu0 %2978
      %2980 = vset.pattern.permute.xlu0 0
      %2981 = vperm.xlu0 %2980, %v2956
      %v2982 = vpop.permute.xlu0 %2981
      %2983 = vset.pattern.permute.xlu0 0
      %2984 = vperm.xlu0 %2983, %v2958
      %v2985 = vpop.permute.xlu0 %2984
      %2986 = vset.pattern.permute.xlu0 0
      %2987 = vperm.xlu0 %2986, %v2960
      %v2988 = vpop.permute.xlu0 %2987
      %2989 = vset.pattern.permute.xlu0 0
      %2990 = vperm.xlu0 %2989, %v2962
      %v2991 = vpop.permute.xlu0 %2990
      %2992 = vset.pattern.permute.xlu0 0
      %2993 = vperm.xlu0 %2992, %v2964
      %v2994 = vpop.permute.xlu0 %2993
      %2995 = vset.pattern.permute.xlu0 0
      %2996 = vperm.xlu0 %2995, %v2966
      %v2997 = vpop.permute.xlu0 %2996
      %2998 = vset.pattern.permute.xlu0 0
      %2999 = vperm.xlu0 %2998, %v2968
      %v3000 = vpop.permute.xlu0 %2999
      %v3001 = vlaneseq
      %v3002 = vshrl.u32 %v3001, 7
      %v3003 = vsub.s32 %v1806, %v3002
      %v3004 = vrot.slane %v2979, %v3003
      %v3005 = vlaneseq
      %v3006 = vshrl.u32 %v3005, 7
      %v3007 = vsub.s32 %v1806, %v3006
      %v3008 = vrot.slane %v2982, %v3007
      %v3009 = vlaneseq
      %v3010 = vshrl.u32 %v3009, 7
      %v3011 = vsub.s32 %v1806, %v3010
      %v3012 = vrot.slane %v2985, %v3011
      %v3013 = vlaneseq
      %v3014 = vshrl.u32 %v3013, 7
      %v3015 = vsub.s32 %v1806, %v3014
      %v3016 = vrot.slane %v2988, %v3015
      %v3017 = vlaneseq
      %v3018 = vshrl.u32 %v3017, 7
      %v3019 = vsub.s32 %v1806, %v3018
      %v3020 = vrot.slane %v2991, %v3019
      %v3021 = vlaneseq
      %v3022 = vshrl.u32 %v3021, 7
      %v3023 = vsub.s32 %v1806, %v3022
      %v3024 = vrot.slane %v2994, %v3023
      %v3025 = vlaneseq
      %v3026 = vshrl.u32 %v3025, 7
      %v3027 = vsub.s32 %v1806, %v3026
      %v3028 = vrot.slane %v2997, %v3027
      %v3029 = vlaneseq
      %v3030 = vshrl.u32 %v3029, 7
      %v3031 = vsub.s32 %v1806, %v3030
      %v3032 = vrot.slane %v3000, %v3031
      %v3033 = vsel %vm1777, %v3008, %v3004
      %v3034 = vsel %vm1779, %v3012, %v3033
      %v3035 = vsel %vm1781, %v3016, %v3034
      %v3036 = vsel %vm1783, %v3020, %v3035
      %v3037 = vsel %vm1785, %v3024, %v3036
      %v3038 = vsel %vm1787, %v3028, %v3037
      %v3039 = vsel %vm1789, %v3032, %v3038
      %v3041 = vsel %vm2900, %v3039, 0.0
      %3042 = vadd.xlane.f32.xlu0 %v3041
      %v3043 = vpop.xlane.xlu0 %3042
      %v3044 = vlog2.pop %v3043
      %v3045 = vmul.f32 %v3044, 0.6931472
      %v3047 = vlaneseq
      %v3048 = vshrl.u32 %v3047, 7
      %v3049 = vsub.s32 0, %v3048
      %v3050 = vrot.slane %v3045, %v3049
      %v3051 = vlaneseq
      %v3052 = vshrl.u32 %v3051, 7
      %v3053 = vsub.s32 1, %v3052
      %v3054 = vrot.slane %v3045, %v3053
      %v3055 = vlaneseq
      %v3056 = vshrl.u32 %v3055, 7
      %v3057 = vsub.s32 2, %v3056
      %v3058 = vrot.slane %v3045, %v3057
      %v3059 = vlaneseq
      %v3060 = vshrl.u32 %v3059, 7
      %v3061 = vsub.s32 3, %v3060
      %v3062 = vrot.slane %v3045, %v3061
      %v3063 = vlaneseq
      %v3064 = vshrl.u32 %v3063, 7
      %v3065 = vsub.s32 4, %v3064
      %v3066 = vrot.slane %v3045, %v3065
      %v3067 = vlaneseq
      %v3068 = vshrl.u32 %v3067, 7
      %v3069 = vsub.s32 5, %v3068
      %v3070 = vrot.slane %v3045, %v3069
      %v3071 = vlaneseq
      %v3072 = vshrl.u32 %v3071, 7
      %v3073 = vsub.s32 6, %v3072
      %v3074 = vrot.slane %v3045, %v3073
      %v3075 = vlaneseq
      %v3076 = vshrl.u32 %v3075, 7
      %v3077 = vsub.s32 7, %v3076
      %v3078 = vrot.slane %v3045, %v3077
      %v3087 = vsub.f32 %v2945, %v3050
      %v3088 = vsub.f32 %v2946, %v3054
      %v3089 = vsub.f32 %v2947, %v3058
      %v3090 = vsub.f32 %v2948, %v3062
      %v3091 = vsub.f32 %v2949, %v3066
      %v3092 = vsub.f32 %v2950, %v3070
      %v3093 = vsub.f32 %v2951, %v3074
      %v3094 = vsub.f32 %v2952, %v3078
      %v3096 = vcombine.high %v1792, %v1792
      %v3098 = vunpack.c.l.s4 1966171168
      %v3099 = vunpack.c.0.s8 %v3098
      %v3100 = vlaneseq
      %v3101 = vshrl.u32 %v3100, 7
      %v3102 = vsub.s32 %v3099, %v3101
      %v3103 = vrot.slane %v1792, %v3102
      %v3105 = vunpack.c.l.s4 1966171168
      %v3106 = vunpack.c.0.s8 %v3105
      %v3107 = vlaneseq
      %v3108 = vshrl.u32 %v3107, 7
      %v3109 = vsub.s32 %v3106, %v3108
      %v3110 = vrot.slane %v3096, %v3109
      %v3111 = vcombine.high %v3103, %v3103
      %v3112 = vcombine.high %v3110, %v3110
      %v3114 = vunpack.c.l.s4 1966171168
      %v3115 = vunpack.c.0.s8 %v3114
      %v3116 = vlaneseq
      %v3117 = vshrl.u32 %v3116, 7
      %v3118 = vsub.s32 %v3115, %v3117
      %v3119 = vrot.slane %v3103, %v3118
      %v3121 = vunpack.c.l.s4 1966171168
      %v3122 = vunpack.c.0.s8 %v3121
      %v3123 = vlaneseq
      %v3124 = vshrl.u32 %v3123, 7
      %v3125 = vsub.s32 %v3122, %v3124
      %v3126 = vrot.slane %v3110, %v3125
      %v3128 = vunpack.c.l.s4 1966171168
      %v3129 = vunpack.c.0.s8 %v3128
      %v3130 = vlaneseq
      %v3131 = vshrl.u32 %v3130, 7
      %v3132 = vsub.s32 %v3129, %v3131
      %v3133 = vrot.slane %v3111, %v3132
      %v3135 = vunpack.c.l.s4 1966171168
      %v3136 = vunpack.c.0.s8 %v3135
      %v3137 = vlaneseq
      %v3138 = vshrl.u32 %v3137, 7
      %v3139 = vsub.s32 %v3136, %v3138
      %v3140 = vrot.slane %v3112, %v3139
      %v3141 = vcombine.high %v3119, %v3119
      %v3142 = vcombine.high %v3126, %v3126
      %v3143 = vcombine.high %v3133, %v3133
      %v3144 = vcombine.high %v3140, %v3140
      %v3145 = vlaneseq
      %v3146 = vshrl.u32 %v3145, 7
      %v3147 = vsub.s32 0, %v3146
      %v3148 = vrot.slane %v3119, %v3147
      %v3149 = vlaneseq
      %v3150 = vshrl.u32 %v3149, 7
      %v3151 = vsub.s32 0, %v3150
      %v3152 = vrot.slane %v3133, %v3151
      %v3153 = vlaneseq
      %v3154 = vshrl.u32 %v3153, 7
      %v3155 = vsub.s32 0, %v3154
      %v3156 = vrot.slane %v3141, %v3155
      %v3157 = vlaneseq
      %v3158 = vshrl.u32 %v3157, 7
      %v3159 = vsub.s32 0, %v3158
      %v3160 = vrot.slane %v3143, %v3159
      %v3161 = vlaneseq
      %v3162 = vshrl.u32 %v3161, 7
      %v3163 = vsub.s32 0, %v3162
      %v3164 = vrot.slane %v3126, %v3163
      %v3165 = vlaneseq
      %v3166 = vshrl.u32 %v3165, 7
      %v3167 = vsub.s32 0, %v3166
      %v3168 = vrot.slane %v3140, %v3167
      %v3169 = vlaneseq
      %v3170 = vshrl.u32 %v3169, 7
      %v3171 = vsub.s32 0, %v3170
      %v3172 = vrot.slane %v3142, %v3171
      %v3173 = vlaneseq
      %v3174 = vshrl.u32 %v3173, 7
      %v3175 = vsub.s32 0, %v3174
      %v3176 = vrot.slane %v3144, %v3175
      %v3185 = vmul.f32 %v2586, %v3148
      %v3186 = vmul.f32 %v2591, %v3152
      %v3187 = vmul.f32 %v2596, %v3156
      %v3188 = vmul.f32 %v2601, %v3160
      %v3189 = vmul.f32 %v2606, %v3164
      %v3190 = vmul.f32 %v2611, %v3168
      %v3191 = vmul.f32 %v2616, %v3172
      %v3192 = vmul.f32 %v2621, %v3176
      %v3193 = vsel %vm780, %v3185, 0.0
      %3194 = vadd.xlane.f32.xlu0 %v3193
      %v3195 = vpop.xlane.xlu0 %3194
      %v3196 = vsel %vm780, %v3186, 0.0
      %3197 = vadd.xlane.f32.xlu0 %v3196
      %v3198 = vpop.xlane.xlu0 %3197
      %v3199 = vsel %vm780, %v3187, 0.0
      %3200 = vadd.xlane.f32.xlu0 %v3199
      %v3201 = vpop.xlane.xlu0 %3200
      %v3202 = vsel %vm780, %v3188, 0.0
      %3203 = vadd.xlane.f32.xlu0 %v3202
      %v3204 = vpop.xlane.xlu0 %3203
      %v3205 = vsel %vm780, %v3189, 0.0
      %3206 = vadd.xlane.f32.xlu0 %v3205
      %v3207 = vpop.xlane.xlu0 %3206
      %v3208 = vsel %vm780, %v3190, 0.0
      %3209 = vadd.xlane.f32.xlu0 %v3208
      %v3210 = vpop.xlane.xlu0 %3209
      %v3211 = vsel %vm780, %v3191, 0.0
      %3212 = vadd.xlane.f32.xlu0 %v3211
      %v3213 = vpop.xlane.xlu0 %3212
      %v3214 = vsel %vm780, %v3192, 0.0
      %3215 = vadd.xlane.f32.xlu0 %v3214
      %v3216 = vpop.xlane.xlu0 %3215
      %v3217 = vxor.u32 %v3195, 2147483648
      %v3218 = vxor.u32 %v3198, 2147483648
      %v3219 = vxor.u32 %v3201, 2147483648
      %v3220 = vxor.u32 %v3204, 2147483648
      %v3221 = vxor.u32 %v3207, 2147483648
      %v3222 = vxor.u32 %v3210, 2147483648
      %v3223 = vxor.u32 %v3213, 2147483648
      %v3224 = vxor.u32 %v3216, 2147483648
      %v3225 = vmul.f32 %v3217, 1.442695
      %v3226 = vpow.pop %v3225
      %v3227 = vmul.f32 %v3218, 1.442695
      %v3228 = vpow.pop %v3227
      %v3229 = vmul.f32 %v3219, 1.442695
      %v3230 = vpow.pop %v3229
      %v3231 = vmul.f32 %v3220, 1.442695
      %v3232 = vpow.pop %v3231
      %v3233 = vmul.f32 %v3221, 1.442695
      %v3234 = vpow.pop %v3233
      %v3235 = vmul.f32 %v3222, 1.442695
      %v3236 = vpow.pop %v3235
      %v3237 = vmul.f32 %v3223, 1.442695
      %v3238 = vpow.pop %v3237
      %v3239 = vmul.f32 %v3224, 1.442695
      %v3240 = vpow.pop %v3239
      %v3241 = vadd.f32 %v3226, 1.0
      %v3242 = vadd.f32 %v3228, 1.0
      %v3243 = vadd.f32 %v3230, 1.0
      %v3244 = vadd.f32 %v3232, 1.0
      %v3245 = vadd.f32 %v3234, 1.0
      %v3246 = vadd.f32 %v3236, 1.0
      %v3247 = vadd.f32 %v3238, 1.0
      %v3248 = vadd.f32 %v3240, 1.0
      %v3249 = vrcp.pop %v3241
      %v3250 = vmul.f32 1.0, %v3249
      %v3251 = vrcp.pop %v3242
      %v3252 = vmul.f32 1.0, %v3251
      %v3253 = vrcp.pop %v3243
      %v3254 = vmul.f32 1.0, %v3253
      %v3255 = vrcp.pop %v3244
      %v3256 = vmul.f32 1.0, %v3255
      %v3257 = vrcp.pop %v3245
      %v3258 = vmul.f32 1.0, %v3257
      %v3259 = vrcp.pop %v3246
      %v3260 = vmul.f32 1.0, %v3259
      %v3261 = vrcp.pop %v3247
      %v3262 = vmul.f32 1.0, %v3261
      %v3263 = vrcp.pop %v3248
      %v3264 = vmul.f32 1.0, %v3263
      %v3265 = vsub.f32 1.0, %v1793
      %3267 = vset.pattern.permute.xlu0 1
      %3268 = vperm.xlu0 %3267, %v3265
      %v3269 = vpop.permute.xlu0 %3268
      %v3270 = vlaneseq
      %v3271 = vshrl.u32 %v3270, 7
      %v3272 = vsub.s32 0, %v3271
      %v3273 = vrot.slane %v3269, %v3272
      %v3274 = vlaneseq
      %v3275 = vshrl.u32 %v3274, 7
      %v3276 = vsub.s32 1, %v3275
      %v3277 = vrot.slane %v3269, %v3276
      %v3278 = vlaneseq
      %v3279 = vshrl.u32 %v3278, 7
      %v3280 = vsub.s32 2, %v3279
      %v3281 = vrot.slane %v3269, %v3280
      %v3282 = vlaneseq
      %v3283 = vshrl.u32 %v3282, 7
      %v3284 = vsub.s32 3, %v3283
      %v3285 = vrot.slane %v3269, %v3284
      %v3286 = vlaneseq
      %v3287 = vshrl.u32 %v3286, 7
      %v3288 = vsub.s32 4, %v3287
      %v3289 = vrot.slane %v3269, %v3288
      %v3290 = vlaneseq
      %v3291 = vshrl.u32 %v3290, 7
      %v3292 = vsub.s32 5, %v3291
      %v3293 = vrot.slane %v3269, %v3292
      %v3294 = vlaneseq
      %v3295 = vshrl.u32 %v3294, 7
      %v3296 = vsub.s32 6, %v3295
      %v3297 = vrot.slane %v3269, %v3296
      %v3298 = vlaneseq
      %v3299 = vshrl.u32 %v3298, 7
      %v3300 = vsub.s32 7, %v3299
      %v3301 = vrot.slane %v3269, %v3300
      %v3310 = vmul.f32 %v3250, %v3273
      %v3311 = vmul.f32 %v3252, %v3277
      %v3312 = vmul.f32 %v3254, %v3281
      %v3313 = vmul.f32 %v3256, %v3285
      %v3314 = vmul.f32 %v3258, %v3289
      %v3315 = vmul.f32 %v3260, %v3293
      %v3316 = vmul.f32 %v3262, %v3297
      %v3317 = vmul.f32 %v3264, %v3301
      %3326 = vset.pattern.permute.xlu0 0
      %3327 = vperm.xlu0 %3326, %v3087
      %v3328 = vpop.permute.xlu0 %3327
      %3329 = vset.pattern.permute.xlu0 0
      %3330 = vperm.xlu0 %3329, %v3088
      %v3331 = vpop.permute.xlu0 %3330
      %3332 = vset.pattern.permute.xlu0 0
      %3333 = vperm.xlu0 %3332, %v3089
      %v3334 = vpop.permute.xlu0 %3333
      %3335 = vset.pattern.permute.xlu0 0
      %3336 = vperm.xlu0 %3335, %v3090
      %v3337 = vpop.permute.xlu0 %3336
      %3338 = vset.pattern.permute.xlu0 0
      %3339 = vperm.xlu0 %3338, %v3091
      %v3340 = vpop.permute.xlu0 %3339
      %3341 = vset.pattern.permute.xlu0 0
      %3342 = vperm.xlu0 %3341, %v3092
      %v3343 = vpop.permute.xlu0 %3342
      %3344 = vset.pattern.permute.xlu0 0
      %3345 = vperm.xlu0 %3344, %v3093
      %v3346 = vpop.permute.xlu0 %3345
      %3347 = vset.pattern.permute.xlu0 0
      %3348 = vperm.xlu0 %3347, %v3094
      %v3349 = vpop.permute.xlu0 %3348
      %v3350 = vlaneseq
      %v3351 = vshrl.u32 %v3350, 7
      %v3352 = vsub.s32 %v1806, %v3351
      %v3353 = vrot.slane %v3328, %v3352
      %v3354 = vlaneseq
      %v3355 = vshrl.u32 %v3354, 7
      %v3356 = vsub.s32 %v1806, %v3355
      %v3357 = vrot.slane %v3331, %v3356
      %v3358 = vlaneseq
      %v3359 = vshrl.u32 %v3358, 7
      %v3360 = vsub.s32 %v1806, %v3359
      %v3361 = vrot.slane %v3334, %v3360
      %v3362 = vlaneseq
      %v3363 = vshrl.u32 %v3362, 7
      %v3364 = vsub.s32 %v1806, %v3363
      %v3365 = vrot.slane %v3337, %v3364
      %v3366 = vlaneseq
      %v3367 = vshrl.u32 %v3366, 7
      %v3368 = vsub.s32 %v1806, %v3367
      %v3369 = vrot.slane %v3340, %v3368
      %v3370 = vlaneseq
      %v3371 = vshrl.u32 %v3370, 7
      %v3372 = vsub.s32 %v1806, %v3371
      %v3373 = vrot.slane %v3343, %v3372
      %v3374 = vlaneseq
      %v3375 = vshrl.u32 %v3374, 7
      %v3376 = vsub.s32 %v1806, %v3375
      %v3377 = vrot.slane %v3346, %v3376
      %v3378 = vlaneseq
      %v3379 = vshrl.u32 %v3378, 7
      %v3380 = vsub.s32 %v1806, %v3379
      %v3381 = vrot.slane %v3349, %v3380
      %v3382 = vsel %vm1777, %v3357, %v3353
      %v3383 = vsel %vm1779, %v3361, %v3382
      %v3384 = vsel %vm1781, %v3365, %v3383
      %v3385 = vsel %vm1783, %v3369, %v3384
      %v3386 = vsel %vm1785, %v3373, %v3385
      %v3387 = vsel %vm1787, %v3377, %v3386
      %v3388 = vsel %vm1789, %v3381, %v3387
      %v3390 = vsel %vm2900, %v3388, -inf
      %3391 = vmax.xlane.f32.xlu0 %v3390
      %v3392 = vpop.xlane.xlu0 %3391
      %v3394 = vlaneseq
      %v3395 = vshrl.u32 %v3394, 7
      %v3396 = vsub.s32 0, %v3395
      %v3397 = vrot.slane %v3392, %v3396
      %v3398 = vlaneseq
      %v3399 = vshrl.u32 %v3398, 7
      %v3400 = vsub.s32 1, %v3399
      %v3401 = vrot.slane %v3392, %v3400
      %v3402 = vlaneseq
      %v3403 = vshrl.u32 %v3402, 7
      %v3404 = vsub.s32 2, %v3403
      %v3405 = vrot.slane %v3392, %v3404
      %v3406 = vlaneseq
      %v3407 = vshrl.u32 %v3406, 7
      %v3408 = vsub.s32 3, %v3407
      %v3409 = vrot.slane %v3392, %v3408
      %v3410 = vlaneseq
      %v3411 = vshrl.u32 %v3410, 7
      %v3412 = vsub.s32 4, %v3411
      %v3413 = vrot.slane %v3392, %v3412
      %v3414 = vlaneseq
      %v3415 = vshrl.u32 %v3414, 7
      %v3416 = vsub.s32 5, %v3415
      %v3417 = vrot.slane %v3392, %v3416
      %v3418 = vlaneseq
      %v3419 = vshrl.u32 %v3418, 7
      %v3420 = vsub.s32 6, %v3419
      %v3421 = vrot.slane %v3392, %v3420
      %v3422 = vlaneseq
      %v3423 = vshrl.u32 %v3422, 7
      %v3424 = vsub.s32 7, %v3423
      %v3425 = vrot.slane %v3392, %v3424
      %vm3434 = vcmp.eq.f32.partialorder %v3087, %v3397
      %vm3435 = vcmp.eq.f32.partialorder %v3088, %v3401
      %vm3436 = vcmp.eq.f32.partialorder %v3089, %v3405
      %vm3437 = vcmp.eq.f32.partialorder %v3090, %v3409
      %vm3438 = vcmp.eq.f32.partialorder %v3091, %v3413
      %vm3439 = vcmp.eq.f32.partialorder %v3092, %v3417
      %vm3440 = vcmp.eq.f32.partialorder %v3093, %v3421
      %vm3441 = vcmp.eq.f32.partialorder %v3094, %v3425
      %3444 = vbcast.lane.b32.xlu0 %v1807, 256
      %v3445 = vpop.permute.xlu0 %3444
      %v3447 = vsel %vm3434, %v3445, 8.0
      %v3448 = vsel %vm3435, %v3445, 8.0
      %v3449 = vsel %vm3436, %v3445, 8.0
      %v3450 = vsel %vm3437, %v3445, 8.0
      %v3451 = vsel %vm3438, %v3445, 8.0
      %v3452 = vsel %vm3439, %v3445, 8.0
      %v3453 = vsel %vm3440, %v3445, 8.0
      %v3454 = vsel %vm3441, %v3445, 8.0
      %3463 = vset.pattern.permute.xlu0 0
      %3464 = vperm.xlu0 %3463, %v3447
      %v3465 = vpop.permute.xlu0 %3464
      %3466 = vset.pattern.permute.xlu0 0
      %3467 = vperm.xlu0 %3466, %v3448
      %v3468 = vpop.permute.xlu0 %3467
      %3469 = vset.pattern.permute.xlu0 0
      %3470 = vperm.xlu0 %3469, %v3449
      %v3471 = vpop.permute.xlu0 %3470
      %3472 = vset.pattern.permute.xlu0 0
      %3473 = vperm.xlu0 %3472, %v3450
      %v3474 = vpop.permute.xlu0 %3473
      %3475 = vset.pattern.permute.xlu0 0
      %3476 = vperm.xlu0 %3475, %v3451
      %v3477 = vpop.permute.xlu0 %3476
      %3478 = vset.pattern.permute.xlu0 0
      %3479 = vperm.xlu0 %3478, %v3452
      %v3480 = vpop.permute.xlu0 %3479
      %3481 = vset.pattern.permute.xlu0 0
      %3482 = vperm.xlu0 %3481, %v3453
      %v3483 = vpop.permute.xlu0 %3482
      %3484 = vset.pattern.permute.xlu0 0
      %3485 = vperm.xlu0 %3484, %v3454
      %v3486 = vpop.permute.xlu0 %3485
      %v3487 = vlaneseq
      %v3488 = vshrl.u32 %v3487, 7
      %v3489 = vsub.s32 %v1806, %v3488
      %v3490 = vrot.slane %v3465, %v3489
      %v3491 = vlaneseq
      %v3492 = vshrl.u32 %v3491, 7
      %v3493 = vsub.s32 %v1806, %v3492
      %v3494 = vrot.slane %v3468, %v3493
      %v3495 = vlaneseq
      %v3496 = vshrl.u32 %v3495, 7
      %v3497 = vsub.s32 %v1806, %v3496
      %v3498 = vrot.slane %v3471, %v3497
      %v3499 = vlaneseq
      %v3500 = vshrl.u32 %v3499, 7
      %v3501 = vsub.s32 %v1806, %v3500
      %v3502 = vrot.slane %v3474, %v3501
      %v3503 = vlaneseq
      %v3504 = vshrl.u32 %v3503, 7
      %v3505 = vsub.s32 %v1806, %v3504
      %v3506 = vrot.slane %v3477, %v3505
      %v3507 = vlaneseq
      %v3508 = vshrl.u32 %v3507, 7
      %v3509 = vsub.s32 %v1806, %v3508
      %v3510 = vrot.slane %v3480, %v3509
      %v3511 = vlaneseq
      %v3512 = vshrl.u32 %v3511, 7
      %v3513 = vsub.s32 %v1806, %v3512
      %v3514 = vrot.slane %v3483, %v3513
      %v3515 = vlaneseq
      %v3516 = vshrl.u32 %v3515, 7
      %v3517 = vsub.s32 %v1806, %v3516
      %v3518 = vrot.slane %v3486, %v3517
      %v3519 = vsel %vm1777, %v3494, %v3490
      %v3520 = vsel %vm1779, %v3498, %v3519
      %v3521 = vsel %vm1781, %v3502, %v3520
      %v3522 = vsel %vm1783, %v3506, %v3521
      %v3523 = vsel %vm1785, %v3510, %v3522
      %v3524 = vsel %vm1787, %v3514, %v3523
      %v3525 = vsel %vm1789, %v3518, %v3524
      %v3527 = vsel %vm2900, %v3525, inf
      %3528 = vmin.xlane.f32.xlu0 %v3527
      %v3529 = vpop.xlane.xlu0 %3528
      %vm3530 = vcmp.eq.f32.partialorder %v1807, %v3529
      %v3531 = vsel %vm3530, 1, 0
      %v3532 = vcvt.s32.f32 %v3531
      %v3534 = vlaneseq
      %v3535 = vshrl.u32 %v3534, 7
      %v3536 = vsub.s32 0, %v3535
      %v3537 = vrot.slane %v3532, %v3536
      %3539 = vbcast.lane.b32.xlu0 %v3537, 256
      %v3540 = vpop.permute.xlu0 %3539
      %v3541 = vlaneseq
      %v3542 = vshrl.u32 %v3541, 7
      %v3543 = vsub.s32 1, %v3542
      %v3544 = vrot.slane %v3532, %v3543
      %3546 = vbcast.lane.b32.xlu0 %v3544, 256
      %v3547 = vpop.permute.xlu0 %3546
      %v3548 = vlaneseq
      %v3549 = vshrl.u32 %v3548, 7
      %v3550 = vsub.s32 2, %v3549
      %v3551 = vrot.slane %v3532, %v3550
      %3553 = vbcast.lane.b32.xlu0 %v3551, 256
      %v3554 = vpop.permute.xlu0 %3553
      %v3555 = vlaneseq
      %v3556 = vshrl.u32 %v3555, 7
      %v3557 = vsub.s32 3, %v3556
      %v3558 = vrot.slane %v3532, %v3557
      %3560 = vbcast.lane.b32.xlu0 %v3558, 256
      %v3561 = vpop.permute.xlu0 %3560
      %v3562 = vlaneseq
      %v3563 = vshrl.u32 %v3562, 7
      %v3564 = vsub.s32 4, %v3563
      %v3565 = vrot.slane %v3532, %v3564
      %3567 = vbcast.lane.b32.xlu0 %v3565, 256
      %v3568 = vpop.permute.xlu0 %3567
      %v3569 = vlaneseq
      %v3570 = vshrl.u32 %v3569, 7
      %v3571 = vsub.s32 5, %v3570
      %v3572 = vrot.slane %v3532, %v3571
      %3574 = vbcast.lane.b32.xlu0 %v3572, 256
      %v3575 = vpop.permute.xlu0 %3574
      %v3576 = vlaneseq
      %v3577 = vshrl.u32 %v3576, 7
      %v3578 = vsub.s32 6, %v3577
      %v3579 = vrot.slane %v3532, %v3578
      %3581 = vbcast.lane.b32.xlu0 %v3579, 256
      %v3582 = vpop.permute.xlu0 %3581
      %v3583 = vlaneseq
      %v3584 = vshrl.u32 %v3583, 7
      %v3585 = vsub.s32 7, %v3584
      %v3586 = vrot.slane %v3532, %v3585
      %3588 = vbcast.lane.b32.xlu0 %v3586, 256
      %v3589 = vpop.permute.xlu0 %3588
      %v3598 = vmul.f32 %v3087, %v3540
      %v3599 = vmul.f32 %v3088, %v3547
      %v3600 = vmul.f32 %v3089, %v3554
      %v3601 = vmul.f32 %v3090, %v3561
      %v3602 = vmul.f32 %v3091, %v3568
      %v3603 = vmul.f32 %v3092, %v3575
      %v3604 = vmul.f32 %v3093, %v3582
      %v3605 = vmul.f32 %v3094, %v3589
      %3614 = vset.pattern.permute.xlu0 0
      %3615 = vperm.xlu0 %3614, %v3598
      %v3616 = vpop.permute.xlu0 %3615
      %3617 = vset.pattern.permute.xlu0 0
      %3618 = vperm.xlu0 %3617, %v3599
      %v3619 = vpop.permute.xlu0 %3618
      %3620 = vset.pattern.permute.xlu0 0
      %3621 = vperm.xlu0 %3620, %v3600
      %v3622 = vpop.permute.xlu0 %3621
      %3623 = vset.pattern.permute.xlu0 0
      %3624 = vperm.xlu0 %3623, %v3601
      %v3625 = vpop.permute.xlu0 %3624
      %3626 = vset.pattern.permute.xlu0 0
      %3627 = vperm.xlu0 %3626, %v3602
      %v3628 = vpop.permute.xlu0 %3627
      %3629 = vset.pattern.permute.xlu0 0
      %3630 = vperm.xlu0 %3629, %v3603
      %v3631 = vpop.permute.xlu0 %3630
      %3632 = vset.pattern.permute.xlu0 0
      %3633 = vperm.xlu0 %3632, %v3604
      %v3634 = vpop.permute.xlu0 %3633
      %3635 = vset.pattern.permute.xlu0 0
      %3636 = vperm.xlu0 %3635, %v3605
      %v3637 = vpop.permute.xlu0 %3636
      %v3638 = vlaneseq
      %v3639 = vshrl.u32 %v3638, 7
      %v3640 = vsub.s32 %v1806, %v3639
      %v3641 = vrot.slane %v3616, %v3640
      %v3642 = vlaneseq
      %v3643 = vshrl.u32 %v3642, 7
      %v3644 = vsub.s32 %v1806, %v3643
      %v3645 = vrot.slane %v3619, %v3644
      %v3646 = vlaneseq
      %v3647 = vshrl.u32 %v3646, 7
      %v3648 = vsub.s32 %v1806, %v3647
      %v3649 = vrot.slane %v3622, %v3648
      %v3650 = vlaneseq
      %v3651 = vshrl.u32 %v3650, 7
      %v3652 = vsub.s32 %v1806, %v3651
      %v3653 = vrot.slane %v3625, %v3652
      %v3654 = vlaneseq
      %v3655 = vshrl.u32 %v3654, 7
      %v3656 = vsub.s32 %v1806, %v3655
      %v3657 = vrot.slane %v3628, %v3656
      %v3658 = vlaneseq
      %v3659 = vshrl.u32 %v3658, 7
      %v3660 = vsub.s32 %v1806, %v3659
      %v3661 = vrot.slane %v3631, %v3660
      %v3662 = vlaneseq
      %v3663 = vshrl.u32 %v3662, 7
      %v3664 = vsub.s32 %v1806, %v3663
      %v3665 = vrot.slane %v3634, %v3664
      %v3666 = vlaneseq
      %v3667 = vshrl.u32 %v3666, 7
      %v3668 = vsub.s32 %v1806, %v3667
      %v3669 = vrot.slane %v3637, %v3668
      %v3670 = vsel %vm1777, %v3645, %v3641
      %v3671 = vsel %vm1779, %v3649, %v3670
      %v3672 = vsel %vm1781, %v3653, %v3671
      %v3673 = vsel %vm1783, %v3657, %v3672
      %v3674 = vsel %vm1785, %v3661, %v3673
      %v3675 = vsel %vm1787, %v3665, %v3674
      %v3676 = vsel %vm1789, %v3669, %v3675
      %v3678 = vsel %vm2900, %v3676, 0.0
      %3679 = vadd.xlane.f32.xlu0 %v3678
      %v3680 = vpop.xlane.xlu0 %3679
      %v3681 = vsub.f32 0.0, %v3680
      %v3682 = vmul.f32 %v3310, %v3540
      %v3683 = vmul.f32 %v3311, %v3547
      %v3684 = vmul.f32 %v3312, %v3554
      %v3685 = vmul.f32 %v3313, %v3561
      %v3686 = vmul.f32 %v3314, %v3568
      %v3687 = vmul.f32 %v3315, %v3575
      %v3688 = vmul.f32 %v3316, %v3582
      %v3689 = vmul.f32 %v3317, %v3589
      %3698 = vset.pattern.permute.xlu0 0
      %3699 = vperm.xlu0 %3698, %v3682
      %v3700 = vpop.permute.xlu0 %3699
      %3701 = vset.pattern.permute.xlu0 0
      %3702 = vperm.xlu0 %3701, %v3683
      %v3703 = vpop.permute.xlu0 %3702
      %3704 = vset.pattern.permute.xlu0 0
      %3705 = vperm.xlu0 %3704, %v3684
      %v3706 = vpop.permute.xlu0 %3705
      %3707 = vset.pattern.permute.xlu0 0
      %3708 = vperm.xlu0 %3707, %v3685
      %v3709 = vpop.permute.xlu0 %3708
      %3710 = vset.pattern.permute.xlu0 0
      %3711 = vperm.xlu0 %3710, %v3686
      %v3712 = vpop.permute.xlu0 %3711
      %3713 = vset.pattern.permute.xlu0 0
      %3714 = vperm.xlu0 %3713, %v3687
      %v3715 = vpop.permute.xlu0 %3714
      %3716 = vset.pattern.permute.xlu0 0
      %3717 = vperm.xlu0 %3716, %v3688
      %v3718 = vpop.permute.xlu0 %3717
      %3719 = vset.pattern.permute.xlu0 0
      %3720 = vperm.xlu0 %3719, %v3689
      %v3721 = vpop.permute.xlu0 %3720
      %v3722 = vlaneseq
      %v3723 = vshrl.u32 %v3722, 7
      %v3724 = vsub.s32 %v1806, %v3723
      %v3725 = vrot.slane %v3700, %v3724
      %v3726 = vlaneseq
      %v3727 = vshrl.u32 %v3726, 7
      %v3728 = vsub.s32 %v1806, %v3727
      %v3729 = vrot.slane %v3703, %v3728
      %v3730 = vlaneseq
      %v3731 = vshrl.u32 %v3730, 7
      %v3732 = vsub.s32 %v1806, %v3731
      %v3733 = vrot.slane %v3706, %v3732
      %v3734 = vlaneseq
      %v3735 = vshrl.u32 %v3734, 7
      %v3736 = vsub.s32 %v1806, %v3735
      %v3737 = vrot.slane %v3709, %v3736
      %v3738 = vlaneseq
      %v3739 = vshrl.u32 %v3738, 7
      %v3740 = vsub.s32 %v1806, %v3739
      %v3741 = vrot.slane %v3712, %v3740
      %v3742 = vlaneseq
      %v3743 = vshrl.u32 %v3742, 7
      %v3744 = vsub.s32 %v1806, %v3743
      %v3745 = vrot.slane %v3715, %v3744
      %v3746 = vlaneseq
      %v3747 = vshrl.u32 %v3746, 7
      %v3748 = vsub.s32 %v1806, %v3747
      %v3749 = vrot.slane %v3718, %v3748
      %v3750 = vlaneseq
      %v3751 = vshrl.u32 %v3750, 7
      %v3752 = vsub.s32 %v1806, %v3751
      %v3753 = vrot.slane %v3721, %v3752
      %v3754 = vsel %vm1777, %v3729, %v3725
      %v3755 = vsel %vm1779, %v3733, %v3754
      %v3756 = vsel %vm1781, %v3737, %v3755
      %v3757 = vsel %vm1783, %v3741, %v3756
      %v3758 = vsel %vm1785, %v3745, %v3757
      %v3759 = vsel %vm1787, %v3749, %v3758
      %v3760 = vsel %vm1789, %v3753, %v3759
      %v3762 = vsel %vm2900, %v3760, 0.0
      %3763 = vadd.xlane.f32.xlu0 %v3762
      %v3764 = vpop.xlane.xlu0 %3763
      %v3765 = vmul.f32 %v2195, %v3532
      %v3766 = vsel %vm2900, %v3765, 0.0
      %3767 = vadd.xlane.f32.xlu0 %v3766
      %v3768 = vpop.xlane.xlu0 %3767
      %3769 = vrot.lane.b32.xlu0 %v3532, 8
      %v3770 = vpop.permute.xlu0 %3769
      %v3772 = vmul.f32 %v2195, %v3770
      %3774 = vrot.lane.b32.xlu0 %v3772, 120
      %v3775 = vpop.permute.xlu0 %3774
      %v3777 = vsel %vm2900, %v3775, 0.0
      %3778 = vadd.xlane.f32.xlu0 %v3777
      %v3779 = vpop.xlane.xlu0 %3778
      %3780 = vrot.lane.b32.xlu0 %v3532, 16
      %v3781 = vpop.permute.xlu0 %3780
      %v3783 = vmul.f32 %v2195, %v3781
      %3785 = vrot.lane.b32.xlu0 %v3783, 112
      %v3786 = vpop.permute.xlu0 %3785
      %v3788 = vsel %vm2900, %v3786, 0.0
      %3789 = vadd.xlane.f32.xlu0 %v3788
      %v3790 = vpop.xlane.xlu0 %3789
      %v3791 = vmul.f32 %v3681, %v1810
      %v3792 = vmul.f32 %v3529, %v1813
      %v3793 = vadd.f32 %v3791, %v3792
      %v3794 = vmul.f32 %v3764, %v1816
      %v3795 = vadd.f32 %v3793, %v3794
      %v3796 = vmul.f32 %v3779, %v1819
      %v3797 = vadd.f32 %v3795, %v3796
      %v3798 = vmul.f32 %v3790, %v1822
      %v3799 = vadd.f32 %v3797, %v3798
      %v3800 = vmul.f32 %v3768, %v1825
      %v3801 = vadd.f32 %v3799, %v3800
      %3803 = vrot.lane.b32.xlu0 %v3801, 8
      %v3804 = vpop.permute.xlu0 %3803
      %v3806 = vsel %vm2900, %v3388, %v3804
      %vm3807 = vcmask 130048
      %v3808 = vsel %vm3807, %v3806, 0.0
      %v3809 = vlaneseq
      %v3810 = vshrl.u32 %v3809, 7
      %v3811 = vsub.s32 0, %v3810
      %v3812 = vrot.slane %v3532, %v3811
      %3814 = vbcast.lane.b32.xlu0 %v3812, 256
      %v3815 = vpop.permute.xlu0 %3814
      %v3816 = vlaneseq
      %v3817 = vshrl.u32 %v3816, 7
      %v3818 = vsub.s32 1, %v3817
      %v3819 = vrot.slane %v3532, %v3818
      %3821 = vbcast.lane.b32.xlu0 %v3819, 256
      %v3822 = vpop.permute.xlu0 %3821
      %v3823 = vlaneseq
      %v3824 = vshrl.u32 %v3823, 7
      %v3825 = vsub.s32 2, %v3824
      %v3826 = vrot.slane %v3532, %v3825
      %3828 = vbcast.lane.b32.xlu0 %v3826, 256
      %v3829 = vpop.permute.xlu0 %3828
      %v3830 = vlaneseq
      %v3831 = vshrl.u32 %v3830, 7
      %v3832 = vsub.s32 3, %v3831
      %v3833 = vrot.slane %v3532, %v3832
      %3835 = vbcast.lane.b32.xlu0 %v3833, 256
      %v3836 = vpop.permute.xlu0 %3835
      %v3837 = vlaneseq
      %v3838 = vshrl.u32 %v3837, 7
      %v3839 = vsub.s32 4, %v3838
      %v3840 = vrot.slane %v3532, %v3839
      %3842 = vbcast.lane.b32.xlu0 %v3840, 256
      %v3843 = vpop.permute.xlu0 %3842
      %v3844 = vlaneseq
      %v3845 = vshrl.u32 %v3844, 7
      %v3846 = vsub.s32 5, %v3845
      %v3847 = vrot.slane %v3532, %v3846
      %3849 = vbcast.lane.b32.xlu0 %v3847, 256
      %v3850 = vpop.permute.xlu0 %3849
      %v3851 = vlaneseq
      %v3852 = vshrl.u32 %v3851, 7
      %v3853 = vsub.s32 6, %v3852
      %v3854 = vrot.slane %v3532, %v3853
      %3856 = vbcast.lane.b32.xlu0 %v3854, 256
      %v3857 = vpop.permute.xlu0 %3856
      %v3858 = vlaneseq
      %v3859 = vshrl.u32 %v3858, 7
      %v3860 = vsub.s32 7, %v3859
      %v3861 = vrot.slane %v3532, %v3860
      %3863 = vbcast.lane.b32.xlu0 %v3861, 256
      %v3864 = vpop.permute.xlu0 %3863
      %v3865 = vmul.f32 %v2586, %v3815
      %v3866 = vmul.f32 %v2591, %v3822
      %v3867 = vmul.f32 %v2596, %v3829
      %v3868 = vmul.f32 %v2601, %v3836
      %v3869 = vmul.f32 %v2606, %v3843
      %v3870 = vmul.f32 %v2611, %v3850
      %v3871 = vmul.f32 %v2616, %v3857
      %v3872 = vmul.f32 %v2621, %v3864
      %v3873 = vsel %vm780, %v3865, 0.0
      %v3874 = vrot.slane %v3873, 4
      %v3875 = vadd.f32 %v3873, %v3874
      %v3876 = vrot.slane %v3875, 2
      %v3877 = vadd.f32 %v3875, %v3876
      %v3878 = vrot.slane %v3877, 1
      %v3879 = vadd.f32 %v3877, %v3878
      %v3880 = vsel %vm780, %v3866, 0.0
      %v3881 = vrot.slane %v3880, 4
      %v3882 = vadd.f32 %v3880, %v3881
      %v3883 = vrot.slane %v3882, 2
      %v3884 = vadd.f32 %v3882, %v3883
      %v3885 = vrot.slane %v3884, 1
      %v3886 = vadd.f32 %v3884, %v3885
      %v3887 = vsel %vm780, %v3867, 0.0
      %v3888 = vrot.slane %v3887, 4
      %v3889 = vadd.f32 %v3887, %v3888
      %v3890 = vrot.slane %v3889, 2
      %v3891 = vadd.f32 %v3889, %v3890
      %v3892 = vrot.slane %v3891, 1
      %v3893 = vadd.f32 %v3891, %v3892
      %v3894 = vsel %vm780, %v3868, 0.0
      %v3895 = vrot.slane %v3894, 4
      %v3896 = vadd.f32 %v3894, %v3895
      %v3897 = vrot.slane %v3896, 2
      %v3898 = vadd.f32 %v3896, %v3897
      %v3899 = vrot.slane %v3898, 1
      %v3900 = vadd.f32 %v3898, %v3899
      %v3901 = vsel %vm780, %v3869, 0.0
      %v3902 = vrot.slane %v3901, 4
      %v3903 = vadd.f32 %v3901, %v3902
      %v3904 = vrot.slane %v3903, 2
      %v3905 = vadd.f32 %v3903, %v3904
      %v3906 = vrot.slane %v3905, 1
      %v3907 = vadd.f32 %v3905, %v3906
      %v3908 = vsel %vm780, %v3870, 0.0
      %v3909 = vrot.slane %v3908, 4
      %v3910 = vadd.f32 %v3908, %v3909
      %v3911 = vrot.slane %v3910, 2
      %v3912 = vadd.f32 %v3910, %v3911
      %v3913 = vrot.slane %v3912, 1
      %v3914 = vadd.f32 %v3912, %v3913
      %v3915 = vsel %vm780, %v3871, 0.0
      %v3916 = vrot.slane %v3915, 4
      %v3917 = vadd.f32 %v3915, %v3916
      %v3918 = vrot.slane %v3917, 2
      %v3919 = vadd.f32 %v3917, %v3918
      %v3920 = vrot.slane %v3919, 1
      %v3921 = vadd.f32 %v3919, %v3920
      %v3922 = vsel %vm780, %v3872, 0.0
      %v3923 = vrot.slane %v3922, 4
      %v3924 = vadd.f32 %v3922, %v3923
      %v3925 = vrot.slane %v3924, 2
      %v3926 = vadd.f32 %v3924, %v3925
      %v3927 = vrot.slane %v3926, 1
      %v3928 = vadd.f32 %v3926, %v3927
      %v3937 = vsel %vm1777, %v3886, %v3879
      %v3938 = vsel %vm1779, %v3893, %v3937
      %v3939 = vsel %vm1781, %v3900, %v3938
      %v3940 = vsel %vm1783, %v3907, %v3939
      %v3941 = vsel %vm1785, %v3914, %v3940
      %v3942 = vsel %vm1787, %v3921, %v3941
      %v3943 = vsel %vm1789, %v3928, %v3942
      %3945 = vrot.lane.b32.xlu0 %v1940, 96
      %v3946 = vpop.permute.xlu0 %3945
      %v3948 = vsel %vm780, %v3943, %v3946
      %v3950 = vsel %vm1843, %v3948, 0
      %3952 = vmatprep.subr.mxu0 0.0
      %3953 = vmatpush1.msra.mxu0 %v1827
      %3954 = vmatprep.subr.mxu0 0.0
      %3955 = vmatpush1.msra.mxu0 %v1828
      %3956 = vmatprep.subr.mxu0 0.0
      %3957 = vmatpush1.msra.mxu0 %v1829
      %3958 = vmatprep.subr.mxu0 0.0
      %3959 = vmatpush1.msra.mxu0 %v1830
      %3960 = vmatprep.subr.mxu0 0.0
      %3961 = vmatpush1.msra.mxu0 %v1831
      %3962 = vmatprep.subr.mxu0 0.0
      %3963 = vmatpush1.msra.mxu0 %v1832
      %3964 = vmatprep.subr.mxu0 0.0
      %3965 = vmatpush1.msra.mxu0 %v1833
      %3966 = vmatprep.subr.mxu0 0.0
      %3967 = vmatpush1.msra.mxu0 %v1834
      %3968 = vmatprep.subr.mxu0 0.0
      %3969 = vmatpush1.msra.mxu0 %v1835
      %3970 = vmatprep.subr.mxu0 0.0
      %3971 = vmatpush1.msra.mxu0 %v1836
      %3972 = vmatprep.subr.mxu0 0.0
      %3973 = vmatpush1.msra.mxu0 %v1837
      %3974 = vmatprep.subr.mxu0 0.0
      %3975 = vmatpush1.msra.mxu0 %v1838
      %3976 = vmatprep.subr.mxu0 0.0
      %3977 = vmatpush1.msra.mxu0 0.0
      %3978 = vmatprep.subr.mxu0 0.0
      %3979 = vmatpush1.msra.mxu0 0.0
      %3980 = vmatprep.subr.mxu0 0.0
      %3981 = vmatpush1.msra.mxu0 0.0
      %3982 = vmatprep.subr.mxu0 0.0
      %3983 = vmatpush1.msra.mxu0 0.0
      %3984 = vmatprep.subr.mxu0 0.0
      %3985 = vmatpush1.msra.mxu0 0.0
      %3986 = vmatprep.subr.mxu0 0.0
      %3987 = vmatpush1.msra.mxu0 0.0
      %3988 = vmatprep.subr.mxu0 0.0
      %3989 = vmatpush1.msra.mxu0 0.0
      %3990 = vmatprep.subr.mxu0 0.0
      %3991 = vmatpush1.msra.mxu0 0.0
      %3992 = vmatprep.subr.mxu0 0.0
      %3993 = vmatpush1.msra.mxu0 0.0
      %3994 = vmatprep.subr.mxu0 0.0
      %3995 = vmatpush1.msra.mxu0 0.0
      %3996 = vmatprep.subr.mxu0 0.0
      %3997 = vmatpush1.msra.mxu0 0.0
      %3998 = vmatprep.subr.mxu0 0.0
      %3999 = vmatpush1.msra.mxu0 0.0
      %4000 = vmatprep.subr.mxu0 0.0
      %4001 = vmatpush1.msra.mxu0 0.0
      %4002 = vmatprep.subr.mxu0 0.0
      %4003 = vmatpush1.msra.mxu0 0.0
      %4004 = vmatprep.subr.mxu0 0.0
      %4005 = vmatpush1.msra.mxu0 0.0
      %4006 = vmatprep.subr.mxu0 0.0
      %4007 = vmatpush1.msra.mxu0 0.0
      %4008 = vmatprep.subr.mxu0 0.0
      %4009 = vmatpush1.msra.mxu0 0.0
      %4010 = vmatprep.subr.mxu0 0.0
      %4011 = vmatpush1.msra.mxu0 0.0
      %4012 = vmatprep.subr.mxu0 0.0
      %4013 = vmatpush1.msra.mxu0 0.0
      %4014 = vmatprep.subr.mxu0 0.0
      %4015 = vmatpush1.msra.mxu0 0.0
      %4016 = vmatprep.mubr.f32.mxu0 0.0
      %4017 = vmatmul.mubr.f32.gmra.mrb[0].mxu0 %v3950
      %v4018 = vpop.f32.mrb[0].mxu0
      %v4019 = vadd.f32 %v1842, %v4018
      %v4020 = vpop.f32.mrb[0].mxu0
      %4021 = vdwg.mxu0
      %v4022 = vxor.u32 %v4019, 2147483648
      %v4023 = vmul.f32 %v4022, 1.442695
      %v4024 = vpow.pop %v4023
      %v4025 = vadd.f32 %v4024, 1.0
      %v4026 = vrcp.pop %v4025
      %v4027 = vmul.f32 1.0, %v4026
      %v4028 = vtanh.pop %v4019
      %v4029 = vmul.f32 %v4027, %v1934
      %4031 = vrot.lane.b32.xlu0 %v4028, 64
      %v4032 = vpop.permute.xlu0 %4031
      %v4034 = vmul.f32 %v4027, %v4032
      %4036 = vrot.lane.b32.xlu0 %v4034, 32
      %v4037 = vpop.permute.xlu0 %4036
      %v4039 = vadd.f32 %v4029, %v4037
      %v4040 = vtanh.pop %v4039
      %4042 = vrot.lane.b32.xlu0 %v4040, 64
      %v4043 = vpop.permute.xlu0 %4042
      %v4045 = vmul.f32 %v4027, %v4043
      %4047 = vrot.lane.b32.xlu0 %v4045, 32
      %v4048 = vpop.permute.xlu0 %4047
      %v4049 = vsel %vm481, %v4048, 0
      %4051 = vmatprep.subr.mxu0 0.0
      %4052 = vmatpush1.msra.mxu0 %v1942
      %4053 = vmatprep.subr.mxu0 0.0
      %4054 = vmatpush1.msra.mxu0 %v1943
      %4055 = vmatprep.subr.mxu0 0.0
      %4056 = vmatpush1.msra.mxu0 %v1944
      %4057 = vmatprep.subr.mxu0 0.0
      %4058 = vmatpush1.msra.mxu0 %v1945
      %4059 = vmatprep.subr.mxu0 0.0
      %4060 = vmatpush1.msra.mxu0 0.0
      %4061 = vmatprep.subr.mxu0 0.0
      %4062 = vmatpush1.msra.mxu0 0.0
      %4063 = vmatprep.subr.mxu0 0.0
      %4064 = vmatpush1.msra.mxu0 0.0
      %4065 = vmatprep.subr.mxu0 0.0
      %4066 = vmatpush1.msra.mxu0 0.0
      %4067 = vmatprep.subr.mxu0 0.0
      %4068 = vmatpush1.msra.mxu0 0.0
      %4069 = vmatprep.subr.mxu0 0.0
      %4070 = vmatpush1.msra.mxu0 0.0
      %4071 = vmatprep.subr.mxu0 0.0
      %4072 = vmatpush1.msra.mxu0 0.0
      %4073 = vmatprep.subr.mxu0 0.0
      %4074 = vmatpush1.msra.mxu0 0.0
      %4075 = vmatprep.subr.mxu0 0.0
      %4076 = vmatpush1.msra.mxu0 0.0
      %4077 = vmatprep.subr.mxu0 0.0
      %4078 = vmatpush1.msra.mxu0 0.0
      %4079 = vmatprep.subr.mxu0 0.0
      %4080 = vmatpush1.msra.mxu0 0.0
      %4081 = vmatprep.subr.mxu0 0.0
      %4082 = vmatpush1.msra.mxu0 0.0
      %4083 = vmatprep.subr.mxu0 0.0
      %4084 = vmatpush1.msra.mxu0 0.0
      %4085 = vmatprep.subr.mxu0 0.0
      %4086 = vmatpush1.msra.mxu0 0.0
      %4087 = vmatprep.subr.mxu0 0.0
      %4088 = vmatpush1.msra.mxu0 0.0
      %4089 = vmatprep.subr.mxu0 0.0
      %4090 = vmatpush1.msra.mxu0 0.0
      %4091 = vmatprep.subr.mxu0 0.0
      %4092 = vmatpush1.msra.mxu0 0.0
      %4093 = vmatprep.subr.mxu0 0.0
      %4094 = vmatpush1.msra.mxu0 0.0
      %4095 = vmatprep.subr.mxu0 0.0
      %4096 = vmatpush1.msra.mxu0 0.0
      %4097 = vmatprep.subr.mxu0 0.0
      %4098 = vmatpush1.msra.mxu0 0.0
      %4099 = vmatprep.subr.mxu0 0.0
      %4100 = vmatpush1.msra.mxu0 0.0
      %4101 = vmatprep.subr.mxu0 0.0
      %4102 = vmatpush1.msra.mxu0 0.0
      %4103 = vmatprep.subr.mxu0 0.0
      %4104 = vmatpush1.msra.mxu0 0.0
      %4105 = vmatprep.subr.mxu0 0.0
      %4106 = vmatpush1.msra.mxu0 0.0
      %4107 = vmatprep.subr.mxu0 0.0
      %4108 = vmatpush1.msra.mxu0 0.0
      %4109 = vmatprep.subr.mxu0 0.0
      %4110 = vmatpush1.msra.mxu0 0.0
      %4111 = vmatprep.subr.mxu0 0.0
      %4112 = vmatpush1.msra.mxu0 0.0
      %4113 = vmatprep.subr.mxu0 0.0
      %4114 = vmatpush1.msra.mxu0 0.0
      %4115 = vmatprep.mubr.f32.mxu0 0.0
      %4116 = vmatmul.mubr.f32.gmra.mrb[0].mxu0 %v4049
      %v4117 = vpop.f32.mrb[0].mxu0
      %v4118 = vadd.f32 %v1804, %v4117
      %v4119 = vpop.f32.mrb[0].mxu0
      %4120 = vdwg.mxu0
      %v4121 = vmax.f32 %v4118, 0.0
      %4122 = vmatprep.subr.mxu0 0.0
      %4123 = vmatpush1.msra.mxu0 %v2023
      %4124 = vmatprep.subr.mxu0 0.0
      %4125 = vmatpush1.msra.mxu0 %v2024
      %4126 = vmatprep.subr.mxu0 0.0
      %4127 = vmatpush1.msra.mxu0 %v2025
      %4128 = vmatprep.subr.mxu0 0.0
      %4129 = vmatpush1.msra.mxu0 %v2026
      %4130 = vmatprep.subr.mxu0 0.0
      %4131 = vmatpush1.msra.mxu0 %v2027
      %4132 = vmatprep.subr.mxu0 0.0
      %4133 = vmatpush1.msra.mxu0 %v2028
      %4134 = vmatprep.subr.mxu0 0.0
      %4135 = vmatpush1.msra.mxu0 %v2029
      %4136 = vmatprep.subr.mxu0 0.0
      %4137 = vmatpush1.msra.mxu0 %v2030
      %4138 = vmatprep.subr.mxu0 0.0
      %4139 = vmatpush1.msra.mxu0 %v2031
      %4140 = vmatprep.subr.mxu0 0.0
      %4141 = vmatpush1.msra.mxu0 %v2032
      %4142 = vmatprep.subr.mxu0 0.0
      %4143 = vmatpush1.msra.mxu0 %v2033
      %4144 = vmatprep.subr.mxu0 0.0
      %4145 = vmatpush1.msra.mxu0 %v2034
      %4146 = vmatprep.subr.mxu0 0.0
      %4147 = vmatpush1.msra.mxu0 %v2035
      %4148 = vmatprep.subr.mxu0 0.0
      %4149 = vmatpush1.msra.mxu0 %v2036
      %4150 = vmatprep.subr.mxu0 0.0
      %4151 = vmatpush1.msra.mxu0 %v2037
      %4152 = vmatprep.subr.mxu0 0.0
      %4153 = vmatpush1.msra.mxu0 %v2038
      %4154 = vmatprep.subr.mxu0 0.0
      %4155 = vmatpush1.msra.mxu0 0.0
      %4156 = vmatprep.subr.mxu0 0.0
      %4157 = vmatpush1.msra.mxu0 0.0
      %4158 = vmatprep.subr.mxu0 0.0
      %4159 = vmatpush1.msra.mxu0 0.0
      %4160 = vmatprep.subr.mxu0 0.0
      %4161 = vmatpush1.msra.mxu0 0.0
      %4162 = vmatprep.subr.mxu0 0.0
      %4163 = vmatpush1.msra.mxu0 0.0
      %4164 = vmatprep.subr.mxu0 0.0
      %4165 = vmatpush1.msra.mxu0 0.0
      %4166 = vmatprep.subr.mxu0 0.0
      %4167 = vmatpush1.msra.mxu0 0.0
      %4168 = vmatprep.subr.mxu0 0.0
      %4169 = vmatpush1.msra.mxu0 0.0
      %4170 = vmatprep.subr.mxu0 0.0
      %4171 = vmatpush1.msra.mxu0 0.0
      %4172 = vmatprep.subr.mxu0 0.0
      %4173 = vmatpush1.msra.mxu0 0.0
      %4174 = vmatprep.subr.mxu0 0.0
      %4175 = vmatpush1.msra.mxu0 0.0
      %4176 = vmatprep.subr.mxu0 0.0
      %4177 = vmatpush1.msra.mxu0 0.0
      %4178 = vmatprep.subr.mxu0 0.0
      %4179 = vmatpush1.msra.mxu0 0.0
      %4180 = vmatprep.subr.mxu0 0.0
      %4181 = vmatpush1.msra.mxu0 0.0
      %4182 = vmatprep.subr.mxu0 0.0
      %4183 = vmatpush1.msra.mxu0 0.0
      %4184 = vmatprep.subr.mxu0 0.0
      %4185 = vmatpush1.msra.mxu0 0.0
      %4186 = vmatprep.mubr.f32.mxu0 0.0
      %4187 = vmatmul.mubr.f32.gmra.mrb[0].mxu0 %v4121
      %v4188 = vpop.f32.mrb[0].mxu0
      %v4189 = vadd.f32 %v2042, %v4188
      %v4190 = vpop.f32.mrb[0].mxu0
      %4191 = vdwg.mxu0
      %vm4192 = vcmp.eq.f32.partialorder %v3779, %v1807
      %v4193 = vsel %vm4192, 1, 0
      %v4194 = vcvt.s32.f32 %v4193
      %v4196 = vsel %vm2124, %v4194, 0
      %4198 = vmatprep.subr.mxu0 0.0
      %4199 = vmatpush1.msra.mxu0 %v2121
      %4200 = vmatprep.subr.mxu0 0.0
      %4201 = vmatpush1.msra.mxu0 %v2122
      %4202 = vmatprep.subr.mxu0 0.0
      %4203 = vmatpush1.msra.mxu0 %v2123
      %4204 = vmatprep.subr.mxu0 0.0
      %4205 = vmatpush1.msra.mxu0 0.0
      %4206 = vmatprep.subr.mxu0 0.0
      %4207 = vmatpush1.msra.mxu0 0.0
      %4208 = vmatprep.subr.mxu0 0.0
      %4209 = vmatpush1.msra.mxu0 0.0
      %4210 = vmatprep.subr.mxu0 0.0
      %4211 = vmatpush1.msra.mxu0 0.0
      %4212 = vmatprep.subr.mxu0 0.0
      %4213 = vmatpush1.msra.mxu0 0.0
      %4214 = vmatprep.subr.mxu0 0.0
      %4215 = vmatpush1.msra.mxu0 0.0
      %4216 = vmatprep.subr.mxu0 0.0
      %4217 = vmatpush1.msra.mxu0 0.0
      %4218 = vmatprep.subr.mxu0 0.0
      %4219 = vmatpush1.msra.mxu0 0.0
      %4220 = vmatprep.subr.mxu0 0.0
      %4221 = vmatpush1.msra.mxu0 0.0
      %4222 = vmatprep.subr.mxu0 0.0
      %4223 = vmatpush1.msra.mxu0 0.0
      %4224 = vmatprep.subr.mxu0 0.0
      %4225 = vmatpush1.msra.mxu0 0.0
      %4226 = vmatprep.subr.mxu0 0.0
      %4227 = vmatpush1.msra.mxu0 0.0
      %4228 = vmatprep.subr.mxu0 0.0
      %4229 = vmatpush1.msra.mxu0 0.0
      %4230 = vmatprep.subr.mxu0 0.0
      %4231 = vmatpush1.msra.mxu0 0.0
      %4232 = vmatprep.subr.mxu0 0.0
      %4233 = vmatpush1.msra.mxu0 0.0
      %4234 = vmatprep.subr.mxu0 0.0
      %4235 = vmatpush1.msra.mxu0 0.0
      %4236 = vmatprep.subr.mxu0 0.0
      %4237 = vmatpush1.msra.mxu0 0.0
      %4238 = vmatprep.subr.mxu0 0.0
      %4239 = vmatpush1.msra.mxu0 0.0
      %4240 = vmatprep.subr.mxu0 0.0
      %4241 = vmatpush1.msra.mxu0 0.0
      %4242 = vmatprep.subr.mxu0 0.0
      %4243 = vmatpush1.msra.mxu0 0.0
      %4244 = vmatprep.subr.mxu0 0.0
      %4245 = vmatpush1.msra.mxu0 0.0
      %4246 = vmatprep.subr.mxu0 0.0
      %4247 = vmatpush1.msra.mxu0 0.0
      %4248 = vmatprep.subr.mxu0 0.0
      %4249 = vmatpush1.msra.mxu0 0.0
      %4250 = vmatprep.subr.mxu0 0.0
      %4251 = vmatpush1.msra.mxu0 0.0
      %4252 = vmatprep.subr.mxu0 0.0
      %4253 = vmatpush1.msra.mxu0 0.0
      %4254 = vmatprep.subr.mxu0 0.0
      %4255 = vmatpush1.msra.mxu0 0.0
      %4256 = vmatprep.subr.mxu0 0.0
      %4257 = vmatpush1.msra.mxu0 0.0
      %4258 = vmatprep.subr.mxu0 0.0
      %4259 = vmatpush1.msra.mxu0 0.0
      %4260 = vmatprep.subr.mxu0 0.0
      %4261 = vmatpush1.msra.mxu0 0.0
      %4262 = vmatprep.mubr.f32.mxu0 0.0
      %4263 = vmatmul.mubr.f32.gmra.mrb[0].mxu0 %v4196
      %v4264 = vpop.f32.mrb[0].mxu0
      %v4265 = vadd.f32 0.0, %v4264
      %v4266 = vpop.f32.mrb[0].mxu0
      %4267 = vdwg.mxu0
      %v4268 = vsub.f32 %v2200, %v4265
      %vm4269 = vcmp.eq.f32.partialorder %v4265, 16.0
      %v4270 = vsel %vm4269, 1, 0
      %v4271 = vcvt.s32.f32 %v4270
      %v4272 = vsub.f32 %v4268, -32.0
      %v4273 = vmax.f32 %v4272, 0.0
      %v4274 = vmin.f32 %v4273, 63.0
      %v4275 = vadd.f32 %v4274, 24.0
      %v4276 = vadd.f32 %v4265, 88.0
      %v4277 = vlaneseq
      %v4278 = vshrl.u32 %v4277, 7
      %v4279 = vsub.s32 0, %v4278
      %v4280 = vrot.slane %v4265, %v4279
      %s4282 = sor.u32 256, 8
      %4283 = vbcast.lane.b32.xlu0 %v4280, %s4282
      %v4284 = vpop.permute.xlu0 %4283
      %v4285 = vlaneseq
      %v4286 = vshrl.u32 %v4285, 7
      %v4287 = vsub.s32 1, %v4286
      %v4288 = vrot.slane %v4265, %v4287
      %s4290 = sor.u32 256, 8
      %4291 = vbcast.lane.b32.xlu0 %v4288, %s4290
      %v4292 = vpop.permute.xlu0 %4291
      %v4293 = vlaneseq
      %v4294 = vshrl.u32 %v4293, 7
      %v4295 = vsub.s32 2, %v4294
      %v4296 = vrot.slane %v4265, %v4295
      %s4298 = sor.u32 256, 8
      %4299 = vbcast.lane.b32.xlu0 %v4296, %s4298
      %v4300 = vpop.permute.xlu0 %4299
      %v4301 = vlaneseq
      %v4302 = vshrl.u32 %v4301, 7
      %v4303 = vsub.s32 3, %v4302
      %v4304 = vrot.slane %v4265, %v4303
      %s4306 = sor.u32 256, 8
      %4307 = vbcast.lane.b32.xlu0 %v4304, %s4306
      %v4308 = vpop.permute.xlu0 %4307
      %v4309 = vlaneseq
      %v4310 = vshrl.u32 %v4309, 7
      %v4311 = vsub.s32 4, %v4310
      %v4312 = vrot.slane %v4265, %v4311
      %s4314 = sor.u32 256, 8
      %4315 = vbcast.lane.b32.xlu0 %v4312, %s4314
      %v4316 = vpop.permute.xlu0 %4315
      %v4317 = vlaneseq
      %v4318 = vshrl.u32 %v4317, 7
      %v4319 = vsub.s32 5, %v4318
      %v4320 = vrot.slane %v4265, %v4319
      %s4322 = sor.u32 256, 8
      %4323 = vbcast.lane.b32.xlu0 %v4320, %s4322
      %v4324 = vpop.permute.xlu0 %4323
      %v4325 = vlaneseq
      %v4326 = vshrl.u32 %v4325, 7
      %v4327 = vsub.s32 6, %v4326
      %v4328 = vrot.slane %v4265, %v4327
      %s4330 = sor.u32 256, 8
      %4331 = vbcast.lane.b32.xlu0 %v4328, %s4330
      %v4332 = vpop.permute.xlu0 %4331
      %v4333 = vlaneseq
      %v4334 = vshrl.u32 %v4333, 7
      %v4335 = vsub.s32 7, %v4334
      %v4336 = vrot.slane %v4265, %v4335
      %s4338 = sor.u32 256, 8
      %4339 = vbcast.lane.b32.xlu0 %v4336, %s4338
      %v4340 = vpop.permute.xlu0 %4339
      %vm4341 = vcmp.eq.f32.partialorder %v1807, %v4284
      %vm4342 = vcmp.eq.f32.partialorder %v1807, %v4292
      %vm4343 = vcmp.eq.f32.partialorder %v1807, %v4300
      %vm4344 = vcmp.eq.f32.partialorder %v1807, %v4308
      %vm4345 = vcmp.eq.f32.partialorder %v1807, %v4316
      %vm4346 = vcmp.eq.f32.partialorder %v1807, %v4324
      %vm4347 = vcmp.eq.f32.partialorder %v1807, %v4332
      %vm4348 = vcmp.eq.f32.partialorder %v1807, %v4340
      %v4349 = vsel %vm4341, 1, 0
      %v4350 = vsel %vm4342, 1, 0
      %v4351 = vsel %vm4343, 1, 0
      %v4352 = vsel %vm4344, 1, 0
      %v4353 = vsel %vm4345, 1, 0
      %v4354 = vsel %vm4346, 1, 0
      %v4355 = vsel %vm4347, 1, 0
      %v4356 = vsel %vm4348, 1, 0
      %v4357 = vcvt.s32.f32 %v4349
      %v4358 = vcvt.s32.f32 %v4350
      %v4359 = vcvt.s32.f32 %v4351
      %v4360 = vcvt.s32.f32 %v4352
      %v4361 = vcvt.s32.f32 %v4353
      %v4362 = vcvt.s32.f32 %v4354
      %v4363 = vcvt.s32.f32 %v4355
      %v4364 = vcvt.s32.f32 %v4356
      %v4365 = vlaneseq
      %v4366 = vshrl.u32 %v4365, 7
      %v4367 = vsub.s32 0, %v4366
      %v4368 = vrot.slane %v4275, %v4367
      %s4370 = sor.u32 256, 16
      %4371 = vbcast.lane.b32.xlu0 %v4368, %s4370
      %v4372 = vpop.permute.xlu0 %4371
      %v4373 = vlaneseq
      %v4374 = vshrl.u32 %v4373, 7
      %v4375 = vsub.s32 1, %v4374
      %v4376 = vrot.slane %v4275, %v4375
      %s4378 = sor.u32 256, 16
      %4379 = vbcast.lane.b32.xlu0 %v4376, %s4378
      %v4380 = vpop.permute.xlu0 %4379
      %v4381 = vlaneseq
      %v4382 = vshrl.u32 %v4381, 7
      %v4383 = vsub.s32 2, %v4382
      %v4384 = vrot.slane %v4275, %v4383
      %s4386 = sor.u32 256, 16
      %4387 = vbcast.lane.b32.xlu0 %v4384, %s4386
      %v4388 = vpop.permute.xlu0 %4387
      %v4389 = vlaneseq
      %v4390 = vshrl.u32 %v4389, 7
      %v4391 = vsub.s32 3, %v4390
      %v4392 = vrot.slane %v4275, %v4391
      %s4394 = sor.u32 256, 16
      %4395 = vbcast.lane.b32.xlu0 %v4392, %s4394
      %v4396 = vpop.permute.xlu0 %4395
      %v4397 = vlaneseq
      %v4398 = vshrl.u32 %v4397, 7
      %v4399 = vsub.s32 4, %v4398
      %v4400 = vrot.slane %v4275, %v4399
      %s4402 = sor.u32 256, 16
      %4403 = vbcast.lane.b32.xlu0 %v4400, %s4402
      %v4404 = vpop.permute.xlu0 %4403
      %v4405 = vlaneseq
      %v4406 = vshrl.u32 %v4405, 7
      %v4407 = vsub.s32 5, %v4406
      %v4408 = vrot.slane %v4275, %v4407
      %s4410 = sor.u32 256, 16
      %4411 = vbcast.lane.b32.xlu0 %v4408, %s4410
      %v4412 = vpop.permute.xlu0 %4411
      %v4413 = vlaneseq
      %v4414 = vshrl.u32 %v4413, 7
      %v4415 = vsub.s32 6, %v4414
      %v4416 = vrot.slane %v4275, %v4415
      %s4418 = sor.u32 256, 16
      %4419 = vbcast.lane.b32.xlu0 %v4416, %s4418
      %v4420 = vpop.permute.xlu0 %4419
      %v4421 = vlaneseq
      %v4422 = vshrl.u32 %v4421, 7
      %v4423 = vsub.s32 7, %v4422
      %v4424 = vrot.slane %v4275, %v4423
      %s4426 = sor.u32 256, 16
      %4427 = vbcast.lane.b32.xlu0 %v4424, %s4426
      %v4428 = vpop.permute.xlu0 %4427
      %vm4429 = vcmp.eq.f32.partialorder %v1807, %v4372
      %vm4430 = vcmp.eq.f32.partialorder %v1807, %v4380
      %vm4431 = vcmp.eq.f32.partialorder %v1807, %v4388
      %vm4432 = vcmp.eq.f32.partialorder %v1807, %v4396
      %vm4433 = vcmp.eq.f32.partialorder %v1807, %v4404
      %vm4434 = vcmp.eq.f32.partialorder %v1807, %v4412
      %vm4435 = vcmp.eq.f32.partialorder %v1807, %v4420
      %vm4436 = vcmp.eq.f32.partialorder %v1807, %v4428
      %v4437 = vsel %vm4429, 1, 0
      %v4438 = vsel %vm4430, 1, 0
      %v4439 = vsel %vm4431, 1, 0
      %v4440 = vsel %vm4432, 1, 0
      %v4441 = vsel %vm4433, 1, 0
      %v4442 = vsel %vm4434, 1, 0
      %v4443 = vsel %vm4435, 1, 0
      %v4444 = vsel %vm4436, 1, 0
      %v4445 = vcvt.s32.f32 %v4437
      %v4446 = vcvt.s32.f32 %v4438
      %v4447 = vcvt.s32.f32 %v4439
      %v4448 = vcvt.s32.f32 %v4440
      %v4449 = vcvt.s32.f32 %v4441
      %v4450 = vcvt.s32.f32 %v4442
      %v4451 = vcvt.s32.f32 %v4443
      %v4452 = vcvt.s32.f32 %v4444
      %v4453 = vadd.f32 %v4357, %v4445
      %v4454 = vadd.f32 %v4358, %v4446
      %v4455 = vadd.f32 %v4359, %v4447
      %v4456 = vadd.f32 %v4360, %v4448
      %v4457 = vadd.f32 %v4361, %v4449
      %v4458 = vadd.f32 %v4362, %v4450
      %v4459 = vadd.f32 %v4363, %v4451
      %v4460 = vadd.f32 %v4364, %v4452
      %v4461 = vlaneseq
      %v4462 = vshrl.u32 %v4461, 7
      %v4463 = vsub.s32 0, %v4462
      %v4464 = vrot.slane %v4276, %v4463
      %4466 = vbcast.lane.b32.xlu0 %v4464, 256
      %v4467 = vpop.permute.xlu0 %4466
      %v4468 = vlaneseq
      %v4469 = vshrl.u32 %v4468, 7
      %v4470 = vsub.s32 1, %v4469
      %v4471 = vrot.slane %v4276, %v4470
      %4473 = vbcast.lane.b32.xlu0 %v4471, 256
      %v4474 = vpop.permute.xlu0 %4473
      %v4475 = vlaneseq
      %v4476 = vshrl.u32 %v4475, 7
      %v4477 = vsub.s32 2, %v4476
      %v4478 = vrot.slane %v4276, %v4477
      %4480 = vbcast.lane.b32.xlu0 %v4478, 256
      %v4481 = vpop.permute.xlu0 %4480
      %v4482 = vlaneseq
      %v4483 = vshrl.u32 %v4482, 7
      %v4484 = vsub.s32 3, %v4483
      %v4485 = vrot.slane %v4276, %v4484
      %4487 = vbcast.lane.b32.xlu0 %v4485, 256
      %v4488 = vpop.permute.xlu0 %4487
      %v4489 = vlaneseq
      %v4490 = vshrl.u32 %v4489, 7
      %v4491 = vsub.s32 4, %v4490
      %v4492 = vrot.slane %v4276, %v4491
      %4494 = vbcast.lane.b32.xlu0 %v4492, 256
      %v4495 = vpop.permute.xlu0 %4494
      %v4496 = vlaneseq
      %v4497 = vshrl.u32 %v4496, 7
      %v4498 = vsub.s32 5, %v4497
      %v4499 = vrot.slane %v4276, %v4498
      %4501 = vbcast.lane.b32.xlu0 %v4499, 256
      %v4502 = vpop.permute.xlu0 %4501
      %v4503 = vlaneseq
      %v4504 = vshrl.u32 %v4503, 7
      %v4505 = vsub.s32 6, %v4504
      %v4506 = vrot.slane %v4276, %v4505
      %4508 = vbcast.lane.b32.xlu0 %v4506, 256
      %v4509 = vpop.permute.xlu0 %4508
      %v4510 = vlaneseq
      %v4511 = vshrl.u32 %v4510, 7
      %v4512 = vsub.s32 7, %v4511
      %v4513 = vrot.slane %v4276, %v4512
      %4515 = vbcast.lane.b32.xlu0 %v4513, 256
      %v4516 = vpop.permute.xlu0 %4515
      %vm4517 = vcmp.eq.f32.partialorder %v1807, %v4467
      %vm4518 = vcmp.eq.f32.partialorder %v1807, %v4474
      %vm4519 = vcmp.eq.f32.partialorder %v1807, %v4481
      %vm4520 = vcmp.eq.f32.partialorder %v1807, %v4488
      %vm4521 = vcmp.eq.f32.partialorder %v1807, %v4495
      %vm4522 = vcmp.eq.f32.partialorder %v1807, %v4502
      %vm4523 = vcmp.eq.f32.partialorder %v1807, %v4509
      %vm4524 = vcmp.eq.f32.partialorder %v1807, %v4516
      %v4525 = vsel %vm4517, 1, 0
      %v4526 = vsel %vm4518, 1, 0
      %v4527 = vsel %vm4519, 1, 0
      %v4528 = vsel %vm4520, 1, 0
      %v4529 = vsel %vm4521, 1, 0
      %v4530 = vsel %vm4522, 1, 0
      %v4531 = vsel %vm4523, 1, 0
      %v4532 = vsel %vm4524, 1, 0
      %v4533 = vcvt.s32.f32 %v4525
      %v4534 = vcvt.s32.f32 %v4526
      %v4535 = vcvt.s32.f32 %v4527
      %v4536 = vcvt.s32.f32 %v4528
      %v4537 = vcvt.s32.f32 %v4529
      %v4538 = vcvt.s32.f32 %v4530
      %v4539 = vcvt.s32.f32 %v4531
      %v4540 = vcvt.s32.f32 %v4532
      %v4541 = vadd.f32 %v4453, %v4533
      %v4542 = vadd.f32 %v4454, %v4534
      %v4543 = vadd.f32 %v4455, %v4535
      %v4544 = vadd.f32 %v4456, %v4536
      %v4545 = vadd.f32 %v4457, %v4537
      %v4546 = vadd.f32 %v4458, %v4538
      %v4547 = vadd.f32 %v4459, %v4539
      %v4548 = vadd.f32 %v4460, %v4540
      %v4550 = vsel %vm1843, %v4541, 0
      %v4553 = vsel %vm1843, %v4542, 0
      %v4556 = vsel %vm1843, %v4543, 0
      %v4559 = vsel %vm1843, %v4544, 0
      %v4562 = vsel %vm1843, %v4545, 0
      %v4565 = vsel %vm1843, %v4546, 0
      %v4568 = vsel %vm1843, %v4547, 0
      %v4571 = vsel %vm1843, %v4548, 0
      %4573 = vmatprep.subr.mxu0 0.0
      %4574 = vmatpush1.msra.mxu0 %v2483
      %4575 = vmatprep.subr.mxu0 0.0
      %4576 = vmatpush1.msra.mxu0 %v2484
      %4577 = vmatprep.subr.mxu0 0.0
      %4578 = vmatpush1.msra.mxu0 %v2485
      %4579 = vmatprep.subr.mxu0 0.0
      %4580 = vmatpush1.msra.mxu0 %v2486
      %4581 = vmatprep.subr.mxu0 0.0
      %4582 = vmatpush1.msra.mxu0 %v2487
      %4583 = vmatprep.subr.mxu0 0.0
      %4584 = vmatpush1.msra.mxu0 %v2488
      %4585 = vmatprep.subr.mxu0 0.0
      %4586 = vmatpush1.msra.mxu0 %v2489
      %4587 = vmatprep.subr.mxu0 0.0
      %4588 = vmatpush1.msra.mxu0 %v2490
      %4589 = vmatprep.subr.mxu0 0.0
      %4590 = vmatpush1.msra.mxu0 %v2491
      %4591 = vmatprep.subr.mxu0 0.0
      %4592 = vmatpush1.msra.mxu0 %v2492
      %4593 = vmatprep.subr.mxu0 0.0
      %4594 = vmatpush1.msra.mxu0 %v2493
      %4595 = vmatprep.subr.mxu0 0.0
      %4596 = vmatpush1.msra.mxu0 %v2494
      %4597 = vmatprep.subr.mxu0 0.0
      %4598 = vmatpush1.msra.mxu0 0.0
      %4599 = vmatprep.subr.mxu0 0.0
      %4600 = vmatpush1.msra.mxu0 0.0
      %4601 = vmatprep.subr.mxu0 0.0
      %4602 = vmatpush1.msra.mxu0 0.0
      %4603 = vmatprep.subr.mxu0 0.0
      %4604 = vmatpush1.msra.mxu0 0.0
      %4605 = vmatprep.subr.mxu0 0.0
      %4606 = vmatpush1.msra.mxu0 0.0
      %4607 = vmatprep.subr.mxu0 0.0
      %4608 = vmatpush1.msra.mxu0 0.0
      %4609 = vmatprep.subr.mxu0 0.0
      %4610 = vmatpush1.msra.mxu0 0.0
      %4611 = vmatprep.subr.mxu0 0.0
      %4612 = vmatpush1.msra.mxu0 0.0
      %4613 = vmatprep.subr.mxu0 0.0
      %4614 = vmatpush1.msra.mxu0 0.0
      %4615 = vmatprep.subr.mxu0 0.0
      %4616 = vmatpush1.msra.mxu0 0.0
      %4617 = vmatprep.subr.mxu0 0.0
      %4618 = vmatpush1.msra.mxu0 0.0
      %4619 = vmatprep.subr.mxu0 0.0
      %4620 = vmatpush1.msra.mxu0 0.0
      %4621 = vmatprep.subr.mxu0 0.0
      %4622 = vmatpush1.msra.mxu0 0.0
      %4623 = vmatprep.subr.mxu0 0.0
      %4624 = vmatpush1.msra.mxu0 0.0
      %4625 = vmatprep.subr.mxu0 0.0
      %4626 = vmatpush1.msra.mxu0 0.0
      %4627 = vmatprep.subr.mxu0 0.0
      %4628 = vmatpush1.msra.mxu0 0.0
      %4629 = vmatprep.subr.mxu0 0.0
      %4630 = vmatpush1.msra.mxu0 0.0
      %4631 = vmatprep.subr.mxu0 0.0
      %4632 = vmatpush1.msra.mxu0 0.0
      %4633 = vmatprep.subr.mxu0 0.0
      %4634 = vmatpush1.msra.mxu0 0.0
      %4635 = vmatprep.subr.mxu0 0.0
      %4636 = vmatpush1.msra.mxu0 0.0
      %4637 = vmatprep.mubr.f32.mxu0 0.0
      %4638 = vmatmul.mubr.f32.gmra.mrb[0].mxu0 %v4550
      %v4639 = vpop.f32.mrb[0].mxu0
      %v4640 = vadd.f32 0.0, %v4639
      %v4641 = vpop.f32.mrb[0].mxu0
      %4642 = vmatprep.mubr.f32.mxu0 0.0
      %4643 = vmatmul.mubr.f32.gmra.mrb[0].mxu0 %v4553
      %v4644 = vpop.f32.mrb[0].mxu0
      %v4645 = vadd.f32 0.0, %v4644
      %v4646 = vpop.f32.mrb[0].mxu0
      %4647 = vmatprep.mubr.f32.mxu0 0.0
      %4648 = vmatmul.mubr.f32.gmra.mrb[0].mxu0 %v4556
      %v4649 = vpop.f32.mrb[0].mxu0
      %v4650 = vadd.f32 0.0, %v4649
      %v4651 = vpop.f32.mrb[0].mxu0
      %4652 = vmatprep.mubr.f32.mxu0 0.0
      %4653 = vmatmul.mubr.f32.gmra.mrb[0].mxu0 %v4559
      %v4654 = vpop.f32.mrb[0].mxu0
      %v4655 = vadd.f32 0.0, %v4654
      %v4656 = vpop.f32.mrb[0].mxu0
      %4657 = vmatprep.mubr.f32.mxu0 0.0
      %4658 = vmatmul.mubr.f32.gmra.mrb[0].mxu0 %v4562
      %v4659 = vpop.f32.mrb[0].mxu0
      %v4660 = vadd.f32 0.0, %v4659
      %v4661 = vpop.f32.mrb[0].mxu0
      %4662 = vmatprep.mubr.f32.mxu0 0.0
      %4663 = vmatmul.mubr.f32.gmra.mrb[0].mxu0 %v4565
      %v4664 = vpop.f32.mrb[0].mxu0
      %v4665 = vadd.f32 0.0, %v4664
      %v4666 = vpop.f32.mrb[0].mxu0
      %4667 = vmatprep.mubr.f32.mxu0 0.0
      %4668 = vmatmul.mubr.f32.gmra.mrb[0].mxu0 %v4568
      %v4669 = vpop.f32.mrb[0].mxu0
      %v4670 = vadd.f32 0.0, %v4669
      %v4671 = vpop.f32.mrb[0].mxu0
      %4672 = vmatprep.mubr.f32.mxu0 0.0
      %4673 = vmatmul.mubr.f32.gmra.mrb[0].mxu0 %v4571
      %v4674 = vpop.f32.mrb[0].mxu0
      %v4675 = vadd.f32 0.0, %v4674
      %v4676 = vpop.f32.mrb[0].mxu0
      %4677 = vdwg.mxu0
      %v4679 = vcombine.high %v4189, %v4189
      %v4681 = vunpack.c.l.s4 1966171168
      %v4682 = vunpack.c.0.s8 %v4681
      %v4683 = vlaneseq
      %v4684 = vshrl.u32 %v4683, 7
      %v4685 = vsub.s32 %v4682, %v4684
      %v4686 = vrot.slane %v4189, %v4685
      %v4688 = vunpack.c.l.s4 1966171168
      %v4689 = vunpack.c.0.s8 %v4688
      %v4690 = vlaneseq
      %v4691 = vshrl.u32 %v4690, 7
      %v4692 = vsub.s32 %v4689, %v4691
      %v4693 = vrot.slane %v4679, %v4692
      %v4694 = vcombine.high %v4686, %v4686
      %v4695 = vcombine.high %v4693, %v4693
      %v4697 = vunpack.c.l.s4 1966171168
      %v4698 = vunpack.c.0.s8 %v4697
      %v4699 = vlaneseq
      %v4700 = vshrl.u32 %v4699, 7
      %v4701 = vsub.s32 %v4698, %v4700
      %v4702 = vrot.slane %v4686, %v4701
      %v4704 = vunpack.c.l.s4 1966171168
      %v4705 = vunpack.c.0.s8 %v4704
      %v4706 = vlaneseq
      %v4707 = vshrl.u32 %v4706, 7
      %v4708 = vsub.s32 %v4705, %v4707
      %v4709 = vrot.slane %v4693, %v4708
      %v4711 = vunpack.c.l.s4 1966171168
      %v4712 = vunpack.c.0.s8 %v4711
      %v4713 = vlaneseq
      %v4714 = vshrl.u32 %v4713, 7
      %v4715 = vsub.s32 %v4712, %v4714
      %v4716 = vrot.slane %v4694, %v4715
      %v4718 = vunpack.c.l.s4 1966171168
      %v4719 = vunpack.c.0.s8 %v4718
      %v4720 = vlaneseq
      %v4721 = vshrl.u32 %v4720, 7
      %v4722 = vsub.s32 %v4719, %v4721
      %v4723 = vrot.slane %v4695, %v4722
      %v4724 = vcombine.high %v4702, %v4702
      %v4725 = vcombine.high %v4709, %v4709
      %v4726 = vcombine.high %v4716, %v4716
      %v4727 = vcombine.high %v4723, %v4723
      %v4728 = vlaneseq
      %v4729 = vshrl.u32 %v4728, 7
      %v4730 = vsub.s32 0, %v4729
      %v4731 = vrot.slane %v4702, %v4730
      %v4732 = vlaneseq
      %v4733 = vshrl.u32 %v4732, 7
      %v4734 = vsub.s32 0, %v4733
      %v4735 = vrot.slane %v4716, %v4734
      %v4736 = vlaneseq
      %v4737 = vshrl.u32 %v4736, 7
      %v4738 = vsub.s32 0, %v4737
      %v4739 = vrot.slane %v4724, %v4738
      %v4740 = vlaneseq
      %v4741 = vshrl.u32 %v4740, 7
      %v4742 = vsub.s32 0, %v4741
      %v4743 = vrot.slane %v4726, %v4742
      %v4744 = vlaneseq
      %v4745 = vshrl.u32 %v4744, 7
      %v4746 = vsub.s32 0, %v4745
      %v4747 = vrot.slane %v4709, %v4746
      %v4748 = vlaneseq
      %v4749 = vshrl.u32 %v4748, 7
      %v4750 = vsub.s32 0, %v4749
      %v4751 = vrot.slane %v4723, %v4750
      %v4752 = vlaneseq
      %v4753 = vshrl.u32 %v4752, 7
      %v4754 = vsub.s32 0, %v4753
      %v4755 = vrot.slane %v4725, %v4754
      %v4756 = vlaneseq
      %v4757 = vshrl.u32 %v4756, 7
      %v4758 = vsub.s32 0, %v4757
      %v4759 = vrot.slane %v4727, %v4758
      %v4768 = vmul.f32 %v4640, %v4731
      %v4769 = vmul.f32 %v4645, %v4735
      %v4770 = vmul.f32 %v4650, %v4739
      %v4771 = vmul.f32 %v4655, %v4743
      %v4772 = vmul.f32 %v4660, %v4747
      %v4773 = vmul.f32 %v4665, %v4751
      %v4774 = vmul.f32 %v4670, %v4755
      %v4775 = vmul.f32 %v4675, %v4759
      %v4776 = vsel %vm780, %v4768, 0.0
      %4777 = vadd.xlane.f32.xlu0 %v4776
      %v4778 = vpop.xlane.xlu0 %4777
      %v4779 = vsel %vm780, %v4769, 0.0
      %4780 = vadd.xlane.f32.xlu0 %v4779
      %v4781 = vpop.xlane.xlu0 %4780
      %v4782 = vsel %vm780, %v4770, 0.0
      %4783 = vadd.xlane.f32.xlu0 %v4782
      %v4784 = vpop.xlane.xlu0 %4783
      %v4785 = vsel %vm780, %v4771, 0.0
      %4786 = vadd.xlane.f32.xlu0 %v4785
      %v4787 = vpop.xlane.xlu0 %4786
      %v4788 = vsel %vm780, %v4772, 0.0
      %4789 = vadd.xlane.f32.xlu0 %v4788
      %v4790 = vpop.xlane.xlu0 %4789
      %v4791 = vsel %vm780, %v4773, 0.0
      %4792 = vadd.xlane.f32.xlu0 %v4791
      %v4793 = vpop.xlane.xlu0 %4792
      %v4794 = vsel %vm780, %v4774, 0.0
      %4795 = vadd.xlane.f32.xlu0 %v4794
      %v4796 = vpop.xlane.xlu0 %4795
      %v4797 = vsel %vm780, %v4775, 0.0
      %4798 = vadd.xlane.f32.xlu0 %v4797
      %v4799 = vpop.xlane.xlu0 %4798
      %v4800 = vmul.f32 %v4271, -1e+09
      %v4802 = vlaneseq
      %v4803 = vshrl.u32 %v4802, 7
      %v4804 = vsub.s32 0, %v4803
      %v4805 = vrot.slane %v4800, %v4804
      %s4807 = sor.u32 256, 8
      %4808 = vbcast.lane.b32.xlu0 %v4805, %s4807
      %v4809 = vpop.permute.xlu0 %4808
      %v4810 = vlaneseq
      %v4811 = vshrl.u32 %v4810, 7
      %v4812 = vsub.s32 1, %v4811
      %v4813 = vrot.slane %v4800, %v4812
      %s4815 = sor.u32 256, 8
      %4816 = vbcast.lane.b32.xlu0 %v4813, %s4815
      %v4817 = vpop.permute.xlu0 %4816
      %v4818 = vlaneseq
      %v4819 = vshrl.u32 %v4818, 7
      %v4820 = vsub.s32 2, %v4819
      %v4821 = vrot.slane %v4800, %v4820
      %s4823 = sor.u32 256, 8
      %4824 = vbcast.lane.b32.xlu0 %v4821, %s4823
      %v4825 = vpop.permute.xlu0 %4824
      %v4826 = vlaneseq
      %v4827 = vshrl.u32 %v4826, 7
      %v4828 = vsub.s32 3, %v4827
      %v4829 = vrot.slane %v4800, %v4828
      %s4831 = sor.u32 256, 8
      %4832 = vbcast.lane.b32.xlu0 %v4829, %s4831
      %v4833 = vpop.permute.xlu0 %4832
      %v4834 = vlaneseq
      %v4835 = vshrl.u32 %v4834, 7
      %v4836 = vsub.s32 4, %v4835
      %v4837 = vrot.slane %v4800, %v4836
      %s4839 = sor.u32 256, 8
      %4840 = vbcast.lane.b32.xlu0 %v4837, %s4839
      %v4841 = vpop.permute.xlu0 %4840
      %v4842 = vlaneseq
      %v4843 = vshrl.u32 %v4842, 7
      %v4844 = vsub.s32 5, %v4843
      %v4845 = vrot.slane %v4800, %v4844
      %s4847 = sor.u32 256, 8
      %4848 = vbcast.lane.b32.xlu0 %v4845, %s4847
      %v4849 = vpop.permute.xlu0 %4848
      %v4850 = vlaneseq
      %v4851 = vshrl.u32 %v4850, 7
      %v4852 = vsub.s32 6, %v4851
      %v4853 = vrot.slane %v4800, %v4852
      %s4855 = sor.u32 256, 8
      %4856 = vbcast.lane.b32.xlu0 %v4853, %s4855
      %v4857 = vpop.permute.xlu0 %4856
      %v4858 = vlaneseq
      %v4859 = vshrl.u32 %v4858, 7
      %v4860 = vsub.s32 7, %v4859
      %v4861 = vrot.slane %v4800, %v4860
      %s4863 = sor.u32 256, 8
      %4864 = vbcast.lane.b32.xlu0 %v4861, %s4863
      %v4865 = vpop.permute.xlu0 %4864
      %v4874 = vadd.f32 %v4778, %v4809
      %v4875 = vadd.f32 %v4781, %v4817
      %v4876 = vadd.f32 %v4784, %v4825
      %v4877 = vadd.f32 %v4787, %v4833
      %v4878 = vadd.f32 %v4790, %v4841
      %v4879 = vadd.f32 %v4793, %v4849
      %v4880 = vadd.f32 %v4796, %v4857
      %v4881 = vadd.f32 %v4799, %v4865
      %4890 = vset.pattern.permute.xlu0 0
      %4891 = vperm.xlu0 %4890, %v4874
      %v4892 = vpop.permute.xlu0 %4891
      %4893 = vset.pattern.permute.xlu0 0
      %4894 = vperm.xlu0 %4893, %v4875
      %v4895 = vpop.permute.xlu0 %4894
      %4896 = vset.pattern.permute.xlu0 0
      %4897 = vperm.xlu0 %4896, %v4876
      %v4898 = vpop.permute.xlu0 %4897
      %4899 = vset.pattern.permute.xlu0 0
      %4900 = vperm.xlu0 %4899, %v4877
      %v4901 = vpop.permute.xlu0 %4900
      %4902 = vset.pattern.permute.xlu0 0
      %4903 = vperm.xlu0 %4902, %v4878
      %v4904 = vpop.permute.xlu0 %4903
      %4905 = vset.pattern.permute.xlu0 0
      %4906 = vperm.xlu0 %4905, %v4879
      %v4907 = vpop.permute.xlu0 %4906
      %4908 = vset.pattern.permute.xlu0 0
      %4909 = vperm.xlu0 %4908, %v4880
      %v4910 = vpop.permute.xlu0 %4909
      %4911 = vset.pattern.permute.xlu0 0
      %4912 = vperm.xlu0 %4911, %v4881
      %v4913 = vpop.permute.xlu0 %4912
      %v4914 = vlaneseq
      %v4915 = vshrl.u32 %v4914, 7
      %v4916 = vsub.s32 %v1806, %v4915
      %v4917 = vrot.slane %v4892, %v4916
      %v4918 = vlaneseq
      %v4919 = vshrl.u32 %v4918, 7
      %v4920 = vsub.s32 %v1806, %v4919
      %v4921 = vrot.slane %v4895, %v4920
      %v4922 = vlaneseq
      %v4923 = vshrl.u32 %v4922, 7
      %v4924 = vsub.s32 %v1806, %v4923
      %v4925 = vrot.slane %v4898, %v4924
      %v4926 = vlaneseq
      %v4927 = vshrl.u32 %v4926, 7
      %v4928 = vsub.s32 %v1806, %v4927
      %v4929 = vrot.slane %v4901, %v4928
      %v4930 = vlaneseq
      %v4931 = vshrl.u32 %v4930, 7
      %v4932 = vsub.s32 %v1806, %v4931
      %v4933 = vrot.slane %v4904, %v4932
      %v4934 = vlaneseq
      %v4935 = vshrl.u32 %v4934, 7
      %v4936 = vsub.s32 %v1806, %v4935
      %v4937 = vrot.slane %v4907, %v4936
      %v4938 = vlaneseq
      %v4939 = vshrl.u32 %v4938, 7
      %v4940 = vsub.s32 %v1806, %v4939
      %v4941 = vrot.slane %v4910, %v4940
      %v4942 = vlaneseq
      %v4943 = vshrl.u32 %v4942, 7
      %v4944 = vsub.s32 %v1806, %v4943
      %v4945 = vrot.slane %v4913, %v4944
      %v4946 = vsel %vm1777, %v4921, %v4917
      %v4947 = vsel %vm1779, %v4925, %v4946
      %v4948 = vsel %vm1781, %v4929, %v4947
      %v4949 = vsel %vm1783, %v4933, %v4948
      %v4950 = vsel %vm1785, %v4937, %v4949
      %v4951 = vsel %vm1787, %v4941, %v4950
      %v4952 = vsel %vm1789, %v4945, %v4951
      %v4954 = vsel %vm2900, %v4952, -inf
      %4955 = vmax.xlane.f32.xlu0 %v4954
      %v4956 = vpop.xlane.xlu0 %4955
      %v4958 = vlaneseq
      %v4959 = vshrl.u32 %v4958, 7
      %v4960 = vsub.s32 0, %v4959
      %v4961 = vrot.slane %v4956, %v4960
      %v4962 = vlaneseq
      %v4963 = vshrl.u32 %v4962, 7
      %v4964 = vsub.s32 1, %v4963
      %v4965 = vrot.slane %v4956, %v4964
      %v4966 = vlaneseq
      %v4967 = vshrl.u32 %v4966, 7
      %v4968 = vsub.s32 2, %v4967
      %v4969 = vrot.slane %v4956, %v4968
      %v4970 = vlaneseq
      %v4971 = vshrl.u32 %v4970, 7
      %v4972 = vsub.s32 3, %v4971
      %v4973 = vrot.slane %v4956, %v4972
      %v4974 = vlaneseq
      %v4975 = vshrl.u32 %v4974, 7
      %v4976 = vsub.s32 4, %v4975
      %v4977 = vrot.slane %v4956, %v4976
      %v4978 = vlaneseq
      %v4979 = vshrl.u32 %v4978, 7
      %v4980 = vsub.s32 5, %v4979
      %v4981 = vrot.slane %v4956, %v4980
      %v4982 = vlaneseq
      %v4983 = vshrl.u32 %v4982, 7
      %v4984 = vsub.s32 6, %v4983
      %v4985 = vrot.slane %v4956, %v4984
      %v4986 = vlaneseq
      %v4987 = vshrl.u32 %v4986, 7
      %v4988 = vsub.s32 7, %v4987
      %v4989 = vrot.slane %v4956, %v4988
      %v4998 = vsub.f32 %v4874, %v4961
      %v4999 = vsub.f32 %v4875, %v4965
      %v5000 = vsub.f32 %v4876, %v4969
      %v5001 = vsub.f32 %v4877, %v4973
      %v5002 = vsub.f32 %v4878, %v4977
      %v5003 = vsub.f32 %v4879, %v4981
      %v5004 = vsub.f32 %v4880, %v4985
      %v5005 = vsub.f32 %v4881, %v4989
      %v5006 = vmul.f32 %v4998, 1.442695
      %v5007 = vpow.pop %v5006
      %v5008 = vmul.f32 %v4999, 1.442695
      %v5009 = vpow.pop %v5008
      %v5010 = vmul.f32 %v5000, 1.442695
      %v5011 = vpow.pop %v5010
      %v5012 = vmul.f32 %v5001, 1.442695
      %v5013 = vpow.pop %v5012
      %v5014 = vmul.f32 %v5002, 1.442695
      %v5015 = vpow.pop %v5014
      %v5016 = vmul.f32 %v5003, 1.442695
      %v5017 = vpow.pop %v5016
      %v5018 = vmul.f32 %v5004, 1.442695
      %v5019 = vpow.pop %v5018
      %v5020 = vmul.f32 %v5005, 1.442695
      %v5021 = vpow.pop %v5020
      %5030 = vset.pattern.permute.xlu0 0
      %5031 = vperm.xlu0 %5030, %v5007
      %v5032 = vpop.permute.xlu0 %5031
      %5033 = vset.pattern.permute.xlu0 0
      %5034 = vperm.xlu0 %5033, %v5009
      %v5035 = vpop.permute.xlu0 %5034
      %5036 = vset.pattern.permute.xlu0 0
      %5037 = vperm.xlu0 %5036, %v5011
      %v5038 = vpop.permute.xlu0 %5037
      %5039 = vset.pattern.permute.xlu0 0
      %5040 = vperm.xlu0 %5039, %v5013
      %v5041 = vpop.permute.xlu0 %5040
      %5042 = vset.pattern.permute.xlu0 0
      %5043 = vperm.xlu0 %5042, %v5015
      %v5044 = vpop.permute.xlu0 %5043
      %5045 = vset.pattern.permute.xlu0 0
      %5046 = vperm.xlu0 %5045, %v5017
      %v5047 = vpop.permute.xlu0 %5046
      %5048 = vset.pattern.permute.xlu0 0
      %5049 = vperm.xlu0 %5048, %v5019
      %v5050 = vpop.permute.xlu0 %5049
      %5051 = vset.pattern.permute.xlu0 0
      %5052 = vperm.xlu0 %5051, %v5021
      %v5053 = vpop.permute.xlu0 %5052
      %v5054 = vlaneseq
      %v5055 = vshrl.u32 %v5054, 7
      %v5056 = vsub.s32 %v1806, %v5055
      %v5057 = vrot.slane %v5032, %v5056
      %v5058 = vlaneseq
      %v5059 = vshrl.u32 %v5058, 7
      %v5060 = vsub.s32 %v1806, %v5059
      %v5061 = vrot.slane %v5035, %v5060
      %v5062 = vlaneseq
      %v5063 = vshrl.u32 %v5062, 7
      %v5064 = vsub.s32 %v1806, %v5063
      %v5065 = vrot.slane %v5038, %v5064
      %v5066 = vlaneseq
      %v5067 = vshrl.u32 %v5066, 7
      %v5068 = vsub.s32 %v1806, %v5067
      %v5069 = vrot.slane %v5041, %v5068
      %v5070 = vlaneseq
      %v5071 = vshrl.u32 %v5070, 7
      %v5072 = vsub.s32 %v1806, %v5071
      %v5073 = vrot.slane %v5044, %v5072
      %v5074 = vlaneseq
      %v5075 = vshrl.u32 %v5074, 7
      %v5076 = vsub.s32 %v1806, %v5075
      %v5077 = vrot.slane %v5047, %v5076
      %v5078 = vlaneseq
      %v5079 = vshrl.u32 %v5078, 7
      %v5080 = vsub.s32 %v1806, %v5079
      %v5081 = vrot.slane %v5050, %v5080
      %v5082 = vlaneseq
      %v5083 = vshrl.u32 %v5082, 7
      %v5084 = vsub.s32 %v1806, %v5083
      %v5085 = vrot.slane %v5053, %v5084
      %v5086 = vsel %vm1777, %v5061, %v5057
      %v5087 = vsel %vm1779, %v5065, %v5086
      %v5088 = vsel %vm1781, %v5069, %v5087
      %v5089 = vsel %vm1783, %v5073, %v5088
      %v5090 = vsel %vm1785, %v5077, %v5089
      %v5091 = vsel %vm1787, %v5081, %v5090
      %v5092 = vsel %vm1789, %v5085, %v5091
      %v5094 = vsel %vm2900, %v5092, 0.0
      %5095 = vadd.xlane.f32.xlu0 %v5094
      %v5096 = vpop.xlane.xlu0 %5095
      %v5097 = vlog2.pop %v5096
      %v5098 = vmul.f32 %v5097, 0.6931472
      %v5100 = vlaneseq
      %v5101 = vshrl.u32 %v5100, 7
      %v5102 = vsub.s32 0, %v5101
      %v5103 = vrot.slane %v5098, %v5102
      %v5104 = vlaneseq
      %v5105 = vshrl.u32 %v5104, 7
      %v5106 = vsub.s32 1, %v5105
      %v5107 = vrot.slane %v5098, %v5106
      %v5108 = vlaneseq
      %v5109 = vshrl.u32 %v5108, 7
      %v5110 = vsub.s32 2, %v5109
      %v5111 = vrot.slane %v5098, %v5110
      %v5112 = vlaneseq
      %v5113 = vshrl.u32 %v5112, 7
      %v5114 = vsub.s32 3, %v5113
      %v5115 = vrot.slane %v5098, %v5114
      %v5116 = vlaneseq
      %v5117 = vshrl.u32 %v5116, 7
      %v5118 = vsub.s32 4, %v5117
      %v5119 = vrot.slane %v5098, %v5118
      %v5120 = vlaneseq
      %v5121 = vshrl.u32 %v5120, 7
      %v5122 = vsub.s32 5, %v5121
      %v5123 = vrot.slane %v5098, %v5122
      %v5124 = vlaneseq
      %v5125 = vshrl.u32 %v5124, 7
      %v5126 = vsub.s32 6, %v5125
      %v5127 = vrot.slane %v5098, %v5126
      %v5128 = vlaneseq
      %v5129 = vshrl.u32 %v5128, 7
      %v5130 = vsub.s32 7, %v5129
      %v5131 = vrot.slane %v5098, %v5130
      %v5140 = vsub.f32 %v4998, %v5103
      %v5141 = vsub.f32 %v4999, %v5107
      %v5142 = vsub.f32 %v5000, %v5111
      %v5143 = vsub.f32 %v5001, %v5115
      %v5144 = vsub.f32 %v5002, %v5119
      %v5145 = vsub.f32 %v5003, %v5123
      %v5146 = vsub.f32 %v5004, %v5127
      %v5147 = vsub.f32 %v5005, %v5131
      %v5148 = vmul.f32 %v4640, %v3148
      %v5149 = vmul.f32 %v4645, %v3152
      %v5150 = vmul.f32 %v4650, %v3156
      %v5151 = vmul.f32 %v4655, %v3160
      %v5152 = vmul.f32 %v4660, %v3164
      %v5153 = vmul.f32 %v4665, %v3168
      %v5154 = vmul.f32 %v4670, %v3172
      %v5155 = vmul.f32 %v4675, %v3176
      %v5156 = vsel %vm780, %v5148, 0.0
      %5157 = vadd.xlane.f32.xlu0 %v5156
      %v5158 = vpop.xlane.xlu0 %5157
      %v5159 = vsel %vm780, %v5149, 0.0
      %5160 = vadd.xlane.f32.xlu0 %v5159
      %v5161 = vpop.xlane.xlu0 %5160
      %v5162 = vsel %vm780, %v5150, 0.0
      %5163 = vadd.xlane.f32.xlu0 %v5162
      %v5164 = vpop.xlane.xlu0 %5163
      %v5165 = vsel %vm780, %v5151, 0.0
      %5166 = vadd.xlane.f32.xlu0 %v5165
      %v5167 = vpop.xlane.xlu0 %5166
      %v5168 = vsel %vm780, %v5152, 0.0
      %5169 = vadd.xlane.f32.xlu0 %v5168
      %v5170 = vpop.xlane.xlu0 %5169
      %v5171 = vsel %vm780, %v5153, 0.0
      %5172 = vadd.xlane.f32.xlu0 %v5171
      %v5173 = vpop.xlane.xlu0 %5172
      %v5174 = vsel %vm780, %v5154, 0.0
      %5175 = vadd.xlane.f32.xlu0 %v5174
      %v5176 = vpop.xlane.xlu0 %5175
      %v5177 = vsel %vm780, %v5155, 0.0
      %5178 = vadd.xlane.f32.xlu0 %v5177
      %v5179 = vpop.xlane.xlu0 %5178
      %v5180 = vxor.u32 %v5158, 2147483648
      %v5181 = vxor.u32 %v5161, 2147483648
      %v5182 = vxor.u32 %v5164, 2147483648
      %v5183 = vxor.u32 %v5167, 2147483648
      %v5184 = vxor.u32 %v5170, 2147483648
      %v5185 = vxor.u32 %v5173, 2147483648
      %v5186 = vxor.u32 %v5176, 2147483648
      %v5187 = vxor.u32 %v5179, 2147483648
      %v5188 = vmul.f32 %v5180, 1.442695
      %v5189 = vpow.pop %v5188
      %v5190 = vmul.f32 %v5181, 1.442695
      %v5191 = vpow.pop %v5190
      %v5192 = vmul.f32 %v5182, 1.442695
      %v5193 = vpow.pop %v5192
      %v5194 = vmul.f32 %v5183, 1.442695
      %v5195 = vpow.pop %v5194
      %v5196 = vmul.f32 %v5184, 1.442695
      %v5197 = vpow.pop %v5196
      %v5198 = vmul.f32 %v5185, 1.442695
      %v5199 = vpow.pop %v5198
      %v5200 = vmul.f32 %v5186, 1.442695
      %v5201 = vpow.pop %v5200
      %v5202 = vmul.f32 %v5187, 1.442695
      %v5203 = vpow.pop %v5202
      %v5204 = vadd.f32 %v5189, 1.0
      %v5205 = vadd.f32 %v5191, 1.0
      %v5206 = vadd.f32 %v5193, 1.0
      %v5207 = vadd.f32 %v5195, 1.0
      %v5208 = vadd.f32 %v5197, 1.0
      %v5209 = vadd.f32 %v5199, 1.0
      %v5210 = vadd.f32 %v5201, 1.0
      %v5211 = vadd.f32 %v5203, 1.0
      %v5212 = vrcp.pop %v5204
      %v5213 = vmul.f32 1.0, %v5212
      %v5214 = vrcp.pop %v5205
      %v5215 = vmul.f32 1.0, %v5214
      %v5216 = vrcp.pop %v5206
      %v5217 = vmul.f32 1.0, %v5216
      %v5218 = vrcp.pop %v5207
      %v5219 = vmul.f32 1.0, %v5218
      %v5220 = vrcp.pop %v5208
      %v5221 = vmul.f32 1.0, %v5220
      %v5222 = vrcp.pop %v5209
      %v5223 = vmul.f32 1.0, %v5222
      %v5224 = vrcp.pop %v5210
      %v5225 = vmul.f32 1.0, %v5224
      %v5226 = vrcp.pop %v5211
      %v5227 = vmul.f32 1.0, %v5226
      %v5228 = vmul.f32 %v5213, %v3273
      %v5229 = vmul.f32 %v5215, %v3277
      %v5230 = vmul.f32 %v5217, %v3281
      %v5231 = vmul.f32 %v5219, %v3285
      %v5232 = vmul.f32 %v5221, %v3289
      %v5233 = vmul.f32 %v5223, %v3293
      %v5234 = vmul.f32 %v5225, %v3297
      %v5235 = vmul.f32 %v5227, %v3301
      %5244 = vset.pattern.permute.xlu0 0
      %5245 = vperm.xlu0 %5244, %v5140
      %v5246 = vpop.permute.xlu0 %5245
      %5247 = vset.pattern.permute.xlu0 0
      %5248 = vperm.xlu0 %5247, %v5141
      %v5249 = vpop.permute.xlu0 %5248
      %5250 = vset.pattern.permute.xlu0 0
      %5251 = vperm.xlu0 %5250, %v5142
      %v5252 = vpop.permute.xlu0 %5251
      %5253 = vset.pattern.permute.xlu0 0
      %5254 = vperm.xlu0 %5253, %v5143
      %v5255 = vpop.permute.xlu0 %5254
      %5256 = vset.pattern.permute.xlu0 0
      %5257 = vperm.xlu0 %5256, %v5144
      %v5258 = vpop.permute.xlu0 %5257
      %5259 = vset.pattern.permute.xlu0 0
      %5260 = vperm.xlu0 %5259, %v5145
      %v5261 = vpop.permute.xlu0 %5260
      %5262 = vset.pattern.permute.xlu0 0
      %5263 = vperm.xlu0 %5262, %v5146
      %v5264 = vpop.permute.xlu0 %5263
      %5265 = vset.pattern.permute.xlu0 0
      %5266 = vperm.xlu0 %5265, %v5147
      %v5267 = vpop.permute.xlu0 %5266
      %v5268 = vlaneseq
      %v5269 = vshrl.u32 %v5268, 7
      %v5270 = vsub.s32 %v1806, %v5269
      %v5271 = vrot.slane %v5246, %v5270
      %v5272 = vlaneseq
      %v5273 = vshrl.u32 %v5272, 7
      %v5274 = vsub.s32 %v1806, %v5273
      %v5275 = vrot.slane %v5249, %v5274
      %v5276 = vlaneseq
      %v5277 = vshrl.u32 %v5276, 7
      %v5278 = vsub.s32 %v1806, %v5277
      %v5279 = vrot.slane %v5252, %v5278
      %v5280 = vlaneseq
      %v5281 = vshrl.u32 %v5280, 7
      %v5282 = vsub.s32 %v1806, %v5281
      %v5283 = vrot.slane %v5255, %v5282
      %v5284 = vlaneseq
      %v5285 = vshrl.u32 %v5284, 7
      %v5286 = vsub.s32 %v1806, %v5285
      %v5287 = vrot.slane %v5258, %v5286
      %v5288 = vlaneseq
      %v5289 = vshrl.u32 %v5288, 7
      %v5290 = vsub.s32 %v1806, %v5289
      %v5291 = vrot.slane %v5261, %v5290
      %v5292 = vlaneseq
      %v5293 = vshrl.u32 %v5292, 7
      %v5294 = vsub.s32 %v1806, %v5293
      %v5295 = vrot.slane %v5264, %v5294
      %v5296 = vlaneseq
      %v5297 = vshrl.u32 %v5296, 7
      %v5298 = vsub.s32 %v1806, %v5297
      %v5299 = vrot.slane %v5267, %v5298
      %v5300 = vsel %vm1777, %v5275, %v5271
      %v5301 = vsel %vm1779, %v5279, %v5300
      %v5302 = vsel %vm1781, %v5283, %v5301
      %v5303 = vsel %vm1783, %v5287, %v5302
      %v5304 = vsel %vm1785, %v5291, %v5303
      %v5305 = vsel %vm1787, %v5295, %v5304
      %v5306 = vsel %vm1789, %v5299, %v5305
      %v5308 = vsel %vm2900, %v5306, -inf
      %5309 = vmax.xlane.f32.xlu0 %v5308
      %v5310 = vpop.xlane.xlu0 %5309
      %v5312 = vlaneseq
      %v5313 = vshrl.u32 %v5312, 7
      %v5314 = vsub.s32 0, %v5313
      %v5315 = vrot.slane %v5310, %v5314
      %v5316 = vlaneseq
      %v5317 = vshrl.u32 %v5316, 7
      %v5318 = vsub.s32 1, %v5317
      %v5319 = vrot.slane %v5310, %v5318
      %v5320 = vlaneseq
      %v5321 = vshrl.u32 %v5320, 7
      %v5322 = vsub.s32 2, %v5321
      %v5323 = vrot.slane %v5310, %v5322
      %v5324 = vlaneseq
      %v5325 = vshrl.u32 %v5324, 7
      %v5326 = vsub.s32 3, %v5325
      %v5327 = vrot.slane %v5310, %v5326
      %v5328 = vlaneseq
      %v5329 = vshrl.u32 %v5328, 7
      %v5330 = vsub.s32 4, %v5329
      %v5331 = vrot.slane %v5310, %v5330
      %v5332 = vlaneseq
      %v5333 = vshrl.u32 %v5332, 7
      %v5334 = vsub.s32 5, %v5333
      %v5335 = vrot.slane %v5310, %v5334
      %v5336 = vlaneseq
      %v5337 = vshrl.u32 %v5336, 7
      %v5338 = vsub.s32 6, %v5337
      %v5339 = vrot.slane %v5310, %v5338
      %v5340 = vlaneseq
      %v5341 = vshrl.u32 %v5340, 7
      %v5342 = vsub.s32 7, %v5341
      %v5343 = vrot.slane %v5310, %v5342
      %vm5352 = vcmp.eq.f32.partialorder %v5140, %v5315
      %vm5353 = vcmp.eq.f32.partialorder %v5141, %v5319
      %vm5354 = vcmp.eq.f32.partialorder %v5142, %v5323
      %vm5355 = vcmp.eq.f32.partialorder %v5143, %v5327
      %vm5356 = vcmp.eq.f32.partialorder %v5144, %v5331
      %vm5357 = vcmp.eq.f32.partialorder %v5145, %v5335
      %vm5358 = vcmp.eq.f32.partialorder %v5146, %v5339
      %vm5359 = vcmp.eq.f32.partialorder %v5147, %v5343
      %v5360 = vsel %vm5352, %v3445, 8.0
      %v5361 = vsel %vm5353, %v3445, 8.0
      %v5362 = vsel %vm5354, %v3445, 8.0
      %v5363 = vsel %vm5355, %v3445, 8.0
      %v5364 = vsel %vm5356, %v3445, 8.0
      %v5365 = vsel %vm5357, %v3445, 8.0
      %v5366 = vsel %vm5358, %v3445, 8.0
      %v5367 = vsel %vm5359, %v3445, 8.0
      %5376 = vset.pattern.permute.xlu0 0
      %5377 = vperm.xlu0 %5376, %v5360
      %v5378 = vpop.permute.xlu0 %5377
      %5379 = vset.pattern.permute.xlu0 0
      %5380 = vperm.xlu0 %5379, %v5361
      %v5381 = vpop.permute.xlu0 %5380
      %5382 = vset.pattern.permute.xlu0 0
      %5383 = vperm.xlu0 %5382, %v5362
      %v5384 = vpop.permute.xlu0 %5383
      %5385 = vset.pattern.permute.xlu0 0
      %5386 = vperm.xlu0 %5385, %v5363
      %v5387 = vpop.permute.xlu0 %5386
      %5388 = vset.pattern.permute.xlu0 0
      %5389 = vperm.xlu0 %5388, %v5364
      %v5390 = vpop.permute.xlu0 %5389
      %5391 = vset.pattern.permute.xlu0 0
      %5392 = vperm.xlu0 %5391, %v5365
      %v5393 = vpop.permute.xlu0 %5392
      %5394 = vset.pattern.permute.xlu0 0
      %5395 = vperm.xlu0 %5394, %v5366
      %v5396 = vpop.permute.xlu0 %5395
      %5397 = vset.pattern.permute.xlu0 0
      %5398 = vperm.xlu0 %5397, %v5367
      %v5399 = vpop.permute.xlu0 %5398
      %v5400 = vlaneseq
      %v5401 = vshrl.u32 %v5400, 7
      %v5402 = vsub.s32 %v1806, %v5401
      %v5403 = vrot.slane %v5378, %v5402
      %v5404 = vlaneseq
      %v5405 = vshrl.u32 %v5404, 7
      %v5406 = vsub.s32 %v1806, %v5405
      %v5407 = vrot.slane %v5381, %v5406
      %v5408 = vlaneseq
      %v5409 = vshrl.u32 %v5408, 7
      %v5410 = vsub.s32 %v1806, %v5409
      %v5411 = vrot.slane %v5384, %v5410
      %v5412 = vlaneseq
      %v5413 = vshrl.u32 %v5412, 7
      %v5414 = vsub.s32 %v1806, %v5413
      %v5415 = vrot.slane %v5387, %v5414
      %v5416 = vlaneseq
      %v5417 = vshrl.u32 %v5416, 7
      %v5418 = vsub.s32 %v1806, %v5417
      %v5419 = vrot.slane %v5390, %v5418
      %v5420 = vlaneseq
      %v5421 = vshrl.u32 %v5420, 7
      %v5422 = vsub.s32 %v1806, %v5421
      %v5423 = vrot.slane %v5393, %v5422
      %v5424 = vlaneseq
      %v5425 = vshrl.u32 %v5424, 7
      %v5426 = vsub.s32 %v1806, %v5425
      %v5427 = vrot.slane %v5396, %v5426
      %v5428 = vlaneseq
      %v5429 = vshrl.u32 %v5428, 7
      %v5430 = vsub.s32 %v1806, %v5429
      %v5431 = vrot.slane %v5399, %v5430
      %v5432 = vsel %vm1777, %v5407, %v5403
      %v5433 = vsel %vm1779, %v5411, %v5432
      %v5434 = vsel %vm1781, %v5415, %v5433
      %v5435 = vsel %vm1783, %v5419, %v5434
      %v5436 = vsel %vm1785, %v5423, %v5435
      %v5437 = vsel %vm1787, %v5427, %v5436
      %v5438 = vsel %vm1789, %v5431, %v5437
      %v5440 = vsel %vm2900, %v5438, inf
      %5441 = vmin.xlane.f32.xlu0 %v5440
      %v5442 = vpop.xlane.xlu0 %5441
      %vm5443 = vcmp.eq.f32.partialorder %v1807, %v5442
      %v5444 = vsel %vm5443, 1, 0
      %v5445 = vcvt.s32.f32 %v5444
      %v5447 = vlaneseq
      %v5448 = vshrl.u32 %v5447, 7
      %v5449 = vsub.s32 0, %v5448
      %v5450 = vrot.slane %v5445, %v5449
      %5452 = vbcast.lane.b32.xlu0 %v5450, 256
      %v5453 = vpop.permute.xlu0 %5452
      %v5454 = vlaneseq
      %v5455 = vshrl.u32 %v5454, 7
      %v5456 = vsub.s32 1, %v5455
      %v5457 = vrot.slane %v5445, %v5456
      %5459 = vbcast.lane.b32.xlu0 %v5457, 256
      %v5460 = vpop.permute.xlu0 %5459
      %v5461 = vlaneseq
      %v5462 = vshrl.u32 %v5461, 7
      %v5463 = vsub.s32 2, %v5462
      %v5464 = vrot.slane %v5445, %v5463
      %5466 = vbcast.lane.b32.xlu0 %v5464, 256
      %v5467 = vpop.permute.xlu0 %5466
      %v5468 = vlaneseq
      %v5469 = vshrl.u32 %v5468, 7
      %v5470 = vsub.s32 3, %v5469
      %v5471 = vrot.slane %v5445, %v5470
      %5473 = vbcast.lane.b32.xlu0 %v5471, 256
      %v5474 = vpop.permute.xlu0 %5473
      %v5475 = vlaneseq
      %v5476 = vshrl.u32 %v5475, 7
      %v5477 = vsub.s32 4, %v5476
      %v5478 = vrot.slane %v5445, %v5477
      %5480 = vbcast.lane.b32.xlu0 %v5478, 256
      %v5481 = vpop.permute.xlu0 %5480
      %v5482 = vlaneseq
      %v5483 = vshrl.u32 %v5482, 7
      %v5484 = vsub.s32 5, %v5483
      %v5485 = vrot.slane %v5445, %v5484
      %5487 = vbcast.lane.b32.xlu0 %v5485, 256
      %v5488 = vpop.permute.xlu0 %5487
      %v5489 = vlaneseq
      %v5490 = vshrl.u32 %v5489, 7
      %v5491 = vsub.s32 6, %v5490
      %v5492 = vrot.slane %v5445, %v5491
      %5494 = vbcast.lane.b32.xlu0 %v5492, 256
      %v5495 = vpop.permute.xlu0 %5494
      %v5496 = vlaneseq
      %v5497 = vshrl.u32 %v5496, 7
      %v5498 = vsub.s32 7, %v5497
      %v5499 = vrot.slane %v5445, %v5498
      %5501 = vbcast.lane.b32.xlu0 %v5499, 256
      %v5502 = vpop.permute.xlu0 %5501
      %v5511 = vmul.f32 %v5140, %v5453
      %v5512 = vmul.f32 %v5141, %v5460
      %v5513 = vmul.f32 %v5142, %v5467
      %v5514 = vmul.f32 %v5143, %v5474
      %v5515 = vmul.f32 %v5144, %v5481
      %v5516 = vmul.f32 %v5145, %v5488
      %v5517 = vmul.f32 %v5146, %v5495
      %v5518 = vmul.f32 %v5147, %v5502
      %5527 = vset.pattern.permute.xlu0 0
      %5528 = vperm.xlu0 %5527, %v5511
      %v5529 = vpop.permute.xlu0 %5528
      %5530 = vset.pattern.permute.xlu0 0
      %5531 = vperm.xlu0 %5530, %v5512
      %v5532 = vpop.permute.xlu0 %5531
      %5533 = vset.pattern.permute.xlu0 0
      %5534 = vperm.xlu0 %5533, %v5513
      %v5535 = vpop.permute.xlu0 %5534
      %5536 = vset.pattern.permute.xlu0 0
      %5537 = vperm.xlu0 %5536, %v5514
      %v5538 = vpop.permute.xlu0 %5537
      %5539 = vset.pattern.permute.xlu0 0
      %5540 = vperm.xlu0 %5539, %v5515
      %v5541 = vpop.permute.xlu0 %5540
      %5542 = vset.pattern.permute.xlu0 0
      %5543 = vperm.xlu0 %5542, %v5516
      %v5544 = vpop.permute.xlu0 %5543
      %5545 = vset.pattern.permute.xlu0 0
      %5546 = vperm.xlu0 %5545, %v5517
      %v5547 = vpop.permute.xlu0 %5546
      %5548 = vset.pattern.permute.xlu0 0
      %5549 = vperm.xlu0 %5548, %v5518
      %v5550 = vpop.permute.xlu0 %5549
      %v5551 = vlaneseq
      %v5552 = vshrl.u32 %v5551, 7
      %v5553 = vsub.s32 %v1806, %v5552
      %v5554 = vrot.slane %v5529, %v5553
      %v5555 = vlaneseq
      %v5556 = vshrl.u32 %v5555, 7
      %v5557 = vsub.s32 %v1806, %v5556
      %v5558 = vrot.slane %v5532, %v5557
      %v5559 = vlaneseq
      %v5560 = vshrl.u32 %v5559, 7
      %v5561 = vsub.s32 %v1806, %v5560
      %v5562 = vrot.slane %v5535, %v5561
      %v5563 = vlaneseq
      %v5564 = vshrl.u32 %v5563, 7
      %v5565 = vsub.s32 %v1806, %v5564
      %v5566 = vrot.slane %v5538, %v5565
      %v5567 = vlaneseq
      %v5568 = vshrl.u32 %v5567, 7
      %v5569 = vsub.s32 %v1806, %v5568
      %v5570 = vrot.slane %v5541, %v5569
      %v5571 = vlaneseq
      %v5572 = vshrl.u32 %v5571, 7
      %v5573 = vsub.s32 %v1806, %v5572
      %v5574 = vrot.slane %v5544, %v5573
      %v5575 = vlaneseq
      %v5576 = vshrl.u32 %v5575, 7
      %v5577 = vsub.s32 %v1806, %v5576
      %v5578 = vrot.slane %v5547, %v5577
      %v5579 = vlaneseq
      %v5580 = vshrl.u32 %v5579, 7
      %v5581 = vsub.s32 %v1806, %v5580
      %v5582 = vrot.slane %v5550, %v5581
      %v5583 = vsel %vm1777, %v5558, %v5554
      %v5584 = vsel %vm1779, %v5562, %v5583
      %v5585 = vsel %vm1781, %v5566, %v5584
      %v5586 = vsel %vm1783, %v5570, %v5585
      %v5587 = vsel %vm1785, %v5574, %v5586
      %v5588 = vsel %vm1787, %v5578, %v5587
      %v5589 = vsel %vm1789, %v5582, %v5588
      %v5591 = vsel %vm2900, %v5589, 0.0
      %5592 = vadd.xlane.f32.xlu0 %v5591
      %v5593 = vpop.xlane.xlu0 %5592
      %v5594 = vsub.f32 0.0, %v5593
      %v5595 = vmul.f32 %v5228, %v5453
      %v5596 = vmul.f32 %v5229, %v5460
      %v5597 = vmul.f32 %v5230, %v5467
      %v5598 = vmul.f32 %v5231, %v5474
      %v5599 = vmul.f32 %v5232, %v5481
      %v5600 = vmul.f32 %v5233, %v5488
      %v5601 = vmul.f32 %v5234, %v5495
      %v5602 = vmul.f32 %v5235, %v5502
      %5611 = vset.pattern.permute.xlu0 0
      %5612 = vperm.xlu0 %5611, %v5595
      %v5613 = vpop.permute.xlu0 %5612
      %5614 = vset.pattern.permute.xlu0 0
      %5615 = vperm.xlu0 %5614, %v5596
      %v5616 = vpop.permute.xlu0 %5615
      %5617 = vset.pattern.permute.xlu0 0
      %5618 = vperm.xlu0 %5617, %v5597
      %v5619 = vpop.permute.xlu0 %5618
      %5620 = vset.pattern.permute.xlu0 0
      %5621 = vperm.xlu0 %5620, %v5598
      %v5622 = vpop.permute.xlu0 %5621
      %5623 = vset.pattern.permute.xlu0 0
      %5624 = vperm.xlu0 %5623, %v5599
      %v5625 = vpop.permute.xlu0 %5624
      %5626 = vset.pattern.permute.xlu0 0
      %5627 = vperm.xlu0 %5626, %v5600
      %v5628 = vpop.permute.xlu0 %5627
      %5629 = vset.pattern.permute.xlu0 0
      %5630 = vperm.xlu0 %5629, %v5601
      %v5631 = vpop.permute.xlu0 %5630
      %5632 = vset.pattern.permute.xlu0 0
      %5633 = vperm.xlu0 %5632, %v5602
      %v5634 = vpop.permute.xlu0 %5633
      %v5635 = vlaneseq
      %v5636 = vshrl.u32 %v5635, 7
      %v5637 = vsub.s32 %v1806, %v5636
      %v5638 = vrot.slane %v5613, %v5637
      %v5639 = vlaneseq
      %v5640 = vshrl.u32 %v5639, 7
      %v5641 = vsub.s32 %v1806, %v5640
      %v5642 = vrot.slane %v5616, %v5641
      %v5643 = vlaneseq
      %v5644 = vshrl.u32 %v5643, 7
      %v5645 = vsub.s32 %v1806, %v5644
      %v5646 = vrot.slane %v5619, %v5645
      %v5647 = vlaneseq
      %v5648 = vshrl.u32 %v5647, 7
      %v5649 = vsub.s32 %v1806, %v5648
      %v5650 = vrot.slane %v5622, %v5649
      %v5651 = vlaneseq
      %v5652 = vshrl.u32 %v5651, 7
      %v5653 = vsub.s32 %v1806, %v5652
      %v5654 = vrot.slane %v5625, %v5653
      %v5655 = vlaneseq
      %v5656 = vshrl.u32 %v5655, 7
      %v5657 = vsub.s32 %v1806, %v5656
      %v5658 = vrot.slane %v5628, %v5657
      %v5659 = vlaneseq
      %v5660 = vshrl.u32 %v5659, 7
      %v5661 = vsub.s32 %v1806, %v5660
      %v5662 = vrot.slane %v5631, %v5661
      %v5663 = vlaneseq
      %v5664 = vshrl.u32 %v5663, 7
      %v5665 = vsub.s32 %v1806, %v5664
      %v5666 = vrot.slane %v5634, %v5665
      %v5667 = vsel %vm1777, %v5642, %v5638
      %v5668 = vsel %vm1779, %v5646, %v5667
      %v5669 = vsel %vm1781, %v5650, %v5668
      %v5670 = vsel %vm1783, %v5654, %v5669
      %v5671 = vsel %vm1785, %v5658, %v5670
      %v5672 = vsel %vm1787, %v5662, %v5671
      %v5673 = vsel %vm1789, %v5666, %v5672
      %v5675 = vsel %vm2900, %v5673, 0.0
      %5676 = vadd.xlane.f32.xlu0 %v5675
      %v5677 = vpop.xlane.xlu0 %5676
      %v5678 = vmul.f32 %v4265, %v5445
      %v5679 = vsel %vm2900, %v5678, 0.0
      %5680 = vadd.xlane.f32.xlu0 %v5679
      %v5681 = vpop.xlane.xlu0 %5680
      %5682 = vrot.lane.b32.xlu0 %v5445, 8
      %v5683 = vpop.permute.xlu0 %5682
      %v5685 = vmul.f32 %v4265, %v5683
      %5687 = vrot.lane.b32.xlu0 %v5685, 120
      %v5688 = vpop.permute.xlu0 %5687
      %v5690 = vsel %vm2900, %v5688, 0.0
      %5691 = vadd.xlane.f32.xlu0 %v5690
      %v5692 = vpop.xlane.xlu0 %5691
      %5693 = vrot.lane.b32.xlu0 %v5445, 16
      %v5694 = vpop.permute.xlu0 %5693
      %v5696 = vmul.f32 %v4265, %v5694
      %5698 = vrot.lane.b32.xlu0 %v5696, 112
      %v5699 = vpop.permute.xlu0 %5698
      %v5701 = vsel %vm2900, %v5699, 0.0
      %5702 = vadd.xlane.f32.xlu0 %v5701
      %v5703 = vpop.xlane.xlu0 %5702
      %v5704 = vmul.f32 %v5594, %v1810
      %v5705 = vmul.f32 %v5442, %v1813
      %v5706 = vadd.f32 %v5704, %v5705
      %v5707 = vmul.f32 %v5677, %v1816
      %v5708 = vadd.f32 %v5706, %v5707
      %v5709 = vmul.f32 %v5692, %v1819
      %v5710 = vadd.f32 %v5708, %v5709
      %v5711 = vmul.f32 %v5703, %v1822
      %v5712 = vadd.f32 %v5710, %v5711
      %v5713 = vmul.f32 %v5681, %v1825
      %v5714 = vadd.f32 %v5712, %v5713
      %5716 = vrot.lane.b32.xlu0 %v5714, 8
      %v5717 = vpop.permute.xlu0 %5716
      %v5719 = vsel %vm2900, %v5306, %v5717
      %v5720 = vsel %vm3807, %v5719, 0.0
      %5721 = vst [vmem:[%s461] sm:$0xff] %v3808
      %5722 = vst [vmem:[%s461 + $0x8] sm:$0xff] %v5720
      %s5723 = smul.u32 2, %s22
      %p5724 = scmp.lt.s32.totalorder %s5723, 3
      %s5725 = scalar_select %p5724, %s5723, 3
      %s5726 = smul.addr %s5725, 8
      %s5727 = scalar_lea.vmem %s11, %s5726
      // Predicated region
      $region65: #{episode_forward.1} parent=63 // pred_check
        %p5728 = pneg %p296
      $region66: #{episode_forward.1} parent=63 // pred_check_branch
        %5730 = sbr.rel (%p5728) target = $region68
      $region67: #{episode_forward.1} parent=63 // pred_region
        %s5731 = smul.u32 2, %s22
      $region68: #{episode_forward.1} parent=63 // pred_fallthru
        _
    $region64: #{episode_forward.1} parent=5 // pred_fallthru
      _
    %p5732 = scmp.le.s32.totalorder 2, %s17
    // Predicated region
    $region69: #{episode_forward.1} parent=5 // pred_check
      %p5733 = pneg %p5732
    $region70: #{episode_forward.1} parent=5 // pred_check_branch
      %5735 = sbr.rel (%p5733) target = $region72
    $region71: #{episode_forward.1} parent=5 // pred_region
      %s5736 = ssub.s32 %s17, 2
      // Predicated region
      $region73: #{episode_forward.1} parent=71 // pred_check
        %p5737 = pneg %p302
      $region74: #{episode_forward.1} parent=71 // pred_check_branch
        %5739 = sbr.rel (%p5737) target = $region76
      $region75: #{episode_forward.1} parent=71 // pred_region
        %s5740 = smul.u32 2, %s23
        %p5741 = scmp.lt.s32.totalorder %s5740, 3
        %s5742 = scalar_select %p5741, %s5740, 3
        %s5743 = smul.addr %s5742, 8
        %s5744 = scalar_lea.vmem %s11, %s5743
      $region76: #{episode_forward.1} parent=71 // pred_fallthru
        _
    $region72: #{episode_forward.1} parent=5 // pred_fallthru
      _
  $region6: #{episode_forward.1} parent=0 // loop_footer
    %s21 = sadd.s32 1, %s17
  $region7: #{episode_forward.1} parent=0 // loop_footer_branch
    %16 = sbr.rel target = $region3
  $region8: #{episode_forward.1} parent=0 // loop_exit
    _

</llo_original>
